<compile_context>
chip_gen: v6e
topology: v6e:2x2x1
jax: 0.10.0
libtpu: 0.0.40
codegen_flags: <defaults>
</compile_context>

<pallas_src>
import math

import jax
import jax.numpy as jnp
from jax.experimental import pallas as pl
from jax.experimental.pallas import tpu as pltpu

VMEM = pltpu.MemorySpace.VMEM

# ---------------- model / graph configuration (small, deterministic) ----------------
NODE_DICT = {"author": 0, "paper": 1}
EDGE_DICT = {
    ("author", "writes", "paper"): 0,
    ("paper", "cites", "author"): 1,
    ("author", "follows", "author"): 2,
}
IN_DIM = 8
HIDDEN = 32
N_HEADS = 2
D_K = HIDDEN // N_HEADS
N_LAYERS = 2
USE_NORM = True
NUM_NODES = {"author": 8, "paper": 8}
NUM_TYPES = len(NODE_DICT)
NUM_RELS = len(EDGE_DICT)

_INV_SQRT2 = 0.7071067811865476


# ---------------------------------- Pallas kernel ------------------------------------
def _gelu_erf(x):
    # Exact-erf GELU via Abramowitz–Stegun 7.1.26 (max |erf error| ~1.5e-7).
    # Uses only mul/add/abs/exp/div so it is guaranteed to lower in Mosaic.
    z = x * _INV_SQRT2
    az = jnp.abs(z)
    t = 1.0 / (1.0 + 0.3275911 * az)
    poly = t * (0.254829592 + t * (-0.284496736 + t * (1.421413741
           + t * (-1.453152027 + t * 1.061405429))))
    erf_abs = 1.0 - poly * jnp.exp(-az * az)
    erf = jnp.where(z >= 0, erf_abs, -erf_abs)
    return 0.5 * x * (1.0 + erf)


def _hgt_forward_kernel(
    x0_ref, x1_ref, aw_ref, ab_ref, wq_ref, bq_ref, wrel_ref, brel_ref,
    wa_ref, ba_ref, oma_ref, gamma_ref, beta_ref, mask_ref, o0_ref, o1_ref,
):
    # x*:    (N, IN_DIM)                 raw node features (type 0=author, 1=paper)
    # aw/ab: (T, IN_DIM, HIDDEN)/(T,1,HIDDEN)   adapt projection per node type
    # wq/bq: (L*T, HIDDEN, HIDDEN)/(L*T,1,HIDDEN)  q projection, index l*T + t
    # wrel:  (L*R, HIDDEN, 4*HIDDEN)     fused per-relation [k_h0|k_h1|v_h0|v_h1] weights
    #                                    (rel_att pre-scaled by pri/sqrt(dk), head-masked)
    # brel:  (L*R, 1, 4*HIDDEN)          matching biases (bias also flows through rel mats)
    # wa/ba: (L*T, HIDDEN, HIDDEN)/(L*T,1,HIDDEN)  a_linear, alpha & 1/cnt folded in
    # oma:   (L*T, 1, HIDDEN)            (1 - alpha) broadcast
    # gamma/beta: (L*T, 1, HIDDEN)       LayerNorm params
    # mask:  (R, Nd, Ns)                 dense adjacency (1.0 where src->dst edge exists)

    # ---- adapt projection + GELU (one lane-dense MXU pass per node type) ----
    x_refs = (x0_ref, x1_ref)
    h = []
    for t in range(NUM_TYPES):
        y = jnp.dot(x_refs[t][...], aw_ref[t],
                    preferred_element_type=jnp.float32) + ab_ref[t]
        h.append(_gelu_erf(y))

    masks = [mask_ref[e] for e in range(NUM_RELS)]

    # ---- HGT layers (static unrolled loop; params stacked on leading axis) ----
    for l in range(N_LAYERS):
        q = [
            jnp.dot(h[t], wq_ref[l * NUM_TYPES + t],
                    preferred_element_type=jnp.float32) + bq_ref[l * NUM_TYPES + t]
            for t in range(NUM_TYPES)
        ]

        agg = [None] * NUM_TYPES
        for (src, _ename, dst), e in EDGE_DICT.items():
            s_id, d_id = NODE_DICT[src], NODE_DICT[dst]
            # Fused per-relation projection: k_rel and v_rel for every head, each
            # head-masked, straight off the MXU (relation matrices folded at prep time).
            rp = (
                jnp.dot(h[s_id], wrel_ref[l * NUM_RELS + e],
                        preferred_element_type=jnp.float32)
                + brel_ref[l * NUM_RELS + e]
            )                                               # (Ns, 4*HIDDEN)
            mask = masks[e]                                 # (Nd, Ns)

            out = None
            for hh in range(N_HEADS):
                k_h = rp[:, hh * HIDDEN:(hh + 1) * HIDDEN]                  # head-masked
                v_h = rp[:, (N_HEADS + hh) * HIDDEN:(N_HEADS + hh + 1) * HIDDEN]
                # Full 32-lane contraction; non-head lanes of k_h are zero, so this
                # equals the per-head dot product q_h . k_rel_h (pri/sqrt(dk) folded in).
                s = jax.lax.dot_general(
                    q[d_id], k_h, (((1,), (1,)), ((), ())),
                    preferred_element_type=jnp.float32,
                )                                           # (Nd, Ns)
                # edge_softmax over incoming edges (norm_by='dst'). The unmasked row max
                # is a valid stabilizer; post-exp mask keeps zero-in-degree destination
                # rows exactly 0 (matches DGL fn.sum semantics).
                p = jnp.exp(s - jnp.max(s, axis=-1, keepdims=True)) * mask
                denom = jnp.maximum(jnp.sum(p, axis=-1, keepdims=True), 1e-30)
                attn = p * pl.reciprocal(denom, approx=False)
                contrib = jnp.dot(attn, v_h, preferred_element_type=jnp.float32)
                out = contrib if out is None else out + contrib

            agg[d_id] = out if agg[d_id] is None else agg[d_id] + out

        new_h = []
        for t in range(NUM_TYPES):
            if agg[t] is None:
                # node type received no messages (DGL KeyError branch): keep features
                new_h.append(h[t])
                continue
            idx = l * NUM_TYPES + t
            # a_linear with alpha (skip gate) and 1/num_relations (cross 'mean') folded
            trans = jnp.dot(agg[t], wa_ref[idx],
                            preferred_element_type=jnp.float32) + ba_ref[idx]
            x = trans + h[t] * oma_ref[idx]
            if USE_NORM:
                mu = jnp.mean(x, axis=-1, keepdims=True)
                var = jnp.mean(jnp.square(x - mu), axis=-1, keepdims=True)
                x = (x - mu) * jax.lax.rsqrt(var + 1e-5)
                x = x * gamma_ref[idx] + beta_ref[idx]
            new_h.append(x)
        h = new_h

    o0_ref[...] = h[0]
    o1_ref[...] = h[1]


def pallas_hgt_forward(prep, x0, x1, masks):
    return pl.pallas_call(
        _hgt_forward_kernel,
        out_shape=(
            jax.ShapeDtypeStruct((x0.shape[0], HIDDEN), jnp.float32),
            jax.ShapeDtypeStruct((x1.shape[0], HIDDEN), jnp.float32),
        ),
        in_specs=[pl.BlockSpec(memory_space=VMEM)] * 14,
        out_specs=(pl.BlockSpec(memory_space=VMEM), pl.BlockSpec(memory_space=VMEM)),
    )(
        x0, x1, prep["adapt_w"], prep["adapt_b"], prep["wq"], prep["bq"],
        prep["wrel"], prep["brel"], prep["wa"], prep["ba"],
        prep["oma"], prep["gamma"], prep["beta"], masks,
    )


# ----------------------------------- parameters --------------------------------------
def _init_linear(key, din, dout):
    k1, k2 = jax.random.split(key)
    bound = 1.0 / math.sqrt(din)
    w = jax.random.uniform(k1, (din, dout), jnp.float32, -bound, bound)
    b = jax.random.uniform(k2, (1, dout), jnp.float32, -bound, bound)
    return w, b


def init_params(key):
    keys = iter(jax.random.split(key, 256))
    params = {"adapt": [_init_linear(next(keys), IN_DIM, HIDDEN) for _ in range(NUM_TYPES)]}
    xav = math.sqrt(6.0 / (D_K + D_K))  # xavier_uniform for (d_k, d_k) relation matrices
    layers = []
    for _ in range(N_LAYERS):
        lp = {
            "k": [_init_linear(next(keys), HIDDEN, HIDDEN) for _ in range(NUM_TYPES)],
            "q": [_init_linear(next(keys), HIDDEN, HIDDEN) for _ in range(NUM_TYPES)],
            "v": [_init_linear(next(keys), HIDDEN, HIDDEN) for _ in range(NUM_TYPES)],
            "a": [_init_linear(next(keys), HIDDEN, HIDDEN) for _ in range(NUM_TYPES)],
            "ln": [
                (jnp.ones((1, HIDDEN), jnp.float32), jnp.zeros((1, HIDDEN), jnp.float32))
                for _ in range(NUM_TYPES)
            ],
            "rel_att": jax.random.uniform(
                next(keys), (NUM_RELS, N_HEADS, D_K, D_K), jnp.float32, -xav, xav
            ),
            "rel_msg": jax.random.uniform(
                next(keys), (NUM_RELS, N_HEADS, D_K, D_K), jnp.float32, -xav, xav
            ),
            "rel_pri": jnp.ones((NUM_RELS, N_HEADS), jnp.float32),
            "skip": jnp.ones((NUM_TYPES,), jnp.float32),
        }
        layers.append(lp)
    params["layers"] = layers
    return params


def _head_block(mat_h, hh):
    # Embed a (d_k, d_k) head matrix as a head-masked (HIDDEN, HIDDEN) matrix
    # (only the [hh] diagonal block is nonzero -> its output lanes isolate that head).
    z = jnp.zeros((HIDDEN, HIDDEN), jnp.float32)
    return z.at[hh * D_K:(hh + 1) * D_K, hh * D_K:(hh + 1) * D_K].set(mat_h)


def prepare_params(params):
    """One-time parameter transform (plain JAX): fold relation matrices, pri/sqrt(dk),
    head masking, skip-gate alpha, and the cross-relation mean into the weights."""
    sqrt_dk = math.sqrt(D_K)
    cnt = {t: 0 for t in range(NUM_TYPES)}          # relations targeting each node type
    for (_src, _en, dst) in EDGE_DICT:
        cnt[NODE_DICT[dst]] += 1

    prep = {
        "adapt_w": jnp.stack([params["adapt"][t][0] for t in range(NUM_TYPES)]),
        "adapt_b": jnp.stack([params["adapt"][t][1] for t in range(NUM_TYPES)]),
    }

    wq_l, bq_l, wrel_l, brel_l = [], [], [], []
    wa_l, ba_l, oma_l, g_l, b2_l = [], [], [], [], []
    for lp in params["layers"]:
        alpha = jax.nn.sigmoid(lp["skip"]).astype(jnp.float32)     # (T,)

        wq_l.append(jnp.stack([lp["q"][t][0] for t in range(NUM_TYPES)]))
        bq_l.append(jnp.stack([lp["q"][t][1] for t in range(NUM_TYPES)]))

        wrel_e, brel_e = [], []
        for (src, _en, _dst), e in sorted(EDGE_DICT.items(), key=lambda kv: kv[1]):
            s_id = NODE_DICT[src]
            Wk, bk = lp["k"][s_id]
            Wv, bv = lp["v"][s_id]
            blocks_w, blocks_b = [], []
            for hh in range(N_HEADS):   # k path: rel_att pre-scaled by pri/sqrt(dk)
                scale = lp["rel_pri"][e, hh] / sqrt_dk
                m = _head_block(lp["rel_att"][e, hh] * scale, hh)
                blocks_w.append(Wk @ m)
                blocks_b.append(bk @ m)
            for hh in range(N_HEADS):   # v path: rel_msg
                m = _head_block(lp["rel_msg"][e, hh], hh)
                blocks_w.append(Wv @ m)
                blocks_b.append(bv @ m)
            wrel_e.append(jnp.concatenate(blocks_w, axis=1))        # (HIDDEN, 4*HIDDEN)
            brel_e.append(jnp.concatenate(blocks_b, axis=1))        # (1, 4*HIDDEN)
        wrel_l.append(jnp.stack(wrel_e))
        brel_l.append(jnp.stack(brel_e))

        wa_l.append(jnp.stack(
            [lp["a"][t][0] * alpha[t] / max(cnt[t], 1) for t in range(NUM_TYPES)]))
        ba_l.append(jnp.stack([lp["a"][t][1] * alpha[t] for t in range(NUM_TYPES)]))
        oma_l.append(jnp.stack(
            [(1.0 - alpha[t]) * jnp.ones((1, HIDDEN), jnp.float32) for t in range(NUM_TYPES)]))
        g_l.append(jnp.stack([lp["ln"][t][0] for t in range(NUM_TYPES)]))
        b2_l.append(jnp.stack([lp["ln"][t][1] for t in range(NUM_TYPES)]))

    # Flatten the layer axis into the leading dim: index l*NUM_TYPES+t / l*NUM_RELS+e.
    prep.update(
        wq=jnp.concatenate(wq_l, axis=0), bq=jnp.concatenate(bq_l, axis=0),
        wrel=jnp.concatenate(wrel_l, axis=0), brel=jnp.concatenate(brel_l, axis=0),
        wa=jnp.concatenate(wa_l, axis=0), ba=jnp.concatenate(ba_l, axis=0),
        oma=jnp.concatenate(oma_l, axis=0),
        gamma=jnp.concatenate(g_l, axis=0), beta=jnp.concatenate(b2_l, axis=0),
    )
    return prep


# ------------------------------------ forward ----------------------------------------
def hgt_forward(prep, feats, masks):
    type_names = sorted(NODE_DICT, key=NODE_DICT.get)  # ["author", "paper"]
    o0, o1 = pallas_hgt_forward(prep, feats[type_names[0]], feats[type_names[1]], masks)
    return {type_names[0]: o0, type_names[1]: o1}


# -------------------------------------- main ------------------------------------------
if __name__ == "__main__":
    key = jax.random.PRNGKey(0)
    kp, kf, kg = jax.random.split(key, 3)

    params = init_params(kp)
    prep = prepare_params(params)

    feat_keys = jax.random.split(kf, NUM_TYPES)
    feats = {
        nt: jax.random.normal(feat_keys[i], (NUM_NODES[nt], IN_DIM), jnp.float32)
        for i, nt in enumerate(NODE_DICT)
    }

    adj_keys = jax.random.split(kg, NUM_RELS)
    mask_list = []
    for i, (src, ename, dst) in enumerate(EDGE_DICT):
        m = jax.random.bernoulli(adj_keys[i], 0.5, (NUM_NODES[dst], NUM_NODES[src]))
        mask_list.append(m.astype(jnp.float32))
    masks = jnp.stack(mask_list)  # (R, Nd, Ns), ordered by e_id

    fwd = jax.jit(hgt_forward)
    out = fwd(prep, feats, masks)
    for ntype, val in out.items():
        assert val.shape == (NUM_NODES[ntype], HIDDEN)
        jax.block_until_ready(val)
    print("KERNEL_OK")
</pallas_src>

<mosaic_0001>
module attributes {stable_mosaic.version = 11 : i64} {
  func.func @_hgt_forward_kernel(%arg0: memref<8x8xf32, #tpu.memory_space<vmem>>, %arg1: memref<8x8xf32, #tpu.memory_space<vmem>>, %arg2: memref<2x8x32xf32, #tpu.memory_space<vmem>>, %arg3: memref<2x1x32xf32, #tpu.memory_space<vmem>>, %arg4: memref<4x32x32xf32, #tpu.memory_space<vmem>>, %arg5: memref<4x1x32xf32, #tpu.memory_space<vmem>>, %arg6: memref<6x32x128xf32, #tpu.memory_space<vmem>>, %arg7: memref<6x1x128xf32, #tpu.memory_space<vmem>>, %arg8: memref<4x32x32xf32, #tpu.memory_space<vmem>>, %arg9: memref<4x1x32xf32, #tpu.memory_space<vmem>>, %arg10: memref<4x1x32xf32, #tpu.memory_space<vmem>>, %arg11: memref<4x1x32xf32, #tpu.memory_space<vmem>>, %arg12: memref<4x1x32xf32, #tpu.memory_space<vmem>>, %arg13: memref<3x8x8xf32, #tpu.memory_space<vmem>>, %arg14: memref<8x32xf32, #tpu.memory_space<vmem>>, %arg15: memref<8x32xf32, #tpu.memory_space<vmem>>) attributes {dimension_semantics = [], scalar_prefetch = 0 : i64, scratch_operands = 0 : i64, tpu.core_type = #tpu.core_type<tc>} {
    %c0 = arith.constant 0 : index
    %c0_0 = arith.constant 0 : index
    %0 = vector.load %arg0[%c0, %c0_0] : memref<8x8xf32, #tpu.memory_space<vmem>>, vector<8x8xf32>
    %c0_1 = arith.constant 0 : index
    %c0_2 = arith.constant 0 : index
    %c0_3 = arith.constant 0 : index
    %1 = vector.load %arg2[%c0_1, %c0_2, %c0_3] : memref<2x8x32xf32, #tpu.memory_space<vmem>>, vector<1x8x32xf32>
    %2 = vector.shape_cast %1 : vector<1x8x32xf32> to vector<8x32xf32>
    %cst = arith.constant dense<0.000000e+00> : vector<8x32xf32>
    %3 = tpu.matmul %0, %2, %cst {dimension_numbers = #tpu.dot_dimension_numbers<[1], [0], [0], [1], [0, 0, 1, 1], [], []>} : vector<8x8xf32>, vector<8x32xf32>, vector<8x32xf32> -> vector<8x32xf32>
    %c0_4 = arith.constant 0 : index
    %c0_5 = arith.constant 0 : index
    %c0_6 = arith.constant 0 : index
    %4 = vector.load %arg3[%c0_4, %c0_5, %c0_6] : memref<2x1x32xf32, #tpu.memory_space<vmem>>, vector<1x1x32xf32>
    %5 = vector.shape_cast %4 : vector<1x1x32xf32> to vector<1x32xf32>
    %6 = vector.broadcast %5 : vector<1x32xf32> to vector<8x32xf32>
    %7 = arith.addf %3, %6 : vector<8x32xf32>
    %cst_7 = arith.constant 0.707106769 : f32
    %8 = vector.broadcast %cst_7 : f32 to vector<8x32xf32>
    %9 = arith.mulf %7, %8 : vector<8x32xf32>
    %10 = math.absf %9 : vector<8x32xf32>
    %cst_8 = arith.constant 0.327591091 : f32
    %11 = vector.broadcast %cst_8 : f32 to vector<8x32xf32>
    %12 = arith.mulf %11, %10 : vector<8x32xf32>
    %cst_9 = arith.constant 1.000000e+00 : f32
    %13 = vector.broadcast %cst_9 : f32 to vector<8x32xf32>
    %14 = arith.addf %13, %12 : vector<8x32xf32>
    %cst_10 = arith.constant 1.000000e+00 : f32
    %15 = vector.broadcast %cst_10 : f32 to vector<8x32xf32>
    %16 = arith.divf %15, %14 : vector<8x32xf32>
    %cst_11 = arith.constant 1.06140542 : f32
    %17 = vector.broadcast %cst_11 : f32 to vector<8x32xf32>
    %18 = arith.mulf %16, %17 : vector<8x32xf32>
    %cst_12 = arith.constant -1.45315206 : f32
    %19 = vector.broadcast %cst_12 : f32 to vector<8x32xf32>
    %20 = arith.addf %19, %18 : vector<8x32xf32>
    %21 = arith.mulf %16, %20 : vector<8x32xf32>
    %cst_13 = arith.constant 1.42141378 : f32
    %22 = vector.broadcast %cst_13 : f32 to vector<8x32xf32>
    %23 = arith.addf %22, %21 : vector<8x32xf32>
    %24 = arith.mulf %16, %23 : vector<8x32xf32>
    %cst_14 = arith.constant -0.284496725 : f32
    %25 = vector.broadcast %cst_14 : f32 to vector<8x32xf32>
    %26 = arith.addf %25, %24 : vector<8x32xf32>
    %27 = arith.mulf %16, %26 : vector<8x32xf32>
    %cst_15 = arith.constant 0.254829586 : f32
    %28 = vector.broadcast %cst_15 : f32 to vector<8x32xf32>
    %29 = arith.addf %28, %27 : vector<8x32xf32>
    %30 = arith.mulf %16, %29 : vector<8x32xf32>
    %cst_16 = arith.constant 0.000000e+00 : f32
    %31 = vector.broadcast %cst_16 : f32 to vector<8x32xf32>
    %32 = arith.subf %31, %10 : vector<8x32xf32>
    %33 = arith.mulf %32, %10 : vector<8x32xf32>
    %34 = math.exp %33 : vector<8x32xf32>
    %35 = arith.mulf %30, %34 : vector<8x32xf32>
    %cst_17 = arith.constant 1.000000e+00 : f32
    %36 = vector.broadcast %cst_17 : f32 to vector<8x32xf32>
    %37 = arith.subf %36, %35 : vector<8x32xf32>
    %cst_18 = arith.constant 0.000000e+00 : f32
    %38 = vector.broadcast %cst_18 : f32 to vector<8x32xf32>
    %39 = arith.cmpf oge, %9, %38 : vector<8x32xf32>
    %cst_19 = arith.constant 0.000000e+00 : f32
    %40 = vector.broadcast %cst_19 : f32 to vector<8x32xf32>
    %41 = arith.subf %40, %37 : vector<8x32xf32>
    %42 = arith.select %39, %37, %41 : vector<8x32xi1>, vector<8x32xf32>
    %cst_20 = arith.constant 5.000000e-01 : f32
    %43 = vector.broadcast %cst_20 : f32 to vector<8x32xf32>
    %44 = arith.mulf %43, %7 : vector<8x32xf32>
    %cst_21 = arith.constant 1.000000e+00 : f32
    %45 = vector.broadcast %cst_21 : f32 to vector<8x32xf32>
    %46 = arith.addf %45, %42 : vector<8x32xf32>
    %47 = arith.mulf %44, %46 : vector<8x32xf32>
    %c0_22 = arith.constant 0 : index
    %c0_23 = arith.constant 0 : index
    %48 = vector.load %arg1[%c0_22, %c0_23] : memref<8x8xf32, #tpu.memory_space<vmem>>, vector<8x8xf32>
    %c1 = arith.constant 1 : index
    %c0_24 = arith.constant 0 : index
    %c0_25 = arith.constant 0 : index
    %49 = vector.load %arg2[%c1, %c0_24, %c0_25] : memref<2x8x32xf32, #tpu.memory_space<vmem>>, vector<1x8x32xf32>
    %50 = vector.shape_cast %49 : vector<1x8x32xf32> to vector<8x32xf32>
    %cst_26 = arith.constant dense<0.000000e+00> : vector<8x32xf32>
    %51 = tpu.matmul %48, %50, %cst_26 {dimension_numbers = #tpu.dot_dimension_numbers<[1], [0], [0], [1], [0, 0, 1, 1], [], []>} : vector<8x8xf32>, vector<8x32xf32>, vector<8x32xf32> -> vector<8x32xf32>
    %c1_27 = arith.constant 1 : index
    %c0_28 = arith.constant 0 : index
    %c0_29 = arith.constant 0 : index
    %52 = vector.load %arg3[%c1_27, %c0_28, %c0_29] : memref<2x1x32xf32, #tpu.memory_space<vmem>>, vector<1x1x32xf32>
    %53 = vector.shape_cast %52 : vector<1x1x32xf32> to vector<1x32xf32>
    %54 = vector.broadcast %53 : vector<1x32xf32> to vector<8x32xf32>
    %55 = arith.addf %51, %54 : vector<8x32xf32>
    %cst_30 = arith.constant 0.707106769 : f32
    %56 = vector.broadcast %cst_30 : f32 to vector<8x32xf32>
    %57 = arith.mulf %55, %56 : vector<8x32xf32>
    %58 = math.absf %57 : vector<8x32xf32>
    %cst_31 = arith.constant 0.327591091 : f32
    %59 = vector.broadcast %cst_31 : f32 to vector<8x32xf32>
    %60 = arith.mulf %59, %58 : vector<8x32xf32>
    %cst_32 = arith.constant 1.000000e+00 : f32
    %61 = vector.broadcast %cst_32 : f32 to vector<8x32xf32>
    %62 = arith.addf %61, %60 : vector<8x32xf32>
    %cst_33 = arith.constant 1.000000e+00 : f32
    %63 = vector.broadcast %cst_33 : f32 to vector<8x32xf32>
    %64 = arith.divf %63, %62 : vector<8x32xf32>
    %cst_34 = arith.constant 1.06140542 : f32
    %65 = vector.broadcast %cst_34 : f32 to vector<8x32xf32>
    %66 = arith.mulf %64, %65 : vector<8x32xf32>
    %cst_35 = arith.constant -1.45315206 : f32
    %67 = vector.broadcast %cst_35 : f32 to vector<8x32xf32>
    %68 = arith.addf %67, %66 : vector<8x32xf32>
    %69 = arith.mulf %64, %68 : vector<8x32xf32>
    %cst_36 = arith.constant 1.42141378 : f32
    %70 = vector.broadcast %cst_36 : f32 to vector<8x32xf32>
    %71 = arith.addf %70, %69 : vector<8x32xf32>
    %72 = arith.mulf %64, %71 : vector<8x32xf32>
    %cst_37 = arith.constant -0.284496725 : f32
    %73 = vector.broadcast %cst_37 : f32 to vector<8x32xf32>
    %74 = arith.addf %73, %72 : vector<8x32xf32>
    %75 = arith.mulf %64, %74 : vector<8x32xf32>
    %cst_38 = arith.constant 0.254829586 : f32
    %76 = vector.broadcast %cst_38 : f32 to vector<8x32xf32>
    %77 = arith.addf %76, %75 : vector<8x32xf32>
    %78 = arith.mulf %64, %77 : vector<8x32xf32>
    %cst_39 = arith.constant 0.000000e+00 : f32
    %79 = vector.broadcast %cst_39 : f32 to vector<8x32xf32>
    %80 = arith.subf %79, %58 : vector<8x32xf32>
    %81 = arith.mulf %80, %58 : vector<8x32xf32>
    %82 = math.exp %81 : vector<8x32xf32>
    %83 = arith.mulf %78, %82 : vector<8x32xf32>
    %cst_40 = arith.constant 1.000000e+00 : f32
    %84 = vector.broadcast %cst_40 : f32 to vector<8x32xf32>
    %85 = arith.subf %84, %83 : vector<8x32xf32>
    %cst_41 = arith.constant 0.000000e+00 : f32
    %86 = vector.broadcast %cst_41 : f32 to vector<8x32xf32>
    %87 = arith.cmpf oge, %57, %86 : vector<8x32xf32>
    %cst_42 = arith.constant 0.000000e+00 : f32
    %88 = vector.broadcast %cst_42 : f32 to vector<8x32xf32>
    %89 = arith.subf %88, %85 : vector<8x32xf32>
    %90 = arith.select %87, %85, %89 : vector<8x32xi1>, vector<8x32xf32>
    %cst_43 = arith.constant 5.000000e-01 : f32
    %91 = vector.broadcast %cst_43 : f32 to vector<8x32xf32>
    %92 = arith.mulf %91, %55 : vector<8x32xf32>
    %cst_44 = arith.constant 1.000000e+00 : f32
    %93 = vector.broadcast %cst_44 : f32 to vector<8x32xf32>
    %94 = arith.addf %93, %90 : vector<8x32xf32>
    %95 = arith.mulf %92, %94 : vector<8x32xf32>
    %c0_45 = arith.constant 0 : index
    %c0_46 = arith.constant 0 : index
    %c0_47 = arith.constant 0 : index
    %96 = vector.load %arg13[%c0_45, %c0_46, %c0_47] : memref<3x8x8xf32, #tpu.memory_space<vmem>>, vector<1x8x8xf32>
    %97 = vector.shape_cast %96 : vector<1x8x8xf32> to vector<8x8xf32>
    %c1_48 = arith.constant 1 : index
    %c0_49 = arith.constant 0 : index
    %c0_50 = arith.constant 0 : index
    %98 = vector.load %arg13[%c1_48, %c0_49, %c0_50] : memref<3x8x8xf32, #tpu.memory_space<vmem>>, vector<1x8x8xf32>
    %99 = vector.shape_cast %98 : vector<1x8x8xf32> to vector<8x8xf32>
    %c2 = arith.constant 2 : index
    %c0_51 = arith.constant 0 : index
    %c0_52 = arith.constant 0 : index
    %100 = vector.load %arg13[%c2, %c0_51, %c0_52] : memref<3x8x8xf32, #tpu.memory_space<vmem>>, vector<1x8x8xf32>
    %101 = vector.shape_cast %100 : vector<1x8x8xf32> to vector<8x8xf32>
    %c0_53 = arith.constant 0 : index
    %c0_54 = arith.constant 0 : index
    %c0_55 = arith.constant 0 : index
    %102 = vector.load %arg4[%c0_53, %c0_54, %c0_55] : memref<4x32x32xf32, #tpu.memory_space<vmem>>, vector<1x32x32xf32>
    %103 = vector.shape_cast %102 : vector<1x32x32xf32> to vector<32x32xf32>
    %cst_56 = arith.constant dense<0.000000e+00> : vector<8x32xf32>
    %104 = tpu.matmul %47, %103, %cst_56 {dimension_numbers = #tpu.dot_dimension_numbers<[1], [0], [0], [1], [0, 0, 1, 1], [], []>} : vector<8x32xf32>, vector<32x32xf32>, vector<8x32xf32> -> vector<8x32xf32>
    %c0_57 = arith.constant 0 : index
    %c0_58 = arith.constant 0 : index
    %c0_59 = arith.constant 0 : index
    %105 = vector.load %arg5[%c0_57, %c0_58, %c0_59] : memref<4x1x32xf32, #tpu.memory_space<vmem>>, vector<1x1x32xf32>
    %106 = vector.shape_cast %105 : vector<1x1x32xf32> to vector<1x32xf32>
    %107 = vector.broadcast %106 : vector<1x32xf32> to vector<8x32xf32>
    %108 = arith.addf %104, %107 : vector<8x32xf32>
    %c1_60 = arith.constant 1 : index
    %c0_61 = arith.constant 0 : index
    %c0_62 = arith.constant 0 : index
    %109 = vector.load %arg4[%c1_60, %c0_61, %c0_62] : memref<4x32x32xf32, #tpu.memory_space<vmem>>, vector<1x32x32xf32>
    %110 = vector.shape_cast %109 : vector<1x32x32xf32> to vector<32x32xf32>
    %cst_63 = arith.constant dense<0.000000e+00> : vector<8x32xf32>
    %111 = tpu.matmul %95, %110, %cst_63 {dimension_numbers = #tpu.dot_dimension_numbers<[1], [0], [0], [1], [0, 0, 1, 1], [], []>} : vector<8x32xf32>, vector<32x32xf32>, vector<8x32xf32> -> vector<8x32xf32>
    %c1_64 = arith.constant 1 : index
    %c0_65 = arith.constant 0 : index
    %c0_66 = arith.constant 0 : index
    %112 = vector.load %arg5[%c1_64, %c0_65, %c0_66] : memref<4x1x32xf32, #tpu.memory_space<vmem>>, vector<1x1x32xf32>
    %113 = vector.shape_cast %112 : vector<1x1x32xf32> to vector<1x32xf32>
    %114 = vector.broadcast %113 : vector<1x32xf32> to vector<8x32xf32>
    %115 = arith.addf %111, %114 : vector<8x32xf32>
    %c0_67 = arith.constant 0 : index
    %c0_68 = arith.constant 0 : index
    %c0_69 = arith.constant 0 : index
    %116 = vector.load %arg6[%c0_67, %c0_68, %c0_69] : memref<6x32x128xf32, #tpu.memory_space<vmem>>, vector<1x32x128xf32>
    %117 = vector.shape_cast %116 : vector<1x32x128xf32> to vector<32x128xf32>
    %cst_70 = arith.constant dense<0.000000e+00> : vector<8x128xf32>
    %118 = tpu.matmul %47, %117, %cst_70 {dimension_numbers = #tpu.dot_dimension_numbers<[1], [0], [0], [1], [0, 0, 1, 1], [], []>} : vector<8x32xf32>, vector<32x128xf32>, vector<8x128xf32> -> vector<8x128xf32>
    %c0_71 = arith.constant 0 : index
    %c0_72 = arith.constant 0 : index
    %c0_73 = arith.constant 0 : index
    %119 = vector.load %arg7[%c0_71, %c0_72, %c0_73] : memref<6x1x128xf32, #tpu.memory_space<vmem>>, vector<1x1x128xf32>
    %120 = vector.shape_cast %119 : vector<1x1x128xf32> to vector<1x128xf32>
    %121 = vector.broadcast %120 : vector<1x128xf32> to vector<8x128xf32>
    %122 = arith.addf %118, %121 : vector<8x128xf32>
    %123 = vector.extract_strided_slice %122 {offsets = [0, 0], sizes = [8, 32], strides = [1, 1]} : vector<8x128xf32> to vector<8x32xf32>
    %124 = vector.extract_strided_slice %122 {offsets = [0, 64], sizes = [8, 32], strides = [1, 1]} : vector<8x128xf32> to vector<8x32xf32>
    %cst_74 = arith.constant dense<0.000000e+00> : vector<8x8xf32>
    %125 = tpu.matmul %115, %123, %cst_74 {dimension_numbers = #tpu.dot_dimension_numbers<[1], [1], [0], [0], [0, 0, 1, 0], [], []>} : vector<8x32xf32>, vector<8x32xf32>, vector<8x8xf32> -> vector<8x8xf32>
    %cst_75 = arith.constant dense<0xFF800000> : vector<8xf32>
    %126 = vector.multi_reduction <maximumf>, %125, %cst_75 [1] : vector<8x8xf32> to vector<8xf32>
    %127 = vector.shape_cast %126 : vector<8xf32> to vector<8x1xf32>
    %128 = vector.broadcast %127 : vector<8x1xf32> to vector<8x8xf32>
    %129 = arith.subf %125, %128 : vector<8x8xf32>
    %130 = math.exp %129 : vector<8x8xf32>
    %131 = arith.mulf %130, %97 : vector<8x8xf32>
    %cst_76 = arith.constant dense<0.000000e+00> : vector<8xf32>
    %132 = vector.multi_reduction <add>, %131, %cst_76 [1] : vector<8x8xf32> to vector<8xf32>
    %133 = vector.shape_cast %132 : vector<8xf32> to vector<8x1xf32>
    %cst_77 = arith.constant 1.000000e-30 : f32
    %134 = vector.broadcast %cst_77 : f32 to vector<8x1xf32>
    %135 = arith.maximumf %133, %134 : vector<8x1xf32>
    %136 = tpu.reciprocal %135 : vector<8x1xf32> -> vector<8x1xf32>
    %137 = vector.broadcast %136 : vector<8x1xf32> to vector<8x8xf32>
    %138 = arith.mulf %131, %137 : vector<8x8xf32>
    %cst_78 = arith.constant dense<0.000000e+00> : vector<8x32xf32>
    %139 = tpu.matmul %138, %124, %cst_78 {dimension_numbers = #tpu.dot_dimension_numbers<[1], [0], [0], [1], [0, 0, 1, 1], [], []>} : vector<8x8xf32>, vector<8x32xf32>, vector<8x32xf32> -> vector<8x32xf32>
    %140 = vector.extract_strided_slice %122 {offsets = [0, 32], sizes = [8, 32], strides = [1, 1]} : vector<8x128xf32> to vector<8x32xf32>
    %141 = vector.extract_strided_slice %122 {offsets = [0, 96], sizes = [8, 32], strides = [1, 1]} : vector<8x128xf32> to vector<8x32xf32>
    %cst_79 = arith.constant dense<0.000000e+00> : vector<8x8xf32>
    %142 = tpu.matmul %115, %140, %cst_79 {dimension_numbers = #tpu.dot_dimension_numbers<[1], [1], [0], [0], [0, 0, 1, 0], [], []>} : vector<8x32xf32>, vector<8x32xf32>, vector<8x8xf32> -> vector<8x8xf32>
    %cst_80 = arith.constant dense<0xFF800000> : vector<8xf32>
    %143 = vector.multi_reduction <maximumf>, %142, %cst_80 [1] : vector<8x8xf32> to vector<8xf32>
    %144 = vector.shape_cast %143 : vector<8xf32> to vector<8x1xf32>
    %145 = vector.broadcast %144 : vector<8x1xf32> to vector<8x8xf32>
    %146 = arith.subf %142, %145 : vector<8x8xf32>
    %147 = math.exp %146 : vector<8x8xf32>
    %148 = arith.mulf %147, %97 : vector<8x8xf32>
    %cst_81 = arith.constant dense<0.000000e+00> : vector<8xf32>
    %149 = vector.multi_reduction <add>, %148, %cst_81 [1] : vector<8x8xf32> to vector<8xf32>
    %150 = vector.shape_cast %149 : vector<8xf32> to vector<8x1xf32>
    %cst_82 = arith.constant 1.000000e-30 : f32
    %151 = vector.broadcast %cst_82 : f32 to vector<8x1xf32>
    %152 = arith.maximumf %150, %151 : vector<8x1xf32>
    %153 = tpu.reciprocal %152 : vector<8x1xf32> -> vector<8x1xf32>
    %154 = vector.broadcast %153 : vector<8x1xf32> to vector<8x8xf32>
    %155 = arith.mulf %148, %154 : vector<8x8xf32>
    %cst_83 = arith.constant dense<0.000000e+00> : vector<8x32xf32>
    %156 = tpu.matmul %155, %141, %cst_83 {dimension_numbers = #tpu.dot_dimension_numbers<[1], [0], [0], [1], [0, 0, 1, 1], [], []>} : vector<8x8xf32>, vector<8x32xf32>, vector<8x32xf32> -> vector<8x32xf32>
    %157 = arith.addf %139, %156 : vector<8x32xf32>
    %c1_84 = arith.constant 1 : index
    %c0_85 = arith.constant 0 : index
    %c0_86 = arith.constant 0 : index
    %158 = vector.load %arg6[%c1_84, %c0_85, %c0_86] : memref<6x32x128xf32, #tpu.memory_space<vmem>>, vector<1x32x128xf32>
    %159 = vector.shape_cast %158 : vector<1x32x128xf32> to vector<32x128xf32>
    %cst_87 = arith.constant dense<0.000000e+00> : vector<8x128xf32>
    %160 = tpu.matmul %95, %159, %cst_87 {dimension_numbers = #tpu.dot_dimension_numbers<[1], [0], [0], [1], [0, 0, 1, 1], [], []>} : vector<8x32xf32>, vector<32x128xf32>, vector<8x128xf32> -> vector<8x128xf32>
    %c1_88 = arith.constant 1 : index
    %c0_89 = arith.constant 0 : index
    %c0_90 = arith.constant 0 : index
    %161 = vector.load %arg7[%c1_88, %c0_89, %c0_90] : memref<6x1x128xf32, #tpu.memory_space<vmem>>, vector<1x1x128xf32>
    %162 = vector.shape_cast %161 : vector<1x1x128xf32> to vector<1x128xf32>
    %163 = vector.broadcast %162 : vector<1x128xf32> to vector<8x128xf32>
    %164 = arith.addf %160, %163 : vector<8x128xf32>
    %165 = vector.extract_strided_slice %164 {offsets = [0, 0], sizes = [8, 32], strides = [1, 1]} : vector<8x128xf32> to vector<8x32xf32>
    %166 = vector.extract_strided_slice %164 {offsets = [0, 64], sizes = [8, 32], strides = [1, 1]} : vector<8x128xf32> to vector<8x32xf32>
    %cst_91 = arith.constant dense<0.000000e+00> : vector<8x8xf32>
    %167 = tpu.matmul %108, %165, %cst_91 {dimension_numbers = #tpu.dot_dimension_numbers<[1], [1], [0], [0], [0, 0, 1, 0], [], []>} : vector<8x32xf32>, vector<8x32xf32>, vector<8x8xf32> -> vector<8x8xf32>
    %cst_92 = arith.constant dense<0xFF800000> : vector<8xf32>
    %168 = vector.multi_reduction <maximumf>, %167, %cst_92 [1] : vector<8x8xf32> to vector<8xf32>
    %169 = vector.shape_cast %168 : vector<8xf32> to vector<8x1xf32>
    %170 = vector.broadcast %169 : vector<8x1xf32> to vector<8x8xf32>
    %171 = arith.subf %167, %170 : vector<8x8xf32>
    %172 = math.exp %171 : vector<8x8xf32>
    %173 = arith.mulf %172, %99 : vector<8x8xf32>
    %cst_93 = arith.constant dense<0.000000e+00> : vector<8xf32>
    %174 = vector.multi_reduction <add>, %173, %cst_93 [1] : vector<8x8xf32> to vector<8xf32>
    %175 = vector.shape_cast %174 : vector<8xf32> to vector<8x1xf32>
    %cst_94 = arith.constant 1.000000e-30 : f32
    %176 = vector.broadcast %cst_94 : f32 to vector<8x1xf32>
    %177 = arith.maximumf %175, %176 : vector<8x1xf32>
    %178 = tpu.reciprocal %177 : vector<8x1xf32> -> vector<8x1xf32>
    %179 = vector.broadcast %178 : vector<8x1xf32> to vector<8x8xf32>
    %180 = arith.mulf %173, %179 : vector<8x8xf32>
    %cst_95 = arith.constant dense<0.000000e+00> : vector<8x32xf32>
    %181 = tpu.matmul %180, %166, %cst_95 {dimension_numbers = #tpu.dot_dimension_numbers<[1], [0], [0], [1], [0, 0, 1, 1], [], []>} : vector<8x8xf32>, vector<8x32xf32>, vector<8x32xf32> -> vector<8x32xf32>
    %182 = vector.extract_strided_slice %164 {offsets = [0, 32], sizes = [8, 32], strides = [1, 1]} : vector<8x128xf32> to vector<8x32xf32>
    %183 = vector.extract_strided_slice %164 {offsets = [0, 96], sizes = [8, 32], strides = [1, 1]} : vector<8x128xf32> to vector<8x32xf32>
    %cst_96 = arith.constant dense<0.000000e+00> : vector<8x8xf32>
    %184 = tpu.matmul %108, %182, %cst_96 {dimension_numbers = #tpu.dot_dimension_numbers<[1], [1], [0], [0], [0, 0, 1, 0], [], []>} : vector<8x32xf32>, vector<8x32xf32>, vector<8x8xf32> -> vector<8x8xf32>
    %cst_97 = arith.constant dense<0xFF800000> : vector<8xf32>
    %185 = vector.multi_reduction <maximumf>, %184, %cst_97 [1] : vector<8x8xf32> to vector<8xf32>
    %186 = vector.shape_cast %185 : vector<8xf32> to vector<8x1xf32>
    %187 = vector.broadcast %186 : vector<8x1xf32> to vector<8x8xf32>
    %188 = arith.subf %184, %187 : vector<8x8xf32>
    %189 = math.exp %188 : vector<8x8xf32>
    %190 = arith.mulf %189, %99 : vector<8x8xf32>
    %cst_98 = arith.constant dense<0.000000e+00> : vector<8xf32>
    %191 = vector.multi_reduction <add>, %190, %cst_98 [1] : vector<8x8xf32> to vector<8xf32>
    %192 = vector.shape_cast %191 : vector<8xf32> to vector<8x1xf32>
    %cst_99 = arith.constant 1.000000e-30 : f32
    %193 = vector.broadcast %cst_99 : f32 to vector<8x1xf32>
    %194 = arith.maximumf %192, %193 : vector<8x1xf32>
    %195 = tpu.reciprocal %194 : vector<8x1xf32> -> vector<8x1xf32>
    %196 = vector.broadcast %195 : vector<8x1xf32> to vector<8x8xf32>
    %197 = arith.mulf %190, %196 : vector<8x8xf32>
    %cst_100 = arith.constant dense<0.000000e+00> : vector<8x32xf32>
    %198 = tpu.matmul %197, %183, %cst_100 {dimension_numbers = #tpu.dot_dimension_numbers<[1], [0], [0], [1], [0, 0, 1, 1], [], []>} : vector<8x8xf32>, vector<8x32xf32>, vector<8x32xf32> -> vector<8x32xf32>
    %199 = arith.addf %181, %198 : vector<8x32xf32>
    %c2_101 = arith.constant 2 : index
    %c0_102 = arith.constant 0 : index
    %c0_103 = arith.constant 0 : index
    %200 = vector.load %arg6[%c2_101, %c0_102, %c0_103] : memref<6x32x128xf32, #tpu.memory_space<vmem>>, vector<1x32x128xf32>
    %201 = vector.shape_cast %200 : vector<1x32x128xf32> to vector<32x128xf32>
    %cst_104 = arith.constant dense<0.000000e+00> : vector<8x128xf32>
    %202 = tpu.matmul %47, %201, %cst_104 {dimension_numbers = #tpu.dot_dimension_numbers<[1], [0], [0], [1], [0, 0, 1, 1], [], []>} : vector<8x32xf32>, vector<32x128xf32>, vector<8x128xf32> -> vector<8x128xf32>
    %c2_105 = arith.constant 2 : index
    %c0_106 = arith.constant 0 : index
    %c0_107 = arith.constant 0 : index
    %203 = vector.load %arg7[%c2_105, %c0_106, %c0_107] : memref<6x1x128xf32, #tpu.memory_space<vmem>>, vector<1x1x128xf32>
    %204 = vector.shape_cast %203 : vector<1x1x128xf32> to vector<1x128xf32>
    %205 = vector.broadcast %204 : vector<1x128xf32> to vector<8x128xf32>
    %206 = arith.addf %202, %205 : vector<8x128xf32>
    %207 = vector.extract_strided_slice %206 {offsets = [0, 0], sizes = [8, 32], strides = [1, 1]} : vector<8x128xf32> to vector<8x32xf32>
    %208 = vector.extract_strided_slice %206 {offsets = [0, 64], sizes = [8, 32], strides = [1, 1]} : vector<8x128xf32> to vector<8x32xf32>
    %cst_108 = arith.constant dense<0.000000e+00> : vector<8x8xf32>
    %209 = tpu.matmul %108, %207, %cst_108 {dimension_numbers = #tpu.dot_dimension_numbers<[1], [1], [0], [0], [0, 0, 1, 0], [], []>} : vector<8x32xf32>, vector<8x32xf32>, vector<8x8xf32> -> vector<8x8xf32>
    %cst_109 = arith.constant dense<0xFF800000> : vector<8xf32>
    %210 = vector.multi_reduction <maximumf>, %209, %cst_109 [1] : vector<8x8xf32> to vector<8xf32>
    %211 = vector.shape_cast %210 : vector<8xf32> to vector<8x1xf32>
    %212 = vector.broadcast %211 : vector<8x1xf32> to vector<8x8xf32>
    %213 = arith.subf %209, %212 : vector<8x8xf32>
    %214 = math.exp %213 : vector<8x8xf32>
    %215 = arith.mulf %214, %101 : vector<8x8xf32>
    %cst_110 = arith.constant dense<0.000000e+00> : vector<8xf32>
    %216 = vector.multi_reduction <add>, %215, %cst_110 [1] : vector<8x8xf32> to vector<8xf32>
    %217 = vector.shape_cast %216 : vector<8xf32> to vector<8x1xf32>
    %cst_111 = arith.constant 1.000000e-30 : f32
    %218 = vector.broadcast %cst_111 : f32 to vector<8x1xf32>
    %219 = arith.maximumf %217, %218 : vector<8x1xf32>
    %220 = tpu.reciprocal %219 : vector<8x1xf32> -> vector<8x1xf32>
    %221 = vector.broadcast %220 : vector<8x1xf32> to vector<8x8xf32>
    %222 = arith.mulf %215, %221 : vector<8x8xf32>
    %cst_112 = arith.constant dense<0.000000e+00> : vector<8x32xf32>
    %223 = tpu.matmul %222, %208, %cst_112 {dimension_numbers = #tpu.dot_dimension_numbers<[1], [0], [0], [1], [0, 0, 1, 1], [], []>} : vector<8x8xf32>, vector<8x32xf32>, vector<8x32xf32> -> vector<8x32xf32>
    %224 = vector.extract_strided_slice %206 {offsets = [0, 32], sizes = [8, 32], strides = [1, 1]} : vector<8x128xf32> to vector<8x32xf32>
    %225 = vector.extract_strided_slice %206 {offsets = [0, 96], sizes = [8, 32], strides = [1, 1]} : vector<8x128xf32> to vector<8x32xf32>
    %cst_113 = arith.constant dense<0.000000e+00> : vector<8x8xf32>
    %226 = tpu.matmul %108, %224, %cst_113 {dimension_numbers = #tpu.dot_dimension_numbers<[1], [1], [0], [0], [0, 0, 1, 0], [], []>} : vector<8x32xf32>, vector<8x32xf32>, vector<8x8xf32> -> vector<8x8xf32>
    %cst_114 = arith.constant dense<0xFF800000> : vector<8xf32>
    %227 = vector.multi_reduction <maximumf>, %226, %cst_114 [1] : vector<8x8xf32> to vector<8xf32>
    %228 = vector.shape_cast %227 : vector<8xf32> to vector<8x1xf32>
    %229 = vector.broadcast %228 : vector<8x1xf32> to vector<8x8xf32>
    %230 = arith.subf %226, %229 : vector<8x8xf32>
    %231 = math.exp %230 : vector<8x8xf32>
    %232 = arith.mulf %231, %101 : vector<8x8xf32>
    %cst_115 = arith.constant dense<0.000000e+00> : vector<8xf32>
    %233 = vector.multi_reduction <add>, %232, %cst_115 [1] : vector<8x8xf32> to vector<8xf32>
    %234 = vector.shape_cast %233 : vector<8xf32> to vector<8x1xf32>
    %cst_116 = arith.constant 1.000000e-30 : f32
    %235 = vector.broadcast %cst_116 : f32 to vector<8x1xf32>
    %236 = arith.maximumf %234, %235 : vector<8x1xf32>
    %237 = tpu.reciprocal %236 : vector<8x1xf32> -> vector<8x1xf32>
    %238 = vector.broadcast %237 : vector<8x1xf32> to vector<8x8xf32>
    %239 = arith.mulf %232, %238 : vector<8x8xf32>
    %cst_117 = arith.constant dense<0.000000e+00> : vector<8x32xf32>
    %240 = tpu.matmul %239, %225, %cst_117 {dimension_numbers = #tpu.dot_dimension_numbers<[1], [0], [0], [1], [0, 0, 1, 1], [], []>} : vector<8x8xf32>, vector<8x32xf32>, vector<8x32xf32> -> vector<8x32xf32>
    %241 = arith.addf %223, %240 : vector<8x32xf32>
    %242 = arith.addf %199, %241 : vector<8x32xf32>
    %c0_118 = arith.constant 0 : index
    %c0_119 = arith.constant 0 : index
    %c0_120 = arith.constant 0 : index
    %243 = vector.load %arg8[%c0_118, %c0_119, %c0_120] : memref<4x32x32xf32, #tpu.memory_space<vmem>>, vector<1x32x32xf32>
    %244 = vector.shape_cast %243 : vector<1x32x32xf32> to vector<32x32xf32>
    %cst_121 = arith.constant dense<0.000000e+00> : vector<8x32xf32>
    %245 = tpu.matmul %242, %244, %cst_121 {dimension_numbers = #tpu.dot_dimension_numbers<[1], [0], [0], [1], [0, 0, 1, 1], [], []>} : vector<8x32xf32>, vector<32x32xf32>, vector<8x32xf32> -> vector<8x32xf32>
    %c0_122 = arith.constant 0 : index
    %c0_123 = arith.constant 0 : index
    %c0_124 = arith.constant 0 : index
    %246 = vector.load %arg9[%c0_122, %c0_123, %c0_124] : memref<4x1x32xf32, #tpu.memory_space<vmem>>, vector<1x1x32xf32>
    %247 = vector.shape_cast %246 : vector<1x1x32xf32> to vector<1x32xf32>
    %248 = vector.broadcast %247 : vector<1x32xf32> to vector<8x32xf32>
    %249 = arith.addf %245, %248 : vector<8x32xf32>
    %c0_125 = arith.constant 0 : index
    %c0_126 = arith.constant 0 : index
    %c0_127 = arith.constant 0 : index
    %250 = vector.load %arg10[%c0_125, %c0_126, %c0_127] : memref<4x1x32xf32, #tpu.memory_space<vmem>>, vector<1x1x32xf32>
    %251 = vector.shape_cast %250 : vector<1x1x32xf32> to vector<1x32xf32>
    %252 = vector.broadcast %251 : vector<1x32xf32> to vector<8x32xf32>
    %253 = arith.mulf %47, %252 : vector<8x32xf32>
    %254 = arith.addf %249, %253 : vector<8x32xf32>
    %cst_128 = arith.constant dense<0.000000e+00> : vector<8xf32>
    %255 = vector.multi_reduction <add>, %254, %cst_128 [1] : vector<8x32xf32> to vector<8xf32>
    %256 = vector.shape_cast %255 : vector<8xf32> to vector<8x1xf32>
    %cst_129 = arith.constant 3.200000e+01 : f32
    %257 = vector.broadcast %cst_129 : f32 to vector<8x1xf32>
    %258 = arith.divf %256, %257 : vector<8x1xf32>
    %259 = vector.broadcast %258 : vector<8x1xf32> to vector<8x32xf32>
    %260 = arith.subf %254, %259 : vector<8x32xf32>
    %261 = arith.mulf %260, %260 : vector<8x32xf32>
    %cst_130 = arith.constant dense<0.000000e+00> : vector<8xf32>
    %262 = vector.multi_reduction <add>, %261, %cst_130 [1] : vector<8x32xf32> to vector<8xf32>
    %263 = vector.shape_cast %262 : vector<8xf32> to vector<8x1xf32>
    %cst_131 = arith.constant 3.200000e+01 : f32
    %264 = vector.broadcast %cst_131 : f32 to vector<8x1xf32>
    %265 = arith.divf %263, %264 : vector<8x1xf32>
    %266 = vector.broadcast %258 : vector<8x1xf32> to vector<8x32xf32>
    %267 = arith.subf %254, %266 : vector<8x32xf32>
    %cst_132 = arith.constant 9.99999974E-6 : f32
    %268 = vector.broadcast %cst_132 : f32 to vector<8x1xf32>
    %269 = arith.addf %265, %268 : vector<8x1xf32>
    %270 = math.rsqrt %269 : vector<8x1xf32>
    %271 = vector.broadcast %270 : vector<8x1xf32> to vector<8x32xf32>
    %272 = arith.mulf %267, %271 : vector<8x32xf32>
    %c0_133 = arith.constant 0 : index
    %c0_134 = arith.constant 0 : index
    %c0_135 = arith.constant 0 : index
    %273 = vector.load %arg11[%c0_133, %c0_134, %c0_135] : memref<4x1x32xf32, #tpu.memory_space<vmem>>, vector<1x1x32xf32>
    %274 = vector.shape_cast %273 : vector<1x1x32xf32> to vector<1x32xf32>
    %275 = vector.broadcast %274 : vector<1x32xf32> to vector<8x32xf32>
    %276 = arith.mulf %272, %275 : vector<8x32xf32>
    %c0_136 = arith.constant 0 : index
    %c0_137 = arith.constant 0 : index
    %c0_138 = arith.constant 0 : index
    %277 = vector.load %arg12[%c0_136, %c0_137, %c0_138] : memref<4x1x32xf32, #tpu.memory_space<vmem>>, vector<1x1x32xf32>
    %278 = vector.shape_cast %277 : vector<1x1x32xf32> to vector<1x32xf32>
    %279 = vector.broadcast %278 : vector<1x32xf32> to vector<8x32xf32>
    %280 = arith.addf %276, %279 : vector<8x32xf32>
    %c1_139 = arith.constant 1 : index
    %c0_140 = arith.constant 0 : index
    %c0_141 = arith.constant 0 : index
    %281 = vector.load %arg8[%c1_139, %c0_140, %c0_141] : memref<4x32x32xf32, #tpu.memory_space<vmem>>, vector<1x32x32xf32>
    %282 = vector.shape_cast %281 : vector<1x32x32xf32> to vector<32x32xf32>
    %cst_142 = arith.constant dense<0.000000e+00> : vector<8x32xf32>
    %283 = tpu.matmul %157, %282, %cst_142 {dimension_numbers = #tpu.dot_dimension_numbers<[1], [0], [0], [1], [0, 0, 1, 1], [], []>} : vector<8x32xf32>, vector<32x32xf32>, vector<8x32xf32> -> vector<8x32xf32>
    %c1_143 = arith.constant 1 : index
    %c0_144 = arith.constant 0 : index
    %c0_145 = arith.constant 0 : index
    %284 = vector.load %arg9[%c1_143, %c0_144, %c0_145] : memref<4x1x32xf32, #tpu.memory_space<vmem>>, vector<1x1x32xf32>
    %285 = vector.shape_cast %284 : vector<1x1x32xf32> to vector<1x32xf32>
    %286 = vector.broadcast %285 : vector<1x32xf32> to vector<8x32xf32>
    %287 = arith.addf %283, %286 : vector<8x32xf32>
    %c1_146 = arith.constant 1 : index
    %c0_147 = arith.constant 0 : index
    %c0_148 = arith.constant 0 : index
    %288 = vector.load %arg10[%c1_146, %c0_147, %c0_148] : memref<4x1x32xf32, #tpu.memory_space<vmem>>, vector<1x1x32xf32>
    %289 = vector.shape_cast %288 : vector<1x1x32xf32> to vector<1x32xf32>
    %290 = vector.broadcast %289 : vector<1x32xf32> to vector<8x32xf32>
    %291 = arith.mulf %95, %290 : vector<8x32xf32>
    %292 = arith.addf %287, %291 : vector<8x32xf32>
    %cst_149 = arith.constant dense<0.000000e+00> : vector<8xf32>
    %293 = vector.multi_reduction <add>, %292, %cst_149 [1] : vector<8x32xf32> to vector<8xf32>
    %294 = vector.shape_cast %293 : vector<8xf32> to vector<8x1xf32>
    %cst_150 = arith.constant 3.200000e+01 : f32
    %295 = vector.broadcast %cst_150 : f32 to vector<8x1xf32>
    %296 = arith.divf %294, %295 : vector<8x1xf32>
    %297 = vector.broadcast %296 : vector<8x1xf32> to vector<8x32xf32>
    %298 = arith.subf %292, %297 : vector<8x32xf32>
    %299 = arith.mulf %298, %298 : vector<8x32xf32>
    %cst_151 = arith.constant dense<0.000000e+00> : vector<8xf32>
    %300 = vector.multi_reduction <add>, %299, %cst_151 [1] : vector<8x32xf32> to vector<8xf32>
    %301 = vector.shape_cast %300 : vector<8xf32> to vector<8x1xf32>
    %cst_152 = arith.constant 3.200000e+01 : f32
    %302 = vector.broadcast %cst_152 : f32 to vector<8x1xf32>
    %303 = arith.divf %301, %302 : vector<8x1xf32>
    %304 = vector.broadcast %296 : vector<8x1xf32> to vector<8x32xf32>
    %305 = arith.subf %292, %304 : vector<8x32xf32>
    %cst_153 = arith.constant 9.99999974E-6 : f32
    %306 = vector.broadcast %cst_153 : f32 to vector<8x1xf32>
    %307 = arith.addf %303, %306 : vector<8x1xf32>
    %308 = math.rsqrt %307 : vector<8x1xf32>
    %309 = vector.broadcast %308 : vector<8x1xf32> to vector<8x32xf32>
    %310 = arith.mulf %305, %309 : vector<8x32xf32>
    %c1_154 = arith.constant 1 : index
    %c0_155 = arith.constant 0 : index
    %c0_156 = arith.constant 0 : index
    %311 = vector.load %arg11[%c1_154, %c0_155, %c0_156] : memref<4x1x32xf32, #tpu.memory_space<vmem>>, vector<1x1x32xf32>
    %312 = vector.shape_cast %311 : vector<1x1x32xf32> to vector<1x32xf32>
    %313 = vector.broadcast %312 : vector<1x32xf32> to vector<8x32xf32>
    %314 = arith.mulf %310, %313 : vector<8x32xf32>
    %c1_157 = arith.constant 1 : index
    %c0_158 = arith.constant 0 : index
    %c0_159 = arith.constant 0 : index
    %315 = vector.load %arg12[%c1_157, %c0_158, %c0_159] : memref<4x1x32xf32, #tpu.memory_space<vmem>>, vector<1x1x32xf32>
    %316 = vector.shape_cast %315 : vector<1x1x32xf32> to vector<1x32xf32>
    %317 = vector.broadcast %316 : vector<1x32xf32> to vector<8x32xf32>
    %318 = arith.addf %314, %317 : vector<8x32xf32>
    %c2_160 = arith.constant 2 : index
    %c0_161 = arith.constant 0 : index
    %c0_162 = arith.constant 0 : index
    %319 = vector.load %arg4[%c2_160, %c0_161, %c0_162] : memref<4x32x32xf32, #tpu.memory_space<vmem>>, vector<1x32x32xf32>
    %320 = vector.shape_cast %319 : vector<1x32x32xf32> to vector<32x32xf32>
    %cst_163 = arith.constant dense<0.000000e+00> : vector<8x32xf32>
    %321 = tpu.matmul %280, %320, %cst_163 {dimension_numbers = #tpu.dot_dimension_numbers<[1], [0], [0], [1], [0, 0, 1, 1], [], []>} : vector<8x32xf32>, vector<32x32xf32>, vector<8x32xf32> -> vector<8x32xf32>
    %c2_164 = arith.constant 2 : index
    %c0_165 = arith.constant 0 : index
    %c0_166 = arith.constant 0 : index
    %322 = vector.load %arg5[%c2_164, %c0_165, %c0_166] : memref<4x1x32xf32, #tpu.memory_space<vmem>>, vector<1x1x32xf32>
    %323 = vector.shape_cast %322 : vector<1x1x32xf32> to vector<1x32xf32>
    %324 = vector.broadcast %323 : vector<1x32xf32> to vector<8x32xf32>
    %325 = arith.addf %321, %324 : vector<8x32xf32>
    %c3 = arith.constant 3 : index
    %c0_167 = arith.constant 0 : index
    %c0_168 = arith.constant 0 : index
    %326 = vector.load %arg4[%c3, %c0_167, %c0_168] : memref<4x32x32xf32, #tpu.memory_space<vmem>>, vector<1x32x32xf32>
    %327 = vector.shape_cast %326 : vector<1x32x32xf32> to vector<32x32xf32>
    %cst_169 = arith.constant dense<0.000000e+00> : vector<8x32xf32>
    %328 = tpu.matmul %318, %327, %cst_169 {dimension_numbers = #tpu.dot_dimension_numbers<[1], [0], [0], [1], [0, 0, 1, 1], [], []>} : vector<8x32xf32>, vector<32x32xf32>, vector<8x32xf32> -> vector<8x32xf32>
    %c3_170 = arith.constant 3 : index
    %c0_171 = arith.constant 0 : index
    %c0_172 = arith.constant 0 : index
    %329 = vector.load %arg5[%c3_170, %c0_171, %c0_172] : memref<4x1x32xf32, #tpu.memory_space<vmem>>, vector<1x1x32xf32>
    %330 = vector.shape_cast %329 : vector<1x1x32xf32> to vector<1x32xf32>
    %331 = vector.broadcast %330 : vector<1x32xf32> to vector<8x32xf32>
    %332 = arith.addf %328, %331 : vector<8x32xf32>
    %c3_173 = arith.constant 3 : index
    %c0_174 = arith.constant 0 : index
    %c0_175 = arith.constant 0 : index
    %333 = vector.load %arg6[%c3_173, %c0_174, %c0_175] : memref<6x32x128xf32, #tpu.memory_space<vmem>>, vector<1x32x128xf32>
    %334 = vector.shape_cast %333 : vector<1x32x128xf32> to vector<32x128xf32>
    %cst_176 = arith.constant dense<0.000000e+00> : vector<8x128xf32>
    %335 = tpu.matmul %280, %334, %cst_176 {dimension_numbers = #tpu.dot_dimension_numbers<[1], [0], [0], [1], [0, 0, 1, 1], [], []>} : vector<8x32xf32>, vector<32x128xf32>, vector<8x128xf32> -> vector<8x128xf32>
    %c3_177 = arith.constant 3 : index
    %c0_178 = arith.constant 0 : index
    %c0_179 = arith.constant 0 : index
    %336 = vector.load %arg7[%c3_177, %c0_178, %c0_179] : memref<6x1x128xf32, #tpu.memory_space<vmem>>, vector<1x1x128xf32>
    %337 = vector.shape_cast %336 : vector<1x1x128xf32> to vector<1x128xf32>
    %338 = vector.broadcast %337 : vector<1x128xf32> to vector<8x128xf32>
    %339 = arith.addf %335, %338 : vector<8x128xf32>
    %340 = vector.extract_strided_slice %339 {offsets = [0, 0], sizes = [8, 32], strides = [1, 1]} : vector<8x128xf32> to vector<8x32xf32>
    %341 = vector.extract_strided_slice %339 {offsets = [0, 64], sizes = [8, 32], strides = [1, 1]} : vector<8x128xf32> to vector<8x32xf32>
    %cst_180 = arith.constant dense<0.000000e+00> : vector<8x8xf32>
    %342 = tpu.matmul %332, %340, %cst_180 {dimension_numbers = #tpu.dot_dimension_numbers<[1], [1], [0], [0], [0, 0, 1, 0], [], []>} : vector<8x32xf32>, vector<8x32xf32>, vector<8x8xf32> -> vector<8x8xf32>
    %cst_181 = arith.constant dense<0xFF800000> : vector<8xf32>
    %343 = vector.multi_reduction <maximumf>, %342, %cst_181 [1] : vector<8x8xf32> to vector<8xf32>
    %344 = vector.shape_cast %343 : vector<8xf32> to vector<8x1xf32>
    %345 = vector.broadcast %344 : vector<8x1xf32> to vector<8x8xf32>
    %346 = arith.subf %342, %345 : vector<8x8xf32>
    %347 = math.exp %346 : vector<8x8xf32>
    %348 = arith.mulf %347, %97 : vector<8x8xf32>
    %cst_182 = arith.constant dense<0.000000e+00> : vector<8xf32>
    %349 = vector.multi_reduction <add>, %348, %cst_182 [1] : vector<8x8xf32> to vector<8xf32>
    %350 = vector.shape_cast %349 : vector<8xf32> to vector<8x1xf32>
    %cst_183 = arith.constant 1.000000e-30 : f32
    %351 = vector.broadcast %cst_183 : f32 to vector<8x1xf32>
    %352 = arith.maximumf %350, %351 : vector<8x1xf32>
    %353 = tpu.reciprocal %352 : vector<8x1xf32> -> vector<8x1xf32>
    %354 = vector.broadcast %353 : vector<8x1xf32> to vector<8x8xf32>
    %355 = arith.mulf %348, %354 : vector<8x8xf32>
    %cst_184 = arith.constant dense<0.000000e+00> : vector<8x32xf32>
    %356 = tpu.matmul %355, %341, %cst_184 {dimension_numbers = #tpu.dot_dimension_numbers<[1], [0], [0], [1], [0, 0, 1, 1], [], []>} : vector<8x8xf32>, vector<8x32xf32>, vector<8x32xf32> -> vector<8x32xf32>
    %357 = vector.extract_strided_slice %339 {offsets = [0, 32], sizes = [8, 32], strides = [1, 1]} : vector<8x128xf32> to vector<8x32xf32>
    %358 = vector.extract_strided_slice %339 {offsets = [0, 96], sizes = [8, 32], strides = [1, 1]} : vector<8x128xf32> to vector<8x32xf32>
    %cst_185 = arith.constant dense<0.000000e+00> : vector<8x8xf32>
    %359 = tpu.matmul %332, %357, %cst_185 {dimension_numbers = #tpu.dot_dimension_numbers<[1], [1], [0], [0], [0, 0, 1, 0], [], []>} : vector<8x32xf32>, vector<8x32xf32>, vector<8x8xf32> -> vector<8x8xf32>
    %cst_186 = arith.constant dense<0xFF800000> : vector<8xf32>
    %360 = vector.multi_reduction <maximumf>, %359, %cst_186 [1] : vector<8x8xf32> to vector<8xf32>
    %361 = vector.shape_cast %360 : vector<8xf32> to vector<8x1xf32>
    %362 = vector.broadcast %361 : vector<8x1xf32> to vector<8x8xf32>
    %363 = arith.subf %359, %362 : vector<8x8xf32>
    %364 = math.exp %363 : vector<8x8xf32>
    %365 = arith.mulf %364, %97 : vector<8x8xf32>
    %cst_187 = arith.constant dense<0.000000e+00> : vector<8xf32>
    %366 = vector.multi_reduction <add>, %365, %cst_187 [1] : vector<8x8xf32> to vector<8xf32>
    %367 = vector.shape_cast %366 : vector<8xf32> to vector<8x1xf32>
    %cst_188 = arith.constant 1.000000e-30 : f32
    %368 = vector.broadcast %cst_188 : f32 to vector<8x1xf32>
    %369 = arith.maximumf %367, %368 : vector<8x1xf32>
    %370 = tpu.reciprocal %369 : vector<8x1xf32> -> vector<8x1xf32>
    %371 = vector.broadcast %370 : vector<8x1xf32> to vector<8x8xf32>
    %372 = arith.mulf %365, %371 : vector<8x8xf32>
    %cst_189 = arith.constant dense<0.000000e+00> : vector<8x32xf32>
    %373 = tpu.matmul %372, %358, %cst_189 {dimension_numbers = #tpu.dot_dimension_numbers<[1], [0], [0], [1], [0, 0, 1, 1], [], []>} : vector<8x8xf32>, vector<8x32xf32>, vector<8x32xf32> -> vector<8x32xf32>
    %374 = arith.addf %356, %373 : vector<8x32xf32>
    %c4 = arith.constant 4 : index
    %c0_190 = arith.constant 0 : index
    %c0_191 = arith.constant 0 : index
    %375 = vector.load %arg6[%c4, %c0_190, %c0_191] : memref<6x32x128xf32, #tpu.memory_space<vmem>>, vector<1x32x128xf32>
    %376 = vector.shape_cast %375 : vector<1x32x128xf32> to vector<32x128xf32>
    %cst_192 = arith.constant dense<0.000000e+00> : vector<8x128xf32>
    %377 = tpu.matmul %318, %376, %cst_192 {dimension_numbers = #tpu.dot_dimension_numbers<[1], [0], [0], [1], [0, 0, 1, 1], [], []>} : vector<8x32xf32>, vector<32x128xf32>, vector<8x128xf32> -> vector<8x128xf32>
    %c4_193 = arith.constant 4 : index
    %c0_194 = arith.constant 0 : index
    %c0_195 = arith.constant 0 : index
    %378 = vector.load %arg7[%c4_193, %c0_194, %c0_195] : memref<6x1x128xf32, #tpu.memory_space<vmem>>, vector<1x1x128xf32>
    %379 = vector.shape_cast %378 : vector<1x1x128xf32> to vector<1x128xf32>
    %380 = vector.broadcast %379 : vector<1x128xf32> to vector<8x128xf32>
    %381 = arith.addf %377, %380 : vector<8x128xf32>
    %382 = vector.extract_strided_slice %381 {offsets = [0, 0], sizes = [8, 32], strides = [1, 1]} : vector<8x128xf32> to vector<8x32xf32>
    %383 = vector.extract_strided_slice %381 {offsets = [0, 64], sizes = [8, 32], strides = [1, 1]} : vector<8x128xf32> to vector<8x32xf32>
    %cst_196 = arith.constant dense<0.000000e+00> : vector<8x8xf32>
    %384 = tpu.matmul %325, %382, %cst_196 {dimension_numbers = #tpu.dot_dimension_numbers<[1], [1], [0], [0], [0, 0, 1, 0], [], []>} : vector<8x32xf32>, vector<8x32xf32>, vector<8x8xf32> -> vector<8x8xf32>
    %cst_197 = arith.constant dense<0xFF800000> : vector<8xf32>
    %385 = vector.multi_reduction <maximumf>, %384, %cst_197 [1] : vector<8x8xf32> to vector<8xf32>
    %386 = vector.shape_cast %385 : vector<8xf32> to vector<8x1xf32>
    %387 = vector.broadcast %386 : vector<8x1xf32> to vector<8x8xf32>
    %388 = arith.subf %384, %387 : vector<8x8xf32>
    %389 = math.exp %388 : vector<8x8xf32>
    %390 = arith.mulf %389, %99 : vector<8x8xf32>
    %cst_198 = arith.constant dense<0.000000e+00> : vector<8xf32>
    %391 = vector.multi_reduction <add>, %390, %cst_198 [1] : vector<8x8xf32> to vector<8xf32>
    %392 = vector.shape_cast %391 : vector<8xf32> to vector<8x1xf32>
    %cst_199 = arith.constant 1.000000e-30 : f32
    %393 = vector.broadcast %cst_199 : f32 to vector<8x1xf32>
    %394 = arith.maximumf %392, %393 : vector<8x1xf32>
    %395 = tpu.reciprocal %394 : vector<8x1xf32> -> vector<8x1xf32>
    %396 = vector.broadcast %395 : vector<8x1xf32> to vector<8x8xf32>
    %397 = arith.mulf %390, %396 : vector<8x8xf32>
    %cst_200 = arith.constant dense<0.000000e+00> : vector<8x32xf32>
    %398 = tpu.matmul %397, %383, %cst_200 {dimension_numbers = #tpu.dot_dimension_numbers<[1], [0], [0], [1], [0, 0, 1, 1], [], []>} : vector<8x8xf32>, vector<8x32xf32>, vector<8x32xf32> -> vector<8x32xf32>
    %399 = vector.extract_strided_slice %381 {offsets = [0, 32], sizes = [8, 32], strides = [1, 1]} : vector<8x128xf32> to vector<8x32xf32>
    %400 = vector.extract_strided_slice %381 {offsets = [0, 96], sizes = [8, 32], strides = [1, 1]} : vector<8x128xf32> to vector<8x32xf32>
    %cst_201 = arith.constant dense<0.000000e+00> : vector<8x8xf32>
    %401 = tpu.matmul %325, %399, %cst_201 {dimension_numbers = #tpu.dot_dimension_numbers<[1], [1], [0], [0], [0, 0, 1, 0], [], []>} : vector<8x32xf32>, vector<8x32xf32>, vector<8x8xf32> -> vector<8x8xf32>
    %cst_202 = arith.constant dense<0xFF800000> : vector<8xf32>
    %402 = vector.multi_reduction <maximumf>, %401, %cst_202 [1] : vector<8x8xf32> to vector<8xf32>
    %403 = vector.shape_cast %402 : vector<8xf32> to vector<8x1xf32>
    %404 = vector.broadcast %403 : vector<8x1xf32> to vector<8x8xf32>
    %405 = arith.subf %401, %404 : vector<8x8xf32>
    %406 = math.exp %405 : vector<8x8xf32>
    %407 = arith.mulf %406, %99 : vector<8x8xf32>
    %cst_203 = arith.constant dense<0.000000e+00> : vector<8xf32>
    %408 = vector.multi_reduction <add>, %407, %cst_203 [1] : vector<8x8xf32> to vector<8xf32>
    %409 = vector.shape_cast %408 : vector<8xf32> to vector<8x1xf32>
    %cst_204 = arith.constant 1.000000e-30 : f32
    %410 = vector.broadcast %cst_204 : f32 to vector<8x1xf32>
    %411 = arith.maximumf %409, %410 : vector<8x1xf32>
    %412 = tpu.reciprocal %411 : vector<8x1xf32> -> vector<8x1xf32>
    %413 = vector.broadcast %412 : vector<8x1xf32> to vector<8x8xf32>
    %414 = arith.mulf %407, %413 : vector<8x8xf32>
    %cst_205 = arith.constant dense<0.000000e+00> : vector<8x32xf32>
    %415 = tpu.matmul %414, %400, %cst_205 {dimension_numbers = #tpu.dot_dimension_numbers<[1], [0], [0], [1], [0, 0, 1, 1], [], []>} : vector<8x8xf32>, vector<8x32xf32>, vector<8x32xf32> -> vector<8x32xf32>
    %416 = arith.addf %398, %415 : vector<8x32xf32>
    %c5 = arith.constant 5 : index
    %c0_206 = arith.constant 0 : index
    %c0_207 = arith.constant 0 : index
    %417 = vector.load %arg6[%c5, %c0_206, %c0_207] : memref<6x32x128xf32, #tpu.memory_space<vmem>>, vector<1x32x128xf32>
    %418 = vector.shape_cast %417 : vector<1x32x128xf32> to vector<32x128xf32>
    %cst_208 = arith.constant dense<0.000000e+00> : vector<8x128xf32>
    %419 = tpu.matmul %280, %418, %cst_208 {dimension_numbers = #tpu.dot_dimension_numbers<[1], [0], [0], [1], [0, 0, 1, 1], [], []>} : vector<8x32xf32>, vector<32x128xf32>, vector<8x128xf32> -> vector<8x128xf32>
    %c5_209 = arith.constant 5 : index
    %c0_210 = arith.constant 0 : index
    %c0_211 = arith.constant 0 : index
    %420 = vector.load %arg7[%c5_209, %c0_210, %c0_211] : memref<6x1x128xf32, #tpu.memory_space<vmem>>, vector<1x1x128xf32>
    %421 = vector.shape_cast %420 : vector<1x1x128xf32> to vector<1x128xf32>
    %422 = vector.broadcast %421 : vector<1x128xf32> to vector<8x128xf32>
    %423 = arith.addf %419, %422 : vector<8x128xf32>
    %424 = vector.extract_strided_slice %423 {offsets = [0, 0], sizes = [8, 32], strides = [1, 1]} : vector<8x128xf32> to vector<8x32xf32>
    %425 = vector.extract_strided_slice %423 {offsets = [0, 64], sizes = [8, 32], strides = [1, 1]} : vector<8x128xf32> to vector<8x32xf32>
    %cst_212 = arith.constant dense<0.000000e+00> : vector<8x8xf32>
    %426 = tpu.matmul %325, %424, %cst_212 {dimension_numbers = #tpu.dot_dimension_numbers<[1], [1], [0], [0], [0, 0, 1, 0], [], []>} : vector<8x32xf32>, vector<8x32xf32>, vector<8x8xf32> -> vector<8x8xf32>
    %cst_213 = arith.constant dense<0xFF800000> : vector<8xf32>
    %427 = vector.multi_reduction <maximumf>, %426, %cst_213 [1] : vector<8x8xf32> to vector<8xf32>
    %428 = vector.shape_cast %427 : vector<8xf32> to vector<8x1xf32>
    %429 = vector.broadcast %428 : vector<8x1xf32> to vector<8x8xf32>
    %430 = arith.subf %426, %429 : vector<8x8xf32>
    %431 = math.exp %430 : vector<8x8xf32>
    %432 = arith.mulf %431, %101 : vector<8x8xf32>
    %cst_214 = arith.constant dense<0.000000e+00> : vector<8xf32>
    %433 = vector.multi_reduction <add>, %432, %cst_214 [1] : vector<8x8xf32> to vector<8xf32>
    %434 = vector.shape_cast %433 : vector<8xf32> to vector<8x1xf32>
    %cst_215 = arith.constant 1.000000e-30 : f32
    %435 = vector.broadcast %cst_215 : f32 to vector<8x1xf32>
    %436 = arith.maximumf %434, %435 : vector<8x1xf32>
    %437 = tpu.reciprocal %436 : vector<8x1xf32> -> vector<8x1xf32>
    %438 = vector.broadcast %437 : vector<8x1xf32> to vector<8x8xf32>
    %439 = arith.mulf %432, %438 : vector<8x8xf32>
    %cst_216 = arith.constant dense<0.000000e+00> : vector<8x32xf32>
    %440 = tpu.matmul %439, %425, %cst_216 {dimension_numbers = #tpu.dot_dimension_numbers<[1], [0], [0], [1], [0, 0, 1, 1], [], []>} : vector<8x8xf32>, vector<8x32xf32>, vector<8x32xf32> -> vector<8x32xf32>
    %441 = vector.extract_strided_slice %423 {offsets = [0, 32], sizes = [8, 32], strides = [1, 1]} : vector<8x128xf32> to vector<8x32xf32>
    %442 = vector.extract_strided_slice %423 {offsets = [0, 96], sizes = [8, 32], strides = [1, 1]} : vector<8x128xf32> to vector<8x32xf32>
    %cst_217 = arith.constant dense<0.000000e+00> : vector<8x8xf32>
    %443 = tpu.matmul %325, %441, %cst_217 {dimension_numbers = #tpu.dot_dimension_numbers<[1], [1], [0], [0], [0, 0, 1, 0], [], []>} : vector<8x32xf32>, vector<8x32xf32>, vector<8x8xf32> -> vector<8x8xf32>
    %cst_218 = arith.constant dense<0xFF800000> : vector<8xf32>
    %444 = vector.multi_reduction <maximumf>, %443, %cst_218 [1] : vector<8x8xf32> to vector<8xf32>
    %445 = vector.shape_cast %444 : vector<8xf32> to vector<8x1xf32>
    %446 = vector.broadcast %445 : vector<8x1xf32> to vector<8x8xf32>
    %447 = arith.subf %443, %446 : vector<8x8xf32>
    %448 = math.exp %447 : vector<8x8xf32>
    %449 = arith.mulf %448, %101 : vector<8x8xf32>
    %cst_219 = arith.constant dense<0.000000e+00> : vector<8xf32>
    %450 = vector.multi_reduction <add>, %449, %cst_219 [1] : vector<8x8xf32> to vector<8xf32>
    %451 = vector.shape_cast %450 : vector<8xf32> to vector<8x1xf32>
    %cst_220 = arith.constant 1.000000e-30 : f32
    %452 = vector.broadcast %cst_220 : f32 to vector<8x1xf32>
    %453 = arith.maximumf %451, %452 : vector<8x1xf32>
    %454 = tpu.reciprocal %453 : vector<8x1xf32> -> vector<8x1xf32>
    %455 = vector.broadcast %454 : vector<8x1xf32> to vector<8x8xf32>
    %456 = arith.mulf %449, %455 : vector<8x8xf32>
    %cst_221 = arith.constant dense<0.000000e+00> : vector<8x32xf32>
    %457 = tpu.matmul %456, %442, %cst_221 {dimension_numbers = #tpu.dot_dimension_numbers<[1], [0], [0], [1], [0, 0, 1, 1], [], []>} : vector<8x8xf32>, vector<8x32xf32>, vector<8x32xf32> -> vector<8x32xf32>
    %458 = arith.addf %440, %457 : vector<8x32xf32>
    %459 = arith.addf %416, %458 : vector<8x32xf32>
    %c2_222 = arith.constant 2 : index
    %c0_223 = arith.constant 0 : index
    %c0_224 = arith.constant 0 : index
    %460 = vector.load %arg8[%c2_222, %c0_223, %c0_224] : memref<4x32x32xf32, #tpu.memory_space<vmem>>, vector<1x32x32xf32>
    %461 = vector.shape_cast %460 : vector<1x32x32xf32> to vector<32x32xf32>
    %cst_225 = arith.constant dense<0.000000e+00> : vector<8x32xf32>
    %462 = tpu.matmul %459, %461, %cst_225 {dimension_numbers = #tpu.dot_dimension_numbers<[1], [0], [0], [1], [0, 0, 1, 1], [], []>} : vector<8x32xf32>, vector<32x32xf32>, vector<8x32xf32> -> vector<8x32xf32>
    %c2_226 = arith.constant 2 : index
    %c0_227 = arith.constant 0 : index
    %c0_228 = arith.constant 0 : index
    %463 = vector.load %arg9[%c2_226, %c0_227, %c0_228] : memref<4x1x32xf32, #tpu.memory_space<vmem>>, vector<1x1x32xf32>
    %464 = vector.shape_cast %463 : vector<1x1x32xf32> to vector<1x32xf32>
    %465 = vector.broadcast %464 : vector<1x32xf32> to vector<8x32xf32>
    %466 = arith.addf %462, %465 : vector<8x32xf32>
    %c2_229 = arith.constant 2 : index
    %c0_230 = arith.constant 0 : index
    %c0_231 = arith.constant 0 : index
    %467 = vector.load %arg10[%c2_229, %c0_230, %c0_231] : memref<4x1x32xf32, #tpu.memory_space<vmem>>, vector<1x1x32xf32>
    %468 = vector.shape_cast %467 : vector<1x1x32xf32> to vector<1x32xf32>
    %469 = vector.broadcast %468 : vector<1x32xf32> to vector<8x32xf32>
    %470 = arith.mulf %280, %469 : vector<8x32xf32>
    %471 = arith.addf %466, %470 : vector<8x32xf32>
    %cst_232 = arith.constant dense<0.000000e+00> : vector<8xf32>
    %472 = vector.multi_reduction <add>, %471, %cst_232 [1] : vector<8x32xf32> to vector<8xf32>
    %473 = vector.shape_cast %472 : vector<8xf32> to vector<8x1xf32>
    %cst_233 = arith.constant 3.200000e+01 : f32
    %474 = vector.broadcast %cst_233 : f32 to vector<8x1xf32>
    %475 = arith.divf %473, %474 : vector<8x1xf32>
    %476 = vector.broadcast %475 : vector<8x1xf32> to vector<8x32xf32>
    %477 = arith.subf %471, %476 : vector<8x32xf32>
    %478 = arith.mulf %477, %477 : vector<8x32xf32>
    %cst_234 = arith.constant dense<0.000000e+00> : vector<8xf32>
    %479 = vector.multi_reduction <add>, %478, %cst_234 [1] : vector<8x32xf32> to vector<8xf32>
    %480 = vector.shape_cast %479 : vector<8xf32> to vector<8x1xf32>
    %cst_235 = arith.constant 3.200000e+01 : f32
    %481 = vector.broadcast %cst_235 : f32 to vector<8x1xf32>
    %482 = arith.divf %480, %481 : vector<8x1xf32>
    %483 = vector.broadcast %475 : vector<8x1xf32> to vector<8x32xf32>
    %484 = arith.subf %471, %483 : vector<8x32xf32>
    %cst_236 = arith.constant 9.99999974E-6 : f32
    %485 = vector.broadcast %cst_236 : f32 to vector<8x1xf32>
    %486 = arith.addf %482, %485 : vector<8x1xf32>
    %487 = math.rsqrt %486 : vector<8x1xf32>
    %488 = vector.broadcast %487 : vector<8x1xf32> to vector<8x32xf32>
    %489 = arith.mulf %484, %488 : vector<8x32xf32>
    %c2_237 = arith.constant 2 : index
    %c0_238 = arith.constant 0 : index
    %c0_239 = arith.constant 0 : index
    %490 = vector.load %arg11[%c2_237, %c0_238, %c0_239] : memref<4x1x32xf32, #tpu.memory_space<vmem>>, vector<1x1x32xf32>
    %491 = vector.shape_cast %490 : vector<1x1x32xf32> to vector<1x32xf32>
    %492 = vector.broadcast %491 : vector<1x32xf32> to vector<8x32xf32>
    %493 = arith.mulf %489, %492 : vector<8x32xf32>
    %c2_240 = arith.constant 2 : index
    %c0_241 = arith.constant 0 : index
    %c0_242 = arith.constant 0 : index
    %494 = vector.load %arg12[%c2_240, %c0_241, %c0_242] : memref<4x1x32xf32, #tpu.memory_space<vmem>>, vector<1x1x32xf32>
    %495 = vector.shape_cast %494 : vector<1x1x32xf32> to vector<1x32xf32>
    %496 = vector.broadcast %495 : vector<1x32xf32> to vector<8x32xf32>
    %497 = arith.addf %493, %496 : vector<8x32xf32>
    %c3_243 = arith.constant 3 : index
    %c0_244 = arith.constant 0 : index
    %c0_245 = arith.constant 0 : index
    %498 = vector.load %arg8[%c3_243, %c0_244, %c0_245] : memref<4x32x32xf32, #tpu.memory_space<vmem>>, vector<1x32x32xf32>
    %499 = vector.shape_cast %498 : vector<1x32x32xf32> to vector<32x32xf32>
    %cst_246 = arith.constant dense<0.000000e+00> : vector<8x32xf32>
    %500 = tpu.matmul %374, %499, %cst_246 {dimension_numbers = #tpu.dot_dimension_numbers<[1], [0], [0], [1], [0, 0, 1, 1], [], []>} : vector<8x32xf32>, vector<32x32xf32>, vector<8x32xf32> -> vector<8x32xf32>
    %c3_247 = arith.constant 3 : index
    %c0_248 = arith.constant 0 : index
    %c0_249 = arith.constant 0 : index
    %501 = vector.load %arg9[%c3_247, %c0_248, %c0_249] : memref<4x1x32xf32, #tpu.memory_space<vmem>>, vector<1x1x32xf32>
    %502 = vector.shape_cast %501 : vector<1x1x32xf32> to vector<1x32xf32>
    %503 = vector.broadcast %502 : vector<1x32xf32> to vector<8x32xf32>
    %504 = arith.addf %500, %503 : vector<8x32xf32>
    %c3_250 = arith.constant 3 : index
    %c0_251 = arith.constant 0 : index
    %c0_252 = arith.constant 0 : index
    %505 = vector.load %arg10[%c3_250, %c0_251, %c0_252] : memref<4x1x32xf32, #tpu.memory_space<vmem>>, vector<1x1x32xf32>
    %506 = vector.shape_cast %505 : vector<1x1x32xf32> to vector<1x32xf32>
    %507 = vector.broadcast %506 : vector<1x32xf32> to vector<8x32xf32>
    %508 = arith.mulf %318, %507 : vector<8x32xf32>
    %509 = arith.addf %504, %508 : vector<8x32xf32>
    %cst_253 = arith.constant dense<0.000000e+00> : vector<8xf32>
    %510 = vector.multi_reduction <add>, %509, %cst_253 [1] : vector<8x32xf32> to vector<8xf32>
    %511 = vector.shape_cast %510 : vector<8xf32> to vector<8x1xf32>
    %cst_254 = arith.constant 3.200000e+01 : f32
    %512 = vector.broadcast %cst_254 : f32 to vector<8x1xf32>
    %513 = arith.divf %511, %512 : vector<8x1xf32>
    %514 = vector.broadcast %513 : vector<8x1xf32> to vector<8x32xf32>
    %515 = arith.subf %509, %514 : vector<8x32xf32>
    %516 = arith.mulf %515, %515 : vector<8x32xf32>
    %cst_255 = arith.constant dense<0.000000e+00> : vector<8xf32>
    %517 = vector.multi_reduction <add>, %516, %cst_255 [1] : vector<8x32xf32> to vector<8xf32>
    %518 = vector.shape_cast %517 : vector<8xf32> to vector<8x1xf32>
    %cst_256 = arith.constant 3.200000e+01 : f32
    %519 = vector.broadcast %cst_256 : f32 to vector<8x1xf32>
    %520 = arith.divf %518, %519 : vector<8x1xf32>
    %521 = vector.broadcast %513 : vector<8x1xf32> to vector<8x32xf32>
    %522 = arith.subf %509, %521 : vector<8x32xf32>
    %cst_257 = arith.constant 9.99999974E-6 : f32
    %523 = vector.broadcast %cst_257 : f32 to vector<8x1xf32>
    %524 = arith.addf %520, %523 : vector<8x1xf32>
    %525 = math.rsqrt %524 : vector<8x1xf32>
    %526 = vector.broadcast %525 : vector<8x1xf32> to vector<8x32xf32>
    %527 = arith.mulf %522, %526 : vector<8x32xf32>
    %c3_258 = arith.constant 3 : index
    %c0_259 = arith.constant 0 : index
    %c0_260 = arith.constant 0 : index
    %528 = vector.load %arg11[%c3_258, %c0_259, %c0_260] : memref<4x1x32xf32, #tpu.memory_space<vmem>>, vector<1x1x32xf32>
    %529 = vector.shape_cast %528 : vector<1x1x32xf32> to vector<1x32xf32>
    %530 = vector.broadcast %529 : vector<1x32xf32> to vector<8x32xf32>
    %531 = arith.mulf %527, %530 : vector<8x32xf32>
    %c3_261 = arith.constant 3 : index
    %c0_262 = arith.constant 0 : index
    %c0_263 = arith.constant 0 : index
    %532 = vector.load %arg12[%c3_261, %c0_262, %c0_263] : memref<4x1x32xf32, #tpu.memory_space<vmem>>, vector<1x1x32xf32>
    %533 = vector.shape_cast %532 : vector<1x1x32xf32> to vector<1x32xf32>
    %534 = vector.broadcast %533 : vector<1x32xf32> to vector<8x32xf32>
    %535 = arith.addf %531, %534 : vector<8x32xf32>
    %c0_264 = arith.constant 0 : index
    %c0_265 = arith.constant 0 : index
    %536 = vector.load %arg14[%c0_264, %c0_265] : memref<8x32xf32, #tpu.memory_space<vmem>>, vector<8x32xf32>
    tpu.vector_store %arg14[%c0_264, %c0_265], %497 {strides = array<i32>} : memref<8x32xf32, #tpu.memory_space<vmem>>, vector<8x32xf32>,
    %c0_266 = arith.constant 0 : index
    %c0_267 = arith.constant 0 : index
    %537 = vector.load %arg15[%c0_266, %c0_267] : memref<8x32xf32, #tpu.memory_space<vmem>>, vector<8x32xf32>
    tpu.vector_store %arg15[%c0_266, %c0_267], %535 {strides = array<i32>} : memref<8x32xf32, #tpu.memory_space<vmem>>, vector<8x32xf32>,
    return
  }
}

</mosaic_0001>

<llo_original>
// kernel: hgt_forward.1
$region0: #{hgt_forward.1}
  #allocation0 [shape = 'u32[]', space=smem, size = 0x4, offset = 0x4, fixed_abs, tag = 'smem constant byte address 0x4 - core index']
  #allocation1 [shape = 'u32[144,128]{1,0:T(1,128)}', space=vmem, size = 0x12000, scoped, tag = 'internal scratch']
  %s0 = inlined_call_operand.vmem [shape: f32[8,8], index: 0, kind: input, shape index: {}]
  %s1 = inlined_call_operand.vmem [shape: f32[8,8], index: 1, kind: input, shape index: {}]
  %s2 = inlined_call_operand.hbm [shape: f32[2,8,32], index: 2, kind: input, shape index: {}]
  %s3 = inlined_call_operand.hbm [shape: f32[2,1,32], index: 3, kind: input, shape index: {}]
  %s4 = inlined_call_operand.hbm [shape: f32[4,32,32], index: 4, kind: input, shape index: {}]
  %s5 = inlined_call_operand.hbm [shape: f32[4,1,32], index: 5, kind: input, shape index: {}]
  %s6 = inlined_call_operand.hbm [shape: f32[6,32,128], index: 6, kind: input, shape index: {}]
  %s7 = inlined_call_operand.hbm [shape: f32[6,1,128], index: 7, kind: input, shape index: {}]
  %s8 = inlined_call_operand.hbm [shape: f32[4,32,32], index: 8, kind: input, shape index: {}]
  %s9 = inlined_call_operand.hbm [shape: f32[4,1,32], index: 9, kind: input, shape index: {}]
  %s10 = inlined_call_operand.hbm [shape: f32[4,1,32], index: 10, kind: input, shape index: {}]
  %s11 = inlined_call_operand.hbm [shape: f32[4,1,32], index: 11, kind: input, shape index: {}]
  %s12 = inlined_call_operand.hbm [shape: f32[4,1,32], index: 12, kind: input, shape index: {}]
  %s13 = inlined_call_operand.hbm [shape: f32[3,8,8], index: 13, kind: input, shape index: {}]
  %s14 = inlined_call_operand.hbm [shape: f32[8,32], index: 14, kind: output, shape index: {0}]
  %s15 = inlined_call_operand.hbm [shape: f32[8,32], index: 15, kind: output, shape index: {1}]
  %16 = xla_tuple %s14, %s15
  %s17 = sld [smem:[#allocation0]]
  $region122: #{hgt_forward.1} parent=0
    _
  %s19 = ssub.s32 1, %s17
  %s20 = scalar_select 0, %s19, %s17
  $region1: #{hgt_forward.1} parent=0
    #allocation2 [shape = 'u8[8192]{0}', space=vmem, size = 0x2000, scoped, tag = 'input window, operand 2, single buffered']
    #allocation3 [shape = 's32[1]{0}', space=sflag, size = 0x4, scoped, tag = 'scoped memory for hgt_forward.1']
    #allocation4 [shape = 's32[1]{0}', space=sflag, size = 0x4, scoped, tag = 'scoped memory for hgt_forward.1']
    #allocation5 [shape = 'u8[1024]{0}', space=vmem, size = 0x400, scoped, tag = 'input window, operand 3, single buffered']
    #allocation6 [shape = 's32[1]{0}', space=sflag, size = 0x4, scoped, tag = 'scoped memory for hgt_forward.1']
    #allocation7 [shape = 'u8[65536]{0}', space=vmem, size = 0x10000, scoped, tag = 'input window, operand 4, single buffered']
    #allocation8 [shape = 'u8[2048]{0}', space=vmem, size = 0x800, scoped, tag = 'input window, operand 5, single buffered']
    #allocation9 [shape = 's32[1]{0}', space=sflag, size = 0x4, scoped, tag = 'scoped memory for hgt_forward.1']
    #allocation10 [shape = 'u8[98304]{0}', space=vmem, size = 0x18000, scoped, tag = 'input window, operand 6, single buffered']
    #allocation11 [shape = 'u8[3072]{0}', space=vmem, size = 0xc00, scoped, tag = 'input window, operand 7, single buffered']
    #allocation12 [shape = 's32[1]{0}', space=sflag, size = 0x4, scoped, tag = 'scoped memory for hgt_forward.1']
    #allocation13 [shape = 'u8[65536]{0}', space=vmem, size = 0x10000, scoped, tag = 'input window, operand 8, single buffered']
    #allocation14 [shape = 'u8[2048]{0}', space=vmem, size = 0x800, scoped, tag = 'input window, operand 9, single buffered']
    #allocation15 [shape = 's32[1]{0}', space=sflag, size = 0x4, scoped, tag = 'scoped memory for hgt_forward.1']
    #allocation16 [shape = 'u8[2048]{0}', space=vmem, size = 0x800, scoped, tag = 'input window, operand 10, single buffered']
    #allocation17 [shape = 'u8[2048]{0}', space=vmem, size = 0x800, scoped, tag = 'input window, operand 11, single buffered']
    #allocation18 [shape = 's32[1]{0}', space=sflag, size = 0x4, scoped, tag = 'scoped memory for hgt_forward.1']
    #allocation19 [shape = 'u8[2048]{0}', space=vmem, size = 0x800, scoped, tag = 'input window, operand 12, single buffered']
    #allocation20 [shape = 'u8[12288]{0}', space=vmem, size = 0x3000, scoped, tag = 'input window, operand 13, single buffered']
    #allocation21 [shape = 's32[1]{0}', space=sflag, size = 0x4, scoped, tag = 'scoped memory for hgt_forward.1']
    #allocation22 [shape = 'u8[4096]{0}', space=vmem, size = 0x1000, scoped, tag = 'output window, operand 0, single buffered']
    #allocation23 [shape = 'u8[4096]{0}', space=vmem, size = 0x1000, scoped, tag = 'output window, operand 1, single buffered']
    #allocation24 [shape = 's32[1]{0}', space=sflag, size = 0x4, scoped, tag = 'scoped memory for hgt_forward.1']
    %21 = vsyncpa [#allocation3], 0
    %22 = vsyncpa [#allocation6], 0
    %23 = vsyncpa [#allocation9], 0
    %24 = vsyncpa [#allocation12], 0
    %25 = vsyncpa [#allocation15], 0
    %26 = vsyncpa [#allocation18], 0
    %27 = vsyncpa [#allocation21], 0
    %28 = vsyncpa [#allocation4], 0
    %29 = vsyncpa [#allocation24], 0
    // Predicated region
    $region2: #{hgt_forward.1} parent=1 // pred_check
      _
    $region3: #{hgt_forward.1} parent=1 // pred_check_branch
      %31 = sbr.rel (0) target = $region5
    $region4: #{hgt_forward.1} parent=1 // pred_region
      _
    $region5: #{hgt_forward.1} parent=1 // pred_fallthru
      _
    // Predicated region
    $region6: #{hgt_forward.1} parent=1 // pred_check
      _
    $region7: #{hgt_forward.1} parent=1 // pred_check_branch
      %33 = sbr.rel (0) target = $region9
    $region8: #{hgt_forward.1} parent=1 // pred_region
      _
    $region9: #{hgt_forward.1} parent=1 // pred_fallthru
      _
    // Predicated region
    $region10: #{hgt_forward.1} parent=1 // pred_check
      _
    $region11: #{hgt_forward.1} parent=1 // pred_check_branch
      %35 = sbr.rel (0) target = $region13
    $region12: #{hgt_forward.1} parent=1 // pred_region
      %s37 = ssub.s32 256, 256
      %38 = vsyncadd [#allocation3], %s37
      %s39 = sshll.u32 [#allocation2], 4
      %s40 = int_to_ptr.vmem [resolvable:$true] %s39
      %45 = dma.hbm_to_vmem [thread:$0]  %s2, 256, %s40, [#allocation3], 128, 128, 8
    $region13: #{hgt_forward.1} parent=1 // pred_fallthru
      _
    // Predicated region
    $region14: #{hgt_forward.1} parent=1 // pred_check
      _
    $region15: #{hgt_forward.1} parent=1 // pred_check_branch
      %47 = sbr.rel (0) target = $region17
    $region16: #{hgt_forward.1} parent=1 // pred_region
      %s49 = ssub.s32 32, 32
      %50 = vsyncadd [#allocation6], %s49
      %s51 = sshll.u32 [#allocation5], 4
      %s52 = int_to_ptr.vmem [resolvable:$true] %s51
      %57 = dma.hbm_to_vmem [thread:$0]  %s3, 32, %s52, [#allocation6], 16, 16, 1
    $region17: #{hgt_forward.1} parent=1 // pred_fallthru
      _
    // Predicated region
    $region18: #{hgt_forward.1} parent=1 // pred_check
      _
    $region19: #{hgt_forward.1} parent=1 // pred_check_branch
      %59 = sbr.rel (0) target = $region21
    $region20: #{hgt_forward.1} parent=1 // pred_region
      %s61 = ssub.s32 2048, 2048
      %62 = vsyncadd [#allocation6], %s61
      %s63 = sshll.u32 [#allocation7], 4
      %s64 = int_to_ptr.vmem [resolvable:$true] %s63
      %69 = dma.hbm_to_vmem [thread:$0]  %s4, 2048, %s64, [#allocation6], 128, 128, 8
    $region21: #{hgt_forward.1} parent=1 // pred_fallthru
      _
    // Predicated region
    $region22: #{hgt_forward.1} parent=1 // pred_check
      _
    $region23: #{hgt_forward.1} parent=1 // pred_check_branch
      %71 = sbr.rel (0) target = $region25
    $region24: #{hgt_forward.1} parent=1 // pred_region
      %s73 = ssub.s32 64, 64
      %74 = vsyncadd [#allocation9], %s73
      %s75 = sshll.u32 [#allocation8], 4
      %s76 = int_to_ptr.vmem [resolvable:$true] %s75
      %81 = dma.hbm_to_vmem [thread:$0]  %s5, 64, %s76, [#allocation9], 16, 16, 1
    $region25: #{hgt_forward.1} parent=1 // pred_fallthru
      _
    // Predicated region
    $region26: #{hgt_forward.1} parent=1 // pred_check
      _
    $region27: #{hgt_forward.1} parent=1 // pred_check_branch
      %83 = sbr.rel (0) target = $region29
    $region28: #{hgt_forward.1} parent=1 // pred_region
      %s85 = ssub.s32 3072, 3072
      %86 = vsyncadd [#allocation9], %s85
      %s87 = sshll.u32 [#allocation10], 4
      %s88 = int_to_ptr.vmem [resolvable:$true] %s87
      %93 = dma.hbm_to_vmem [thread:$0]  %s6, 3072, %s88, [#allocation9], 128, 128, 8
    $region29: #{hgt_forward.1} parent=1 // pred_fallthru
      _
    // Predicated region
    $region30: #{hgt_forward.1} parent=1 // pred_check
      _
    $region31: #{hgt_forward.1} parent=1 // pred_check_branch
      %95 = sbr.rel (0) target = $region33
    $region32: #{hgt_forward.1} parent=1 // pred_region
      %s97 = ssub.s32 96, 96
      %98 = vsyncadd [#allocation12], %s97
      %s99 = sshll.u32 [#allocation11], 4
      %s100 = int_to_ptr.vmem [resolvable:$true] %s99
      %105 = dma.hbm_to_vmem [thread:$0]  %s7, 96, %s100, [#allocation12], 16, 16, 1
    $region33: #{hgt_forward.1} parent=1 // pred_fallthru
      _
    // Predicated region
    $region34: #{hgt_forward.1} parent=1 // pred_check
      _
    $region35: #{hgt_forward.1} parent=1 // pred_check_branch
      %107 = sbr.rel (0) target = $region37
    $region36: #{hgt_forward.1} parent=1 // pred_region
      %s109 = ssub.s32 2048, 2048
      %110 = vsyncadd [#allocation12], %s109
      %s111 = sshll.u32 [#allocation13], 4
      %s112 = int_to_ptr.vmem [resolvable:$true] %s111
      %117 = dma.hbm_to_vmem [thread:$0]  %s8, 2048, %s112, [#allocation12], 128, 128, 8
    $region37: #{hgt_forward.1} parent=1 // pred_fallthru
      _
    // Predicated region
    $region38: #{hgt_forward.1} parent=1 // pred_check
      _
    $region39: #{hgt_forward.1} parent=1 // pred_check_branch
      %119 = sbr.rel (0) target = $region41
    $region40: #{hgt_forward.1} parent=1 // pred_region
      %s121 = ssub.s32 64, 64
      %122 = vsyncadd [#allocation15], %s121
      %s123 = sshll.u32 [#allocation14], 4
      %s124 = int_to_ptr.vmem [resolvable:$true] %s123
      %129 = dma.hbm_to_vmem [thread:$0]  %s9, 64, %s124, [#allocation15], 16, 16, 1
    $region41: #{hgt_forward.1} parent=1 // pred_fallthru
      _
    // Predicated region
    $region42: #{hgt_forward.1} parent=1 // pred_check
      _
    $region43: #{hgt_forward.1} parent=1 // pred_check_branch
      %131 = sbr.rel (0) target = $region45
    $region44: #{hgt_forward.1} parent=1 // pred_region
      %s133 = ssub.s32 64, 64
      %134 = vsyncadd [#allocation15], %s133
      %s135 = sshll.u32 [#allocation16], 4
      %s136 = int_to_ptr.vmem [resolvable:$true] %s135
      %141 = dma.hbm_to_vmem [thread:$0]  %s10, 64, %s136, [#allocation15], 16, 16, 1
    $region45: #{hgt_forward.1} parent=1 // pred_fallthru
      _
    // Predicated region
    $region46: #{hgt_forward.1} parent=1 // pred_check
      _
    $region47: #{hgt_forward.1} parent=1 // pred_check_branch
      %143 = sbr.rel (0) target = $region49
    $region48: #{hgt_forward.1} parent=1 // pred_region
      %s145 = ssub.s32 64, 64
      %146 = vsyncadd [#allocation18], %s145
      %s147 = sshll.u32 [#allocation17], 4
      %s148 = int_to_ptr.vmem [resolvable:$true] %s147
      %153 = dma.hbm_to_vmem [thread:$0]  %s11, 64, %s148, [#allocation18], 16, 16, 1
    $region49: #{hgt_forward.1} parent=1 // pred_fallthru
      _
    // Predicated region
    $region50: #{hgt_forward.1} parent=1 // pred_check
      _
    $region51: #{hgt_forward.1} parent=1 // pred_check_branch
      %155 = sbr.rel (0) target = $region53
    $region52: #{hgt_forward.1} parent=1 // pred_region
      %s157 = ssub.s32 64, 64
      %158 = vsyncadd [#allocation18], %s157
      %s159 = sshll.u32 [#allocation19], 4
      %s160 = int_to_ptr.vmem [resolvable:$true] %s159
      %165 = dma.hbm_to_vmem [thread:$0]  %s12, 64, %s160, [#allocation18], 16, 16, 1
    $region53: #{hgt_forward.1} parent=1 // pred_fallthru
      _
    // Predicated region
    $region54: #{hgt_forward.1} parent=1 // pred_check
      _
    $region55: #{hgt_forward.1} parent=1 // pred_check_branch
      %167 = sbr.rel (0) target = $region57
    $region56: #{hgt_forward.1} parent=1 // pred_region
      %s169 = ssub.s32 384, 384
      %170 = vsyncadd [#allocation21], %s169
      %s171 = sshll.u32 [#allocation20], 4
      %s172 = int_to_ptr.vmem [resolvable:$true] %s171
      %177 = dma.hbm_to_vmem [thread:$0]  %s13, 384, %s172, [#allocation21], 128, 128, 8
    $region57: #{hgt_forward.1} parent=1 // pred_fallthru
      _
    // Predicated region
    $region58: #{hgt_forward.1} parent=1 // pred_check
      _
    $region59: #{hgt_forward.1} parent=1 // pred_check_branch
      %179 = sbr.rel (0) target = $region61
    $region60: #{hgt_forward.1} parent=1 // pred_region
      %180 = dma.done [#allocation3], 256
    $region61: #{hgt_forward.1} parent=1 // pred_fallthru
      _
    // Predicated region
    $region62: #{hgt_forward.1} parent=1 // pred_check
      _
    $region63: #{hgt_forward.1} parent=1 // pred_check_branch
      %182 = sbr.rel (0) target = $region65
    $region64: #{hgt_forward.1} parent=1 // pred_region
      %183 = dma.done [#allocation6], 32
    $region65: #{hgt_forward.1} parent=1 // pred_fallthru
      _
    // Predicated region
    $region66: #{hgt_forward.1} parent=1 // pred_check
      _
    $region67: #{hgt_forward.1} parent=1 // pred_check_branch
      %185 = sbr.rel (0) target = $region69
    $region68: #{hgt_forward.1} parent=1 // pred_region
      %186 = dma.done [#allocation6], 2048
    $region69: #{hgt_forward.1} parent=1 // pred_fallthru
      _
    // Predicated region
    $region70: #{hgt_forward.1} parent=1 // pred_check
      _
    $region71: #{hgt_forward.1} parent=1 // pred_check_branch
      %188 = sbr.rel (0) target = $region73
    $region72: #{hgt_forward.1} parent=1 // pred_region
      %189 = dma.done [#allocation9], 64
    $region73: #{hgt_forward.1} parent=1 // pred_fallthru
      _
    // Predicated region
    $region74: #{hgt_forward.1} parent=1 // pred_check
      _
    $region75: #{hgt_forward.1} parent=1 // pred_check_branch
      %191 = sbr.rel (0) target = $region77
    $region76: #{hgt_forward.1} parent=1 // pred_region
      %192 = dma.done [#allocation9], 3072
    $region77: #{hgt_forward.1} parent=1 // pred_fallthru
      _
    // Predicated region
    $region78: #{hgt_forward.1} parent=1 // pred_check
      _
    $region79: #{hgt_forward.1} parent=1 // pred_check_branch
      %194 = sbr.rel (0) target = $region81
    $region80: #{hgt_forward.1} parent=1 // pred_region
      %195 = dma.done [#allocation12], 96
    $region81: #{hgt_forward.1} parent=1 // pred_fallthru
      _
    // Predicated region
    $region82: #{hgt_forward.1} parent=1 // pred_check
      _
    $region83: #{hgt_forward.1} parent=1 // pred_check_branch
      %197 = sbr.rel (0) target = $region85
    $region84: #{hgt_forward.1} parent=1 // pred_region
      %198 = dma.done [#allocation12], 2048
    $region85: #{hgt_forward.1} parent=1 // pred_fallthru
      _
    // Predicated region
    $region86: #{hgt_forward.1} parent=1 // pred_check
      _
    $region87: #{hgt_forward.1} parent=1 // pred_check_branch
      %200 = sbr.rel (0) target = $region89
    $region88: #{hgt_forward.1} parent=1 // pred_region
      %201 = dma.done [#allocation15], 64
    $region89: #{hgt_forward.1} parent=1 // pred_fallthru
      _
    // Predicated region
    $region90: #{hgt_forward.1} parent=1 // pred_check
      _
    $region91: #{hgt_forward.1} parent=1 // pred_check_branch
      %203 = sbr.rel (0) target = $region93
    $region92: #{hgt_forward.1} parent=1 // pred_region
      %204 = dma.done [#allocation15], 64
    $region93: #{hgt_forward.1} parent=1 // pred_fallthru
      _
    // Predicated region
    $region94: #{hgt_forward.1} parent=1 // pred_check
      _
    $region95: #{hgt_forward.1} parent=1 // pred_check_branch
      %206 = sbr.rel (0) target = $region97
    $region96: #{hgt_forward.1} parent=1 // pred_region
      %207 = dma.done [#allocation18], 64
    $region97: #{hgt_forward.1} parent=1 // pred_fallthru
      _
    // Predicated region
    $region98: #{hgt_forward.1} parent=1 // pred_check
      _
    $region99: #{hgt_forward.1} parent=1 // pred_check_branch
      %209 = sbr.rel (0) target = $region101
    $region100: #{hgt_forward.1} parent=1 // pred_region
      %210 = dma.done [#allocation18], 64
    $region101: #{hgt_forward.1} parent=1 // pred_fallthru
      _
    // Predicated region
    $region102: #{hgt_forward.1} parent=1 // pred_check
      _
    $region103: #{hgt_forward.1} parent=1 // pred_check_branch
      %212 = sbr.rel (0) target = $region105
    $region104: #{hgt_forward.1} parent=1 // pred_region
      %213 = dma.done [#allocation21], 384
    $region105: #{hgt_forward.1} parent=1 // pred_fallthru
      _
    %v214 = vld [vmem:[%s0] sm:$0xff]
    %v215 = vld [vmem:[#allocation2] sm:$0xff]
    %v216 = vld [vmem:[#allocation5] sm:$0x1]
    %v218 = vlaneseq
    %v219 = vshrl.u32 %v218, 7
    %v220 = vsub.s32 0, %v219
    %v221 = vrot.slane %v216, %v220
    %vm223 = vcmask 64512
    %v225 = vsel %vm223, %v214, 0
    %227 = vmatprep.subr.mxu0 0.0
    %228 = vmatpush1.msra.mxu0 0.0
    %229 = vmatprep.subr.mxu0 0.0
    %230 = vmatpush1.msra.mxu0 0.0
    %231 = vmatprep.subr.mxu0 0.0
    %232 = vmatpush1.msra.mxu0 0.0
    %233 = vmatprep.subr.mxu0 0.0
    %234 = vmatpush1.msra.mxu0 0.0
    %235 = vmatprep.subr.mxu0 0.0
    %236 = vmatpush1.msra.mxu0 0.0
    %237 = vmatprep.subr.mxu0 0.0
    %238 = vmatpush1.msra.mxu0 0.0
    %239 = vmatprep.subr.mxu0 0.0
    %240 = vmatpush1.msra.mxu0 0.0
    %241 = vmatprep.subr.mxu0 0.0
    %242 = vmatpush1.msra.mxu0 0.0
    %243 = vmatprep.subr.mxu0 0.0
    %244 = vmatpush1.msra.mxu0 0.0
    %245 = vmatprep.subr.mxu0 0.0
    %246 = vmatpush1.msra.mxu0 0.0
    %247 = vmatprep.subr.mxu0 0.0
    %248 = vmatpush1.msra.mxu0 0.0
    %249 = vmatprep.subr.mxu0 0.0
    %250 = vmatpush1.msra.mxu0 0.0
    %251 = vmatprep.subr.mxu0 0.0
    %252 = vmatpush1.msra.mxu0 0.0
    %253 = vmatprep.subr.mxu0 0.0
    %254 = vmatpush1.msra.mxu0 0.0
    %255 = vmatprep.subr.mxu0 0.0
    %256 = vmatpush1.msra.mxu0 0.0
    %257 = vmatprep.subr.mxu0 0.0
    %258 = vmatpush1.msra.mxu0 %v215
    %259 = vmatprep.subr.mxu0 0.0
    %260 = vmatpush2.msra.mxu0 0.0
    %261 = vmatprep.subr.mxu0 0.0
    %262 = vmatpush2.msra.mxu0 0.0
    %263 = vmatprep.subr.mxu0 0.0
    %264 = vmatpush2.msra.mxu0 0.0
    %265 = vmatprep.subr.mxu0 0.0
    %266 = vmatpush2.msra.mxu0 0.0
    %267 = vmatprep.subr.mxu0 0.0
    %268 = vmatpush2.msra.mxu0 0.0
    %269 = vmatprep.subr.mxu0 0.0
    %270 = vmatpush2.msra.mxu0 0.0
    %271 = vmatprep.subr.mxu0 0.0
    %272 = vmatpush2.msra.mxu0 0.0
    %273 = vmatprep.subr.mxu0 0.0
    %274 = vmatpush2.msra.mxu0 0.0
    %275 = vmatprep.subr.mxu0 0.0
    %276 = vmatpush2.msra.mxu0 0.0
    %277 = vmatprep.subr.mxu0 0.0
    %278 = vmatpush2.msra.mxu0 0.0
    %279 = vmatprep.subr.mxu0 0.0
    %280 = vmatpush2.msra.mxu0 0.0
    %281 = vmatprep.subr.mxu0 0.0
    %282 = vmatpush2.msra.mxu0 0.0
    %283 = vmatprep.subr.mxu0 0.0
    %284 = vmatpush2.msra.mxu0 0.0
    %285 = vmatprep.subr.mxu0 0.0
    %286 = vmatpush2.msra.mxu0 0.0
    %287 = vmatprep.subr.mxu0 0.0
    %288 = vmatpush2.msra.mxu0 0.0
    %289 = vmatprep.subr.mxu0 0.0
    %290 = vmatpush2.msra.mxu0 0.0
    %291 = vmatprep.mubr.f32.mxu0 0.0
    %292 = vmatmul.mubr.f32.gmra.mxu0 %v225
    %v293 = vpop.f32.mrf.mxu0
    %v294 = vadd.f32 %v221, %v293
    %v295 = vpop.f32.mrf.mxu0
    %296 = vdwg.mxu0
    %v297 = vmul.f32 %v294, 0.70710677
    %v298 = vand.u32 2147483647, %v297
    %v299 = vmul.f32 %v298, 0.3275911
    %v300 = vadd.f32 %v299, 1.0
    %v301 = vrcp.pop %v300
    %v302 = vmul.f32 1.0, %v301
    %v303 = vmul.f32 %v302, 1.0614054
    %v304 = vadd.f32 %v303, -1.4531521
    %v305 = vmul.f32 %v302, %v304
    %v306 = vadd.f32 %v305, 1.4214138
    %v307 = vmul.f32 %v302, %v306
    %v308 = vadd.f32 %v307, -0.28449672
    %v309 = vmul.f32 %v302, %v308
    %v310 = vadd.f32 %v309, 0.2548296
    %v311 = vmul.f32 %v302, %v310
    %v312 = vsub.f32 0.0, %v298
    %v313 = vmul.f32 %v312, %v298
    %v314 = vmul.f32 %v313, 1.442695
    %v315 = vpow.pop %v314
    %v316 = vmul.f32 %v311, %v315
    %v317 = vsub.f32 1.0, %v316
    %vm318 = vcmp.ge.f32.partialorder %v297, 0.0
    %v319 = vsub.f32 0.0, %v317
    %v320 = vsel %vm318, %v317, %v319
    %v321 = vmul.f32 %v294, 0.5
    %v322 = vadd.f32 %v320, 1.0
    %v323 = vmul.f32 %v321, %v322
    %v324 = vld [vmem:[%s1] sm:$0xff]
    %s325 = scalar_lea.vmem [#allocation2], 8
    %v326 = vld [vmem:[%s325] sm:$0xff]
    %s327 = scalar_lea.vmem [#allocation5], 1
    %v328 = vld [vmem:[%s327] sm:$0x1]
    %v330 = vlaneseq
    %v331 = vshrl.u32 %v330, 7
    %v332 = vsub.s32 0, %v331
    %v333 = vrot.slane %v328, %v332
    %v336 = vsel %vm223, %v324, 0
    %338 = vmatprep.subr.mxu0 0.0
    %339 = vmatpush1.msra.mxu0 0.0
    %340 = vmatprep.subr.mxu0 0.0
    %341 = vmatpush1.msra.mxu0 0.0
    %342 = vmatprep.subr.mxu0 0.0
    %343 = vmatpush1.msra.mxu0 0.0
    %344 = vmatprep.subr.mxu0 0.0
    %345 = vmatpush1.msra.mxu0 0.0
    %346 = vmatprep.subr.mxu0 0.0
    %347 = vmatpush1.msra.mxu0 0.0
    %348 = vmatprep.subr.mxu0 0.0
    %349 = vmatpush1.msra.mxu0 0.0
    %350 = vmatprep.subr.mxu0 0.0
    %351 = vmatpush1.msra.mxu0 0.0
    %352 = vmatprep.subr.mxu0 0.0
    %353 = vmatpush1.msra.mxu0 0.0
    %354 = vmatprep.subr.mxu0 0.0
    %355 = vmatpush1.msra.mxu0 0.0
    %356 = vmatprep.subr.mxu0 0.0
    %357 = vmatpush1.msra.mxu0 0.0
    %358 = vmatprep.subr.mxu0 0.0
    %359 = vmatpush1.msra.mxu0 0.0
    %360 = vmatprep.subr.mxu0 0.0
    %361 = vmatpush1.msra.mxu0 0.0
    %362 = vmatprep.subr.mxu0 0.0
    %363 = vmatpush1.msra.mxu0 0.0
    %364 = vmatprep.subr.mxu0 0.0
    %365 = vmatpush1.msra.mxu0 0.0
    %366 = vmatprep.subr.mxu0 0.0
    %367 = vmatpush1.msra.mxu0 0.0
    %368 = vmatprep.subr.mxu0 0.0
    %369 = vmatpush1.msra.mxu0 %v326
    %370 = vmatprep.subr.mxu0 0.0
    %371 = vmatpush2.msra.mxu0 0.0
    %372 = vmatprep.subr.mxu0 0.0
    %373 = vmatpush2.msra.mxu0 0.0
    %374 = vmatprep.subr.mxu0 0.0
    %375 = vmatpush2.msra.mxu0 0.0
    %376 = vmatprep.subr.mxu0 0.0
    %377 = vmatpush2.msra.mxu0 0.0
    %378 = vmatprep.subr.mxu0 0.0
    %379 = vmatpush2.msra.mxu0 0.0
    %380 = vmatprep.subr.mxu0 0.0
    %381 = vmatpush2.msra.mxu0 0.0
    %382 = vmatprep.subr.mxu0 0.0
    %383 = vmatpush2.msra.mxu0 0.0
    %384 = vmatprep.subr.mxu0 0.0
    %385 = vmatpush2.msra.mxu0 0.0
    %386 = vmatprep.subr.mxu0 0.0
    %387 = vmatpush2.msra.mxu0 0.0
    %388 = vmatprep.subr.mxu0 0.0
    %389 = vmatpush2.msra.mxu0 0.0
    %390 = vmatprep.subr.mxu0 0.0
    %391 = vmatpush2.msra.mxu0 0.0
    %392 = vmatprep.subr.mxu0 0.0
    %393 = vmatpush2.msra.mxu0 0.0
    %394 = vmatprep.subr.mxu0 0.0
    %395 = vmatpush2.msra.mxu0 0.0
    %396 = vmatprep.subr.mxu0 0.0
    %397 = vmatpush2.msra.mxu0 0.0
    %398 = vmatprep.subr.mxu0 0.0
    %399 = vmatpush2.msra.mxu0 0.0
    %400 = vmatprep.subr.mxu0 0.0
    %401 = vmatpush2.msra.mxu0 0.0
    %402 = vmatprep.mubr.f32.mxu0 0.0
    %403 = vmatmul.mubr.f32.gmra.mxu0 %v336
    %v404 = vpop.f32.mrf.mxu0
    %v405 = vadd.f32 %v333, %v404
    %v406 = vpop.f32.mrf.mxu0
    %407 = vdwg.mxu0
    %v408 = vmul.f32 %v405, 0.70710677
    %v409 = vand.u32 2147483647, %v408
    %v410 = vmul.f32 %v409, 0.3275911
    %v411 = vadd.f32 %v410, 1.0
    %v412 = vrcp.pop %v411
    %v413 = vmul.f32 1.0, %v412
    %v414 = vmul.f32 %v413, 1.0614054
    %v415 = vadd.f32 %v414, -1.4531521
    %v416 = vmul.f32 %v413, %v415
    %v417 = vadd.f32 %v416, 1.4214138
    %v418 = vmul.f32 %v413, %v417
    %v419 = vadd.f32 %v418, -0.28449672
    %v420 = vmul.f32 %v413, %v419
    %v421 = vadd.f32 %v420, 0.2548296
    %v422 = vmul.f32 %v413, %v421
    %v423 = vsub.f32 0.0, %v409
    %v424 = vmul.f32 %v423, %v409
    %v425 = vmul.f32 %v424, 1.442695
    %v426 = vpow.pop %v425
    %v427 = vmul.f32 %v422, %v426
    %v428 = vsub.f32 1.0, %v427
    %vm429 = vcmp.ge.f32.partialorder %v408, 0.0
    %v430 = vsub.f32 0.0, %v428
    %v431 = vsel %vm429, %v428, %v430
    %v432 = vmul.f32 %v405, 0.5
    %v433 = vadd.f32 %v431, 1.0
    %v434 = vmul.f32 %v432, %v433
    %v435 = vld [vmem:[#allocation20] sm:$0xff]
    %s436 = scalar_lea.vmem [#allocation20], 8
    %v437 = vld [vmem:[%s436] sm:$0xff]
    %s438 = scalar_lea.vmem [#allocation20], 16
    %v439 = vld [vmem:[%s438] sm:$0xff]
    %v440 = vld [vmem:[#allocation7] sm:$0xff]
    %v441 = vld [vmem:[#allocation7 + $0x8] sm:$0xff]
    %v442 = vld [vmem:[#allocation7 + $0x10] sm:$0xff]
    %v443 = vld [vmem:[#allocation7 + $0x18] sm:$0xff]
    %v444 = vld [vmem:[#allocation8] sm:$0x1]
    %v446 = vlaneseq
    %v447 = vshrl.u32 %v446, 7
    %v448 = vsub.s32 0, %v447
    %v449 = vrot.slane %v444, %v448
    %vm451 = vcmask 261120
    %v453 = vsel %vm451, %v323, 0
    %455 = vmatprep.subr.mxu0 0.0
    %456 = vmatpush1.msra.mxu0 0.0
    %457 = vmatprep.subr.mxu0 0.0
    %458 = vmatpush1.msra.mxu0 0.0
    %459 = vmatprep.subr.mxu0 0.0
    %460 = vmatpush1.msra.mxu0 0.0
    %461 = vmatprep.subr.mxu0 0.0
    %462 = vmatpush1.msra.mxu0 0.0
    %463 = vmatprep.subr.mxu0 0.0
    %464 = vmatpush1.msra.mxu0 0.0
    %465 = vmatprep.subr.mxu0 0.0
    %466 = vmatpush1.msra.mxu0 0.0
    %467 = vmatprep.subr.mxu0 0.0
    %468 = vmatpush1.msra.mxu0 0.0
    %469 = vmatprep.subr.mxu0 0.0
    %470 = vmatpush1.msra.mxu0 0.0
    %471 = vmatprep.subr.mxu0 0.0
    %472 = vmatpush1.msra.mxu0 0.0
    %473 = vmatprep.subr.mxu0 0.0
    %474 = vmatpush1.msra.mxu0 0.0
    %475 = vmatprep.subr.mxu0 0.0
    %476 = vmatpush1.msra.mxu0 0.0
    %477 = vmatprep.subr.mxu0 0.0
    %478 = vmatpush1.msra.mxu0 0.0
    %479 = vmatprep.subr.mxu0 0.0
    %480 = vmatpush1.msra.mxu0 %v443
    %481 = vmatprep.subr.mxu0 0.0
    %482 = vmatpush1.msra.mxu0 %v442
    %483 = vmatprep.subr.mxu0 0.0
    %484 = vmatpush1.msra.mxu0 %v441
    %485 = vmatprep.subr.mxu0 0.0
    %486 = vmatpush1.msra.mxu0 %v440
    %487 = vmatprep.subr.mxu0 0.0
    %488 = vmatpush2.msra.mxu0 0.0
    %489 = vmatprep.subr.mxu0 0.0
    %490 = vmatpush2.msra.mxu0 0.0
    %491 = vmatprep.subr.mxu0 0.0
    %492 = vmatpush2.msra.mxu0 0.0
    %493 = vmatprep.subr.mxu0 0.0
    %494 = vmatpush2.msra.mxu0 0.0
    %495 = vmatprep.subr.mxu0 0.0
    %496 = vmatpush2.msra.mxu0 0.0
    %497 = vmatprep.subr.mxu0 0.0
    %498 = vmatpush2.msra.mxu0 0.0
    %499 = vmatprep.subr.mxu0 0.0
    %500 = vmatpush2.msra.mxu0 0.0
    %501 = vmatprep.subr.mxu0 0.0
    %502 = vmatpush2.msra.mxu0 0.0
    %503 = vmatprep.subr.mxu0 0.0
    %504 = vmatpush2.msra.mxu0 0.0
    %505 = vmatprep.subr.mxu0 0.0
    %506 = vmatpush2.msra.mxu0 0.0
    %507 = vmatprep.subr.mxu0 0.0
    %508 = vmatpush2.msra.mxu0 0.0
    %509 = vmatprep.subr.mxu0 0.0
    %510 = vmatpush2.msra.mxu0 0.0
    %511 = vmatprep.subr.mxu0 0.0
    %512 = vmatpush2.msra.mxu0 0.0
    %513 = vmatprep.subr.mxu0 0.0
    %514 = vmatpush2.msra.mxu0 0.0
    %515 = vmatprep.subr.mxu0 0.0
    %516 = vmatpush2.msra.mxu0 0.0
    %517 = vmatprep.subr.mxu0 0.0
    %518 = vmatpush2.msra.mxu0 0.0
    %519 = vmatprep.mubr.f32.mxu0 0.0
    %520 = vmatmul.mubr.f32.gmra.mxu0 %v453
    %v521 = vpop.f32.mrf.mxu0
    %v522 = vadd.f32 %v449, %v521
    %v523 = vpop.f32.mrf.mxu0
    %524 = vdwg.mxu0
    %s525 = scalar_lea.vmem [#allocation7], 32
    %v526 = vld [vmem:[%s525] sm:$0xff]
    %v527 = vld [vmem:[%s525 + $0x8] sm:$0xff]
    %v528 = vld [vmem:[%s525 + $0x10] sm:$0xff]
    %v529 = vld [vmem:[%s525 + $0x18] sm:$0xff]
    %s530 = scalar_lea.vmem [#allocation8], 1
    %v531 = vld [vmem:[%s530] sm:$0x1]
    %v533 = vlaneseq
    %v534 = vshrl.u32 %v533, 7
    %v535 = vsub.s32 0, %v534
    %v536 = vrot.slane %v531, %v535
    %v539 = vsel %vm451, %v434, 0
    %541 = vmatprep.subr.mxu0 0.0
    %542 = vmatpush1.msra.mxu0 0.0
    %543 = vmatprep.subr.mxu0 0.0
    %544 = vmatpush1.msra.mxu0 0.0
    %545 = vmatprep.subr.mxu0 0.0
    %546 = vmatpush1.msra.mxu0 0.0
    %547 = vmatprep.subr.mxu0 0.0
    %548 = vmatpush1.msra.mxu0 0.0
    %549 = vmatprep.subr.mxu0 0.0
    %550 = vmatpush1.msra.mxu0 0.0
    %551 = vmatprep.subr.mxu0 0.0
    %552 = vmatpush1.msra.mxu0 0.0
    %553 = vmatprep.subr.mxu0 0.0
    %554 = vmatpush1.msra.mxu0 0.0
    %555 = vmatprep.subr.mxu0 0.0
    %556 = vmatpush1.msra.mxu0 0.0
    %557 = vmatprep.subr.mxu0 0.0
    %558 = vmatpush1.msra.mxu0 0.0
    %559 = vmatprep.subr.mxu0 0.0
    %560 = vmatpush1.msra.mxu0 0.0
    %561 = vmatprep.subr.mxu0 0.0
    %562 = vmatpush1.msra.mxu0 0.0
    %563 = vmatprep.subr.mxu0 0.0
    %564 = vmatpush1.msra.mxu0 0.0
    %565 = vmatprep.subr.mxu0 0.0
    %566 = vmatpush1.msra.mxu0 %v529
    %567 = vmatprep.subr.mxu0 0.0
    %568 = vmatpush1.msra.mxu0 %v528
    %569 = vmatprep.subr.mxu0 0.0
    %570 = vmatpush1.msra.mxu0 %v527
    %571 = vmatprep.subr.mxu0 0.0
    %572 = vmatpush1.msra.mxu0 %v526
    %573 = vmatprep.subr.mxu0 0.0
    %574 = vmatpush2.msra.mxu0 0.0
    %575 = vmatprep.subr.mxu0 0.0
    %576 = vmatpush2.msra.mxu0 0.0
    %577 = vmatprep.subr.mxu0 0.0
    %578 = vmatpush2.msra.mxu0 0.0
    %579 = vmatprep.subr.mxu0 0.0
    %580 = vmatpush2.msra.mxu0 0.0
    %581 = vmatprep.subr.mxu0 0.0
    %582 = vmatpush2.msra.mxu0 0.0
    %583 = vmatprep.subr.mxu0 0.0
    %584 = vmatpush2.msra.mxu0 0.0
    %585 = vmatprep.subr.mxu0 0.0
    %586 = vmatpush2.msra.mxu0 0.0
    %587 = vmatprep.subr.mxu0 0.0
    %588 = vmatpush2.msra.mxu0 0.0
    %589 = vmatprep.subr.mxu0 0.0
    %590 = vmatpush2.msra.mxu0 0.0
    %591 = vmatprep.subr.mxu0 0.0
    %592 = vmatpush2.msra.mxu0 0.0
    %593 = vmatprep.subr.mxu0 0.0
    %594 = vmatpush2.msra.mxu0 0.0
    %595 = vmatprep.subr.mxu0 0.0
    %596 = vmatpush2.msra.mxu0 0.0
    %597 = vmatprep.subr.mxu0 0.0
    %598 = vmatpush2.msra.mxu0 0.0
    %599 = vmatprep.subr.mxu0 0.0
    %600 = vmatpush2.msra.mxu0 0.0
    %601 = vmatprep.subr.mxu0 0.0
    %602 = vmatpush2.msra.mxu0 0.0
    %603 = vmatprep.subr.mxu0 0.0
    %604 = vmatpush2.msra.mxu0 0.0
    %605 = vmatprep.mubr.f32.mxu0 0.0
    %606 = vmatmul.mubr.f32.gmra.mxu0 %v539
    %v607 = vpop.f32.mrf.mxu0
    %v608 = vadd.f32 %v536, %v607
    %v609 = vpop.f32.mrf.mxu0
    %610 = vdwg.mxu0
    %v611 = vld [vmem:[#allocation10] sm:$0xff]
    %v612 = vld [vmem:[#allocation10 + $0x8] sm:$0xff]
    %v613 = vld [vmem:[#allocation10 + $0x10] sm:$0xff]
    %v614 = vld [vmem:[#allocation10 + $0x18] sm:$0xff]
    %v615 = vld [vmem:[#allocation11] sm:$0x1]
    %v617 = vlaneseq
    %v618 = vshrl.u32 %v617, 7
    %v619 = vsub.s32 0, %v618
    %v620 = vrot.slane %v615, %v619
    %622 = vmatprep.subr.mxu0 0.0
    %623 = vmatpush1.msra.mxu0 0.0
    %624 = vmatprep.subr.mxu0 0.0
    %625 = vmatpush1.msra.mxu0 0.0
    %626 = vmatprep.subr.mxu0 0.0
    %627 = vmatpush1.msra.mxu0 0.0
    %628 = vmatprep.subr.mxu0 0.0
    %629 = vmatpush1.msra.mxu0 0.0
    %630 = vmatprep.subr.mxu0 0.0
    %631 = vmatpush1.msra.mxu0 0.0
    %632 = vmatprep.subr.mxu0 0.0
    %633 = vmatpush1.msra.mxu0 0.0
    %634 = vmatprep.subr.mxu0 0.0
    %635 = vmatpush1.msra.mxu0 0.0
    %636 = vmatprep.subr.mxu0 0.0
    %637 = vmatpush1.msra.mxu0 0.0
    %638 = vmatprep.subr.mxu0 0.0
    %639 = vmatpush1.msra.mxu0 0.0
    %640 = vmatprep.subr.mxu0 0.0
    %641 = vmatpush1.msra.mxu0 0.0
    %642 = vmatprep.subr.mxu0 0.0
    %643 = vmatpush1.msra.mxu0 0.0
    %644 = vmatprep.subr.mxu0 0.0
    %645 = vmatpush1.msra.mxu0 0.0
    %646 = vmatprep.subr.mxu0 0.0
    %647 = vmatpush1.msra.mxu0 %v614
    %648 = vmatprep.subr.mxu0 0.0
    %649 = vmatpush1.msra.mxu0 %v613
    %650 = vmatprep.subr.mxu0 0.0
    %651 = vmatpush1.msra.mxu0 %v612
    %652 = vmatprep.subr.mxu0 0.0
    %653 = vmatpush1.msra.mxu0 %v611
    %654 = vmatprep.subr.mxu0 0.0
    %655 = vmatpush2.msra.mxu0 0.0
    %656 = vmatprep.subr.mxu0 0.0
    %657 = vmatpush2.msra.mxu0 0.0
    %658 = vmatprep.subr.mxu0 0.0
    %659 = vmatpush2.msra.mxu0 0.0
    %660 = vmatprep.subr.mxu0 0.0
    %661 = vmatpush2.msra.mxu0 0.0
    %662 = vmatprep.subr.mxu0 0.0
    %663 = vmatpush2.msra.mxu0 0.0
    %664 = vmatprep.subr.mxu0 0.0
    %665 = vmatpush2.msra.mxu0 0.0
    %666 = vmatprep.subr.mxu0 0.0
    %667 = vmatpush2.msra.mxu0 0.0
    %668 = vmatprep.subr.mxu0 0.0
    %669 = vmatpush2.msra.mxu0 0.0
    %670 = vmatprep.subr.mxu0 0.0
    %671 = vmatpush2.msra.mxu0 0.0
    %672 = vmatprep.subr.mxu0 0.0
    %673 = vmatpush2.msra.mxu0 0.0
    %674 = vmatprep.subr.mxu0 0.0
    %675 = vmatpush2.msra.mxu0 0.0
    %676 = vmatprep.subr.mxu0 0.0
    %677 = vmatpush2.msra.mxu0 0.0
    %678 = vmatprep.subr.mxu0 0.0
    %679 = vmatpush2.msra.mxu0 0.0
    %680 = vmatprep.subr.mxu0 0.0
    %681 = vmatpush2.msra.mxu0 0.0
    %682 = vmatprep.subr.mxu0 0.0
    %683 = vmatpush2.msra.mxu0 0.0
    %684 = vmatprep.subr.mxu0 0.0
    %685 = vmatpush2.msra.mxu0 0.0
    %686 = vmatprep.mubr.f32.mxu0 0.0
    %687 = vmatmul.mubr.f32.gmra.mxu0 %v453
    %v688 = vpop.f32.mrf.mxu0
    %v689 = vadd.f32 %v620, %v688
    %v690 = vpop.f32.mrf.mxu0
    %691 = vdwg.mxu0
    %v693 = vsel %vm451, %v608, 0
    %v696 = vsel %vm451, %v689, 0
    %698 = vmatprep.subr.mxu0 0.0
    %699 = vmatpush1.xpose.msra.mxu0 0.0
    %700 = vmatprep.subr.mxu0 0.0
    %701 = vmatpush1.xpose.msra.mxu0 0.0
    %702 = vmatprep.subr.mxu0 0.0
    %703 = vmatpush1.xpose.msra.mxu0 0.0
    %704 = vmatprep.subr.mxu0 0.0
    %705 = vmatpush1.xpose.msra.mxu0 0.0
    %706 = vmatprep.subr.mxu0 0.0
    %707 = vmatpush1.xpose.msra.mxu0 0.0
    %708 = vmatprep.subr.mxu0 0.0
    %709 = vmatpush1.xpose.msra.mxu0 0.0
    %710 = vmatprep.subr.mxu0 0.0
    %711 = vmatpush1.xpose.msra.mxu0 0.0
    %712 = vmatprep.subr.mxu0 0.0
    %713 = vmatpush1.xpose.msra.mxu0 0.0
    %714 = vmatprep.subr.mxu0 0.0
    %715 = vmatpush1.xpose.msra.mxu0 0.0
    %716 = vmatprep.subr.mxu0 0.0
    %717 = vmatpush1.xpose.msra.mxu0 0.0
    %718 = vmatprep.subr.mxu0 0.0
    %719 = vmatpush1.xpose.msra.mxu0 0.0
    %720 = vmatprep.subr.mxu0 0.0
    %721 = vmatpush1.xpose.msra.mxu0 0.0
    %722 = vmatprep.subr.mxu0 0.0
    %723 = vmatpush1.xpose.msra.mxu0 0.0
    %724 = vmatprep.subr.mxu0 0.0
    %725 = vmatpush1.xpose.msra.mxu0 0.0
    %726 = vmatprep.subr.mxu0 0.0
    %727 = vmatpush1.xpose.msra.mxu0 0.0
    %728 = vmatprep.subr.mxu0 0.0
    %729 = vmatpush1.xpose.msra.mxu0 %v696
    %730 = vmatprep.subr.mxu0 0.0
    %731 = vmatpush2.xpose.msra.mxu0 0.0
    %732 = vmatprep.subr.mxu0 0.0
    %733 = vmatpush2.xpose.msra.mxu0 0.0
    %734 = vmatprep.subr.mxu0 0.0
    %735 = vmatpush2.xpose.msra.mxu0 0.0
    %736 = vmatprep.subr.mxu0 0.0
    %737 = vmatpush2.xpose.msra.mxu0 0.0
    %738 = vmatprep.subr.mxu0 0.0
    %739 = vmatpush2.xpose.msra.mxu0 0.0
    %740 = vmatprep.subr.mxu0 0.0
    %741 = vmatpush2.xpose.msra.mxu0 0.0
    %742 = vmatprep.subr.mxu0 0.0
    %743 = vmatpush2.xpose.msra.mxu0 0.0
    %744 = vmatprep.subr.mxu0 0.0
    %745 = vmatpush2.xpose.msra.mxu0 0.0
    %746 = vmatprep.subr.mxu0 0.0
    %747 = vmatpush2.xpose.msra.mxu0 0.0
    %748 = vmatprep.subr.mxu0 0.0
    %749 = vmatpush2.xpose.msra.mxu0 0.0
    %750 = vmatprep.subr.mxu0 0.0
    %751 = vmatpush2.xpose.msra.mxu0 0.0
    %752 = vmatprep.subr.mxu0 0.0
    %753 = vmatpush2.xpose.msra.mxu0 0.0
    %754 = vmatprep.subr.mxu0 0.0
    %755 = vmatpush2.xpose.msra.mxu0 0.0
    %756 = vmatprep.subr.mxu0 0.0
    %757 = vmatpush2.xpose.msra.mxu0 0.0
    %758 = vmatprep.subr.mxu0 0.0
    %759 = vmatpush2.xpose.msra.mxu0 0.0
    %760 = vmatprep.subr.mxu0 0.0
    %761 = vmatpush2.xpose.msra.mxu0 0.0
    %762 = vmatprep.mubr.f32.mxu0 0.0
    %763 = vmatmul.mubr.f32.gmra.mxu0 %v693
    %v764 = vpop.f32.mrf.mxu0
    %v765 = vadd.f32 0.0, %v764
    %v766 = vpop.f32.mrf.mxu0
    %767 = vdwg.mxu0
    %v768 = vsel %vm223, %v765, -inf
    %769 = vmax.xlane.f32.xlu0 %v768
    %v770 = vpop.xlane.xlu0 %769
    %v771 = vsub.f32 %v765, %v770
    %v772 = vmul.f32 %v771, 1.442695
    %v773 = vpow.pop %v772
    %v774 = vmul.f32 %v773, %v435
    %v775 = vsel %vm223, %v774, 0.0
    %776 = vadd.xlane.f32.xlu0 %v775
    %v777 = vpop.xlane.xlu0 %776
    %v778 = vmax.f32 %v777, 1e-30
    %v779 = vrcp.pop %v778
    %v780 = vmul.f32 %v774, %v779
    %781 = vrot.lane.b32.xlu0 %v689, 96
    %v782 = vpop.permute.xlu0 %781
    %v783 = vsel %vm451, %v782, 0
    %785 = vmatprep.subr.mxu0 0.0
    %786 = vmatpush1.xpose.msra.mxu0 0.0
    %787 = vmatprep.subr.mxu0 0.0
    %788 = vmatpush1.xpose.msra.mxu0 0.0
    %789 = vmatprep.subr.mxu0 0.0
    %790 = vmatpush1.xpose.msra.mxu0 0.0
    %791 = vmatprep.subr.mxu0 0.0
    %792 = vmatpush1.xpose.msra.mxu0 0.0
    %793 = vmatprep.subr.mxu0 0.0
    %794 = vmatpush1.xpose.msra.mxu0 0.0
    %795 = vmatprep.subr.mxu0 0.0
    %796 = vmatpush1.xpose.msra.mxu0 0.0
    %797 = vmatprep.subr.mxu0 0.0
    %798 = vmatpush1.xpose.msra.mxu0 0.0
    %799 = vmatprep.subr.mxu0 0.0
    %800 = vmatpush1.xpose.msra.mxu0 0.0
    %801 = vmatprep.subr.mxu0 0.0
    %802 = vmatpush1.xpose.msra.mxu0 0.0
    %803 = vmatprep.subr.mxu0 0.0
    %804 = vmatpush1.xpose.msra.mxu0 0.0
    %805 = vmatprep.subr.mxu0 0.0
    %806 = vmatpush1.xpose.msra.mxu0 0.0
    %807 = vmatprep.subr.mxu0 0.0
    %808 = vmatpush1.xpose.msra.mxu0 0.0
    %809 = vmatprep.subr.mxu0 0.0
    %810 = vmatpush1.xpose.msra.mxu0 0.0
    %811 = vmatprep.subr.mxu0 0.0
    %812 = vmatpush1.xpose.msra.mxu0 0.0
    %813 = vmatprep.subr.mxu0 0.0
    %814 = vmatpush1.xpose.msra.mxu0 0.0
    %815 = vmatprep.subr.mxu0 0.0
    %816 = vmatpush1.xpose.msra.mxu0 %v783
    %817 = vmatprep.subr.mxu0 0.0
    %818 = vmatpush2.xpose.msra.mxu0 0.0
    %819 = vmatprep.subr.mxu0 0.0
    %820 = vmatpush2.xpose.msra.mxu0 0.0
    %821 = vmatprep.subr.mxu0 0.0
    %822 = vmatpush2.xpose.msra.mxu0 0.0
    %823 = vmatprep.subr.mxu0 0.0
    %824 = vmatpush2.xpose.msra.mxu0 0.0
    %825 = vmatprep.subr.mxu0 0.0
    %826 = vmatpush2.xpose.msra.mxu0 0.0
    %827 = vmatprep.subr.mxu0 0.0
    %828 = vmatpush2.xpose.msra.mxu0 0.0
    %829 = vmatprep.subr.mxu0 0.0
    %830 = vmatpush2.xpose.msra.mxu0 0.0
    %831 = vmatprep.subr.mxu0 0.0
    %832 = vmatpush2.xpose.msra.mxu0 0.0
    %833 = vmatprep.subr.mxu0 0.0
    %834 = vmatpush2.xpose.msra.mxu0 0.0
    %835 = vmatprep.subr.mxu0 0.0
    %836 = vmatpush2.xpose.msra.mxu0 0.0
    %837 = vmatprep.subr.mxu0 0.0
    %838 = vmatpush2.xpose.msra.mxu0 0.0
    %839 = vmatprep.subr.mxu0 0.0
    %840 = vmatpush2.xpose.msra.mxu0 0.0
    %841 = vmatprep.subr.mxu0 0.0
    %842 = vmatpush2.xpose.msra.mxu0 0.0
    %843 = vmatprep.subr.mxu0 0.0
    %844 = vmatpush2.xpose.msra.mxu0 0.0
    %845 = vmatprep.subr.mxu0 0.0
    %846 = vmatpush2.xpose.msra.mxu0 0.0
    %847 = vmatprep.subr.mxu0 0.0
    %848 = vmatpush2.xpose.msra.mxu0 0.0
    %849 = vmatprep.mubr.f32.mxu0 0.0
    %850 = vmatmul.mubr.f32.gmra.mxu0 %v693
    %v851 = vpop.f32.mrf.mxu0
    %v852 = vadd.f32 0.0, %v851
    %v853 = vpop.f32.mrf.mxu0
    %854 = vdwg.mxu0
    %v855 = vsel %vm223, %v852, -inf
    %856 = vmax.xlane.f32.xlu0 %v855
    %v857 = vpop.xlane.xlu0 %856
    %v858 = vsub.f32 %v852, %v857
    %v859 = vmul.f32 %v858, 1.442695
    %v860 = vpow.pop %v859
    %v861 = vmul.f32 %v860, %v435
    %v862 = vsel %vm223, %v861, 0.0
    %863 = vadd.xlane.f32.xlu0 %v862
    %v864 = vpop.xlane.xlu0 %863
    %v865 = vmax.f32 %v864, 1e-30
    %v866 = vrcp.pop %v865
    %v867 = vmul.f32 %v861, %v866
    %868 = vrot.lane.b32.xlu0 %v689, 32
    %v869 = vpop.permute.xlu0 %868
    %v872 = vsel %vm223, %v867, 0
    %874 = vmatprep.subr.mxu0 0.0
    %875 = vmatpush1.msra.mxu0 0.0
    %876 = vmatprep.subr.mxu0 0.0
    %877 = vmatpush1.msra.mxu0 0.0
    %878 = vmatprep.subr.mxu0 0.0
    %879 = vmatpush1.msra.mxu0 0.0
    %880 = vmatprep.subr.mxu0 0.0
    %881 = vmatpush1.msra.mxu0 0.0
    %882 = vmatprep.subr.mxu0 0.0
    %883 = vmatpush1.msra.mxu0 0.0
    %884 = vmatprep.subr.mxu0 0.0
    %885 = vmatpush1.msra.mxu0 0.0
    %886 = vmatprep.subr.mxu0 0.0
    %887 = vmatpush1.msra.mxu0 0.0
    %888 = vmatprep.subr.mxu0 0.0
    %889 = vmatpush1.msra.mxu0 0.0
    %890 = vmatprep.subr.mxu0 0.0
    %891 = vmatpush1.msra.mxu0 0.0
    %892 = vmatprep.subr.mxu0 0.0
    %893 = vmatpush1.msra.mxu0 0.0
    %894 = vmatprep.subr.mxu0 0.0
    %895 = vmatpush1.msra.mxu0 0.0
    %896 = vmatprep.subr.mxu0 0.0
    %897 = vmatpush1.msra.mxu0 0.0
    %898 = vmatprep.subr.mxu0 0.0
    %899 = vmatpush1.msra.mxu0 0.0
    %900 = vmatprep.subr.mxu0 0.0
    %901 = vmatpush1.msra.mxu0 0.0
    %902 = vmatprep.subr.mxu0 0.0
    %903 = vmatpush1.msra.mxu0 0.0
    %904 = vmatprep.subr.mxu0 0.0
    %905 = vmatpush1.msra.mxu0 %v869
    %906 = vmatprep.subr.mxu0 0.0
    %907 = vmatpush2.msra.mxu0 0.0
    %908 = vmatprep.subr.mxu0 0.0
    %909 = vmatpush2.msra.mxu0 0.0
    %910 = vmatprep.subr.mxu0 0.0
    %911 = vmatpush2.msra.mxu0 0.0
    %912 = vmatprep.subr.mxu0 0.0
    %913 = vmatpush2.msra.mxu0 0.0
    %914 = vmatprep.subr.mxu0 0.0
    %915 = vmatpush2.msra.mxu0 0.0
    %916 = vmatprep.subr.mxu0 0.0
    %917 = vmatpush2.msra.mxu0 0.0
    %918 = vmatprep.subr.mxu0 0.0
    %919 = vmatpush2.msra.mxu0 0.0
    %920 = vmatprep.subr.mxu0 0.0
    %921 = vmatpush2.msra.mxu0 0.0
    %922 = vmatprep.subr.mxu0 0.0
    %923 = vmatpush2.msra.mxu0 0.0
    %924 = vmatprep.subr.mxu0 0.0
    %925 = vmatpush2.msra.mxu0 0.0
    %926 = vmatprep.subr.mxu0 0.0
    %927 = vmatpush2.msra.mxu0 0.0
    %928 = vmatprep.subr.mxu0 0.0
    %929 = vmatpush2.msra.mxu0 0.0
    %930 = vmatprep.subr.mxu0 0.0
    %931 = vmatpush2.msra.mxu0 0.0
    %932 = vmatprep.subr.mxu0 0.0
    %933 = vmatpush2.msra.mxu0 0.0
    %934 = vmatprep.subr.mxu0 0.0
    %935 = vmatpush2.msra.mxu0 0.0
    %936 = vmatprep.subr.mxu0 0.0
    %937 = vmatpush2.msra.mxu0 0.0
    %938 = vmatprep.mubr.f32.mxu0 0.0
    %939 = vmatmul.mubr.f32.gmra.mxu0 %v872
    %v940 = vpop.f32.mrf.mxu0
    %v941 = vadd.f32 0.0, %v940
    %v942 = vpop.f32.mrf.mxu0
    %943 = vdwg.mxu0
    %944 = vrot.lane.b32.xlu0 %v689, 64
    %v945 = vpop.permute.xlu0 %944
    %v948 = vsel %vm223, %v780, 0
    %950 = vmatprep.subr.mxu0 0.0
    %951 = vmatpush1.msra.mxu0 0.0
    %952 = vmatprep.subr.mxu0 0.0
    %953 = vmatpush1.msra.mxu0 0.0
    %954 = vmatprep.subr.mxu0 0.0
    %955 = vmatpush1.msra.mxu0 0.0
    %956 = vmatprep.subr.mxu0 0.0
    %957 = vmatpush1.msra.mxu0 0.0
    %958 = vmatprep.subr.mxu0 0.0
    %959 = vmatpush1.msra.mxu0 0.0
    %960 = vmatprep.subr.mxu0 0.0
    %961 = vmatpush1.msra.mxu0 0.0
    %962 = vmatprep.subr.mxu0 0.0
    %963 = vmatpush1.msra.mxu0 0.0
    %964 = vmatprep.subr.mxu0 0.0
    %965 = vmatpush1.msra.mxu0 0.0
    %966 = vmatprep.subr.mxu0 0.0
    %967 = vmatpush1.msra.mxu0 0.0
    %968 = vmatprep.subr.mxu0 0.0
    %969 = vmatpush1.msra.mxu0 0.0
    %970 = vmatprep.subr.mxu0 0.0
    %971 = vmatpush1.msra.mxu0 0.0
    %972 = vmatprep.subr.mxu0 0.0
    %973 = vmatpush1.msra.mxu0 0.0
    %974 = vmatprep.subr.mxu0 0.0
    %975 = vmatpush1.msra.mxu0 0.0
    %976 = vmatprep.subr.mxu0 0.0
    %977 = vmatpush1.msra.mxu0 0.0
    %978 = vmatprep.subr.mxu0 0.0
    %979 = vmatpush1.msra.mxu0 0.0
    %980 = vmatprep.subr.mxu0 0.0
    %981 = vmatpush1.msra.mxu0 %v945
    %982 = vmatprep.subr.mxu0 0.0
    %983 = vmatpush2.msra.mxu0 0.0
    %984 = vmatprep.subr.mxu0 0.0
    %985 = vmatpush2.msra.mxu0 0.0
    %986 = vmatprep.subr.mxu0 0.0
    %987 = vmatpush2.msra.mxu0 0.0
    %988 = vmatprep.subr.mxu0 0.0
    %989 = vmatpush2.msra.mxu0 0.0
    %990 = vmatprep.subr.mxu0 0.0
    %991 = vmatpush2.msra.mxu0 0.0
    %992 = vmatprep.subr.mxu0 0.0
    %993 = vmatpush2.msra.mxu0 0.0
    %994 = vmatprep.subr.mxu0 0.0
    %995 = vmatpush2.msra.mxu0 0.0
    %996 = vmatprep.subr.mxu0 0.0
    %997 = vmatpush2.msra.mxu0 0.0
    %998 = vmatprep.subr.mxu0 0.0
    %999 = vmatpush2.msra.mxu0 0.0
    %1000 = vmatprep.subr.mxu0 0.0
    %1001 = vmatpush2.msra.mxu0 0.0
    %1002 = vmatprep.subr.mxu0 0.0
    %1003 = vmatpush2.msra.mxu0 0.0
    %1004 = vmatprep.subr.mxu0 0.0
    %1005 = vmatpush2.msra.mxu0 0.0
    %1006 = vmatprep.subr.mxu0 0.0
    %1007 = vmatpush2.msra.mxu0 0.0
    %1008 = vmatprep.subr.mxu0 0.0
    %1009 = vmatpush2.msra.mxu0 0.0
    %1010 = vmatprep.subr.mxu0 0.0
    %1011 = vmatpush2.msra.mxu0 0.0
    %1012 = vmatprep.subr.mxu0 0.0
    %1013 = vmatpush2.msra.mxu0 0.0
    %1014 = vmatprep.mubr.f32.mxu0 0.0
    %1015 = vmatmul.mubr.f32.gmra.mxu0 %v948
    %v1016 = vpop.f32.mrf.mxu0
    %v1017 = vadd.f32 %v941, %v1016
    %v1018 = vpop.f32.mrf.mxu0
    %1019 = vdwg.mxu0
    %s1020 = scalar_lea.vmem [#allocation10], 32
    %v1021 = vld [vmem:[%s1020] sm:$0xff]
    %v1022 = vld [vmem:[%s1020 + $0x8] sm:$0xff]
    %v1023 = vld [vmem:[%s1020 + $0x10] sm:$0xff]
    %v1024 = vld [vmem:[%s1020 + $0x18] sm:$0xff]
    %s1025 = scalar_lea.vmem [#allocation11], 1
    %v1026 = vld [vmem:[%s1025] sm:$0x1]
    %v1028 = vlaneseq
    %v1029 = vshrl.u32 %v1028, 7
    %v1030 = vsub.s32 0, %v1029
    %v1031 = vrot.slane %v1026, %v1030
    %1033 = vmatprep.subr.mxu0 0.0
    %1034 = vmatpush1.msra.mxu0 0.0
    %1035 = vmatprep.subr.mxu0 0.0
    %1036 = vmatpush1.msra.mxu0 0.0
    %1037 = vmatprep.subr.mxu0 0.0
    %1038 = vmatpush1.msra.mxu0 0.0
    %1039 = vmatprep.subr.mxu0 0.0
    %1040 = vmatpush1.msra.mxu0 0.0
    %1041 = vmatprep.subr.mxu0 0.0
    %1042 = vmatpush1.msra.mxu0 0.0
    %1043 = vmatprep.subr.mxu0 0.0
    %1044 = vmatpush1.msra.mxu0 0.0
    %1045 = vmatprep.subr.mxu0 0.0
    %1046 = vmatpush1.msra.mxu0 0.0
    %1047 = vmatprep.subr.mxu0 0.0
    %1048 = vmatpush1.msra.mxu0 0.0
    %1049 = vmatprep.subr.mxu0 0.0
    %1050 = vmatpush1.msra.mxu0 0.0
    %1051 = vmatprep.subr.mxu0 0.0
    %1052 = vmatpush1.msra.mxu0 0.0
    %1053 = vmatprep.subr.mxu0 0.0
    %1054 = vmatpush1.msra.mxu0 0.0
    %1055 = vmatprep.subr.mxu0 0.0
    %1056 = vmatpush1.msra.mxu0 0.0
    %1057 = vmatprep.subr.mxu0 0.0
    %1058 = vmatpush1.msra.mxu0 %v1024
    %1059 = vmatprep.subr.mxu0 0.0
    %1060 = vmatpush1.msra.mxu0 %v1023
    %1061 = vmatprep.subr.mxu0 0.0
    %1062 = vmatpush1.msra.mxu0 %v1022
    %1063 = vmatprep.subr.mxu0 0.0
    %1064 = vmatpush1.msra.mxu0 %v1021
    %1065 = vmatprep.subr.mxu0 0.0
    %1066 = vmatpush2.msra.mxu0 0.0
    %1067 = vmatprep.subr.mxu0 0.0
    %1068 = vmatpush2.msra.mxu0 0.0
    %1069 = vmatprep.subr.mxu0 0.0
    %1070 = vmatpush2.msra.mxu0 0.0
    %1071 = vmatprep.subr.mxu0 0.0
    %1072 = vmatpush2.msra.mxu0 0.0
    %1073 = vmatprep.subr.mxu0 0.0
    %1074 = vmatpush2.msra.mxu0 0.0
    %1075 = vmatprep.subr.mxu0 0.0
    %1076 = vmatpush2.msra.mxu0 0.0
    %1077 = vmatprep.subr.mxu0 0.0
    %1078 = vmatpush2.msra.mxu0 0.0
    %1079 = vmatprep.subr.mxu0 0.0
    %1080 = vmatpush2.msra.mxu0 0.0
    %1081 = vmatprep.subr.mxu0 0.0
    %1082 = vmatpush2.msra.mxu0 0.0
    %1083 = vmatprep.subr.mxu0 0.0
    %1084 = vmatpush2.msra.mxu0 0.0
    %1085 = vmatprep.subr.mxu0 0.0
    %1086 = vmatpush2.msra.mxu0 0.0
    %1087 = vmatprep.subr.mxu0 0.0
    %1088 = vmatpush2.msra.mxu0 0.0
    %1089 = vmatprep.subr.mxu0 0.0
    %1090 = vmatpush2.msra.mxu0 0.0
    %1091 = vmatprep.subr.mxu0 0.0
    %1092 = vmatpush2.msra.mxu0 0.0
    %1093 = vmatprep.subr.mxu0 0.0
    %1094 = vmatpush2.msra.mxu0 0.0
    %1095 = vmatprep.subr.mxu0 0.0
    %1096 = vmatpush2.msra.mxu0 0.0
    %1097 = vmatprep.mubr.f32.mxu0 0.0
    %1098 = vmatmul.mubr.f32.gmra.mxu0 %v539
    %v1099 = vpop.f32.mrf.mxu0
    %v1100 = vadd.f32 %v1031, %v1099
    %v1101 = vpop.f32.mrf.mxu0
    %1102 = vdwg.mxu0
    %v1104 = vsel %vm451, %v522, 0
    %v1107 = vsel %vm451, %v1100, 0
    %1109 = vmatprep.subr.mxu0 0.0
    %1110 = vmatpush1.xpose.msra.mxu0 0.0
    %1111 = vmatprep.subr.mxu0 0.0
    %1112 = vmatpush1.xpose.msra.mxu0 0.0
    %1113 = vmatprep.subr.mxu0 0.0
    %1114 = vmatpush1.xpose.msra.mxu0 0.0
    %1115 = vmatprep.subr.mxu0 0.0
    %1116 = vmatpush1.xpose.msra.mxu0 0.0
    %1117 = vmatprep.subr.mxu0 0.0
    %1118 = vmatpush1.xpose.msra.mxu0 0.0
    %1119 = vmatprep.subr.mxu0 0.0
    %1120 = vmatpush1.xpose.msra.mxu0 0.0
    %1121 = vmatprep.subr.mxu0 0.0
    %1122 = vmatpush1.xpose.msra.mxu0 0.0
    %1123 = vmatprep.subr.mxu0 0.0
    %1124 = vmatpush1.xpose.msra.mxu0 0.0
    %1125 = vmatprep.subr.mxu0 0.0
    %1126 = vmatpush1.xpose.msra.mxu0 0.0
    %1127 = vmatprep.subr.mxu0 0.0
    %1128 = vmatpush1.xpose.msra.mxu0 0.0
    %1129 = vmatprep.subr.mxu0 0.0
    %1130 = vmatpush1.xpose.msra.mxu0 0.0
    %1131 = vmatprep.subr.mxu0 0.0
    %1132 = vmatpush1.xpose.msra.mxu0 0.0
    %1133 = vmatprep.subr.mxu0 0.0
    %1134 = vmatpush1.xpose.msra.mxu0 0.0
    %1135 = vmatprep.subr.mxu0 0.0
    %1136 = vmatpush1.xpose.msra.mxu0 0.0
    %1137 = vmatprep.subr.mxu0 0.0
    %1138 = vmatpush1.xpose.msra.mxu0 0.0
    %1139 = vmatprep.subr.mxu0 0.0
    %1140 = vmatpush1.xpose.msra.mxu0 %v1107
    %1141 = vmatprep.subr.mxu0 0.0
    %1142 = vmatpush2.xpose.msra.mxu0 0.0
    %1143 = vmatprep.subr.mxu0 0.0
    %1144 = vmatpush2.xpose.msra.mxu0 0.0
    %1145 = vmatprep.subr.mxu0 0.0
    %1146 = vmatpush2.xpose.msra.mxu0 0.0
    %1147 = vmatprep.subr.mxu0 0.0
    %1148 = vmatpush2.xpose.msra.mxu0 0.0
    %1149 = vmatprep.subr.mxu0 0.0
    %1150 = vmatpush2.xpose.msra.mxu0 0.0
    %1151 = vmatprep.subr.mxu0 0.0
    %1152 = vmatpush2.xpose.msra.mxu0 0.0
    %1153 = vmatprep.subr.mxu0 0.0
    %1154 = vmatpush2.xpose.msra.mxu0 0.0
    %1155 = vmatprep.subr.mxu0 0.0
    %1156 = vmatpush2.xpose.msra.mxu0 0.0
    %1157 = vmatprep.subr.mxu0 0.0
    %1158 = vmatpush2.xpose.msra.mxu0 0.0
    %1159 = vmatprep.subr.mxu0 0.0
    %1160 = vmatpush2.xpose.msra.mxu0 0.0
    %1161 = vmatprep.subr.mxu0 0.0
    %1162 = vmatpush2.xpose.msra.mxu0 0.0
    %1163 = vmatprep.subr.mxu0 0.0
    %1164 = vmatpush2.xpose.msra.mxu0 0.0
    %1165 = vmatprep.subr.mxu0 0.0
    %1166 = vmatpush2.xpose.msra.mxu0 0.0
    %1167 = vmatprep.subr.mxu0 0.0
    %1168 = vmatpush2.xpose.msra.mxu0 0.0
    %1169 = vmatprep.subr.mxu0 0.0
    %1170 = vmatpush2.xpose.msra.mxu0 0.0
    %1171 = vmatprep.subr.mxu0 0.0
    %1172 = vmatpush2.xpose.msra.mxu0 0.0
    %1173 = vmatprep.mubr.f32.mxu0 0.0
    %1174 = vmatmul.mubr.f32.gmra.mxu0 %v1104
    %v1175 = vpop.f32.mrf.mxu0
    %v1176 = vadd.f32 0.0, %v1175
    %v1177 = vpop.f32.mrf.mxu0
    %1178 = vdwg.mxu0
    %v1179 = vsel %vm223, %v1176, -inf
    %1180 = vmax.xlane.f32.xlu0 %v1179
    %v1181 = vpop.xlane.xlu0 %1180
    %v1182 = vsub.f32 %v1176, %v1181
    %v1183 = vmul.f32 %v1182, 1.442695
    %v1184 = vpow.pop %v1183
    %v1185 = vmul.f32 %v1184, %v437
    %v1186 = vsel %vm223, %v1185, 0.0
    %1187 = vadd.xlane.f32.xlu0 %v1186
    %v1188 = vpop.xlane.xlu0 %1187
    %v1189 = vmax.f32 %v1188, 1e-30
    %v1190 = vrcp.pop %v1189
    %v1191 = vmul.f32 %v1185, %v1190
    %1192 = vrot.lane.b32.xlu0 %v1100, 96
    %v1193 = vpop.permute.xlu0 %1192
    %v1194 = vsel %vm451, %v1193, 0
    %1196 = vmatprep.subr.mxu0 0.0
    %1197 = vmatpush1.xpose.msra.mxu0 0.0
    %1198 = vmatprep.subr.mxu0 0.0
    %1199 = vmatpush1.xpose.msra.mxu0 0.0
    %1200 = vmatprep.subr.mxu0 0.0
    %1201 = vmatpush1.xpose.msra.mxu0 0.0
    %1202 = vmatprep.subr.mxu0 0.0
    %1203 = vmatpush1.xpose.msra.mxu0 0.0
    %1204 = vmatprep.subr.mxu0 0.0
    %1205 = vmatpush1.xpose.msra.mxu0 0.0
    %1206 = vmatprep.subr.mxu0 0.0
    %1207 = vmatpush1.xpose.msra.mxu0 0.0
    %1208 = vmatprep.subr.mxu0 0.0
    %1209 = vmatpush1.xpose.msra.mxu0 0.0
    %1210 = vmatprep.subr.mxu0 0.0
    %1211 = vmatpush1.xpose.msra.mxu0 0.0
    %1212 = vmatprep.subr.mxu0 0.0
    %1213 = vmatpush1.xpose.msra.mxu0 0.0
    %1214 = vmatprep.subr.mxu0 0.0
    %1215 = vmatpush1.xpose.msra.mxu0 0.0
    %1216 = vmatprep.subr.mxu0 0.0
    %1217 = vmatpush1.xpose.msra.mxu0 0.0
    %1218 = vmatprep.subr.mxu0 0.0
    %1219 = vmatpush1.xpose.msra.mxu0 0.0
    %1220 = vmatprep.subr.mxu0 0.0
    %1221 = vmatpush1.xpose.msra.mxu0 0.0
    %1222 = vmatprep.subr.mxu0 0.0
    %1223 = vmatpush1.xpose.msra.mxu0 0.0
    %1224 = vmatprep.subr.mxu0 0.0
    %1225 = vmatpush1.xpose.msra.mxu0 0.0
    %1226 = vmatprep.subr.mxu0 0.0
    %1227 = vmatpush1.xpose.msra.mxu0 %v1194
    %1228 = vmatprep.subr.mxu0 0.0
    %1229 = vmatpush2.xpose.msra.mxu0 0.0
    %1230 = vmatprep.subr.mxu0 0.0
    %1231 = vmatpush2.xpose.msra.mxu0 0.0
    %1232 = vmatprep.subr.mxu0 0.0
    %1233 = vmatpush2.xpose.msra.mxu0 0.0
    %1234 = vmatprep.subr.mxu0 0.0
    %1235 = vmatpush2.xpose.msra.mxu0 0.0
    %1236 = vmatprep.subr.mxu0 0.0
    %1237 = vmatpush2.xpose.msra.mxu0 0.0
    %1238 = vmatprep.subr.mxu0 0.0
    %1239 = vmatpush2.xpose.msra.mxu0 0.0
    %1240 = vmatprep.subr.mxu0 0.0
    %1241 = vmatpush2.xpose.msra.mxu0 0.0
    %1242 = vmatprep.subr.mxu0 0.0
    %1243 = vmatpush2.xpose.msra.mxu0 0.0
    %1244 = vmatprep.subr.mxu0 0.0
    %1245 = vmatpush2.xpose.msra.mxu0 0.0
    %1246 = vmatprep.subr.mxu0 0.0
    %1247 = vmatpush2.xpose.msra.mxu0 0.0
    %1248 = vmatprep.subr.mxu0 0.0
    %1249 = vmatpush2.xpose.msra.mxu0 0.0
    %1250 = vmatprep.subr.mxu0 0.0
    %1251 = vmatpush2.xpose.msra.mxu0 0.0
    %1252 = vmatprep.subr.mxu0 0.0
    %1253 = vmatpush2.xpose.msra.mxu0 0.0
    %1254 = vmatprep.subr.mxu0 0.0
    %1255 = vmatpush2.xpose.msra.mxu0 0.0
    %1256 = vmatprep.subr.mxu0 0.0
    %1257 = vmatpush2.xpose.msra.mxu0 0.0
    %1258 = vmatprep.subr.mxu0 0.0
    %1259 = vmatpush2.xpose.msra.mxu0 0.0
    %1260 = vmatprep.mubr.f32.mxu0 0.0
    %1261 = vmatmul.mubr.f32.gmra.mxu0 %v1104
    %v1262 = vpop.f32.mrf.mxu0
    %v1263 = vadd.f32 0.0, %v1262
    %v1264 = vpop.f32.mrf.mxu0
    %1265 = vdwg.mxu0
    %v1266 = vsel %vm223, %v1263, -inf
    %1267 = vmax.xlane.f32.xlu0 %v1266
    %v1268 = vpop.xlane.xlu0 %1267
    %v1269 = vsub.f32 %v1263, %v1268
    %v1270 = vmul.f32 %v1269, 1.442695
    %v1271 = vpow.pop %v1270
    %v1272 = vmul.f32 %v1271, %v437
    %v1273 = vsel %vm223, %v1272, 0.0
    %1274 = vadd.xlane.f32.xlu0 %v1273
    %v1275 = vpop.xlane.xlu0 %1274
    %v1276 = vmax.f32 %v1275, 1e-30
    %v1277 = vrcp.pop %v1276
    %v1278 = vmul.f32 %v1272, %v1277
    %1279 = vrot.lane.b32.xlu0 %v1100, 32
    %v1280 = vpop.permute.xlu0 %1279
    %v1283 = vsel %vm223, %v1278, 0
    %1285 = vmatprep.subr.mxu0 0.0
    %1286 = vmatpush1.msra.mxu0 0.0
    %1287 = vmatprep.subr.mxu0 0.0
    %1288 = vmatpush1.msra.mxu0 0.0
    %1289 = vmatprep.subr.mxu0 0.0
    %1290 = vmatpush1.msra.mxu0 0.0
    %1291 = vmatprep.subr.mxu0 0.0
    %1292 = vmatpush1.msra.mxu0 0.0
    %1293 = vmatprep.subr.mxu0 0.0
    %1294 = vmatpush1.msra.mxu0 0.0
    %1295 = vmatprep.subr.mxu0 0.0
    %1296 = vmatpush1.msra.mxu0 0.0
    %1297 = vmatprep.subr.mxu0 0.0
    %1298 = vmatpush1.msra.mxu0 0.0
    %1299 = vmatprep.subr.mxu0 0.0
    %1300 = vmatpush1.msra.mxu0 0.0
    %1301 = vmatprep.subr.mxu0 0.0
    %1302 = vmatpush1.msra.mxu0 0.0
    %1303 = vmatprep.subr.mxu0 0.0
    %1304 = vmatpush1.msra.mxu0 0.0
    %1305 = vmatprep.subr.mxu0 0.0
    %1306 = vmatpush1.msra.mxu0 0.0
    %1307 = vmatprep.subr.mxu0 0.0
    %1308 = vmatpush1.msra.mxu0 0.0
    %1309 = vmatprep.subr.mxu0 0.0
    %1310 = vmatpush1.msra.mxu0 0.0
    %1311 = vmatprep.subr.mxu0 0.0
    %1312 = vmatpush1.msra.mxu0 0.0
    %1313 = vmatprep.subr.mxu0 0.0
    %1314 = vmatpush1.msra.mxu0 0.0
    %1315 = vmatprep.subr.mxu0 0.0
    %1316 = vmatpush1.msra.mxu0 %v1280
    %1317 = vmatprep.subr.mxu0 0.0
    %1318 = vmatpush2.msra.mxu0 0.0
    %1319 = vmatprep.subr.mxu0 0.0
    %1320 = vmatpush2.msra.mxu0 0.0
    %1321 = vmatprep.subr.mxu0 0.0
    %1322 = vmatpush2.msra.mxu0 0.0
    %1323 = vmatprep.subr.mxu0 0.0
    %1324 = vmatpush2.msra.mxu0 0.0
    %1325 = vmatprep.subr.mxu0 0.0
    %1326 = vmatpush2.msra.mxu0 0.0
    %1327 = vmatprep.subr.mxu0 0.0
    %1328 = vmatpush2.msra.mxu0 0.0
    %1329 = vmatprep.subr.mxu0 0.0
    %1330 = vmatpush2.msra.mxu0 0.0
    %1331 = vmatprep.subr.mxu0 0.0
    %1332 = vmatpush2.msra.mxu0 0.0
    %1333 = vmatprep.subr.mxu0 0.0
    %1334 = vmatpush2.msra.mxu0 0.0
    %1335 = vmatprep.subr.mxu0 0.0
    %1336 = vmatpush2.msra.mxu0 0.0
    %1337 = vmatprep.subr.mxu0 0.0
    %1338 = vmatpush2.msra.mxu0 0.0
    %1339 = vmatprep.subr.mxu0 0.0
    %1340 = vmatpush2.msra.mxu0 0.0
    %1341 = vmatprep.subr.mxu0 0.0
    %1342 = vmatpush2.msra.mxu0 0.0
    %1343 = vmatprep.subr.mxu0 0.0
    %1344 = vmatpush2.msra.mxu0 0.0
    %1345 = vmatprep.subr.mxu0 0.0
    %1346 = vmatpush2.msra.mxu0 0.0
    %1347 = vmatprep.subr.mxu0 0.0
    %1348 = vmatpush2.msra.mxu0 0.0
    %1349 = vmatprep.mubr.f32.mxu0 0.0
    %1350 = vmatmul.mubr.f32.gmra.mxu0 %v1283
    %v1351 = vpop.f32.mrf.mxu0
    %v1352 = vadd.f32 0.0, %v1351
    %v1353 = vpop.f32.mrf.mxu0
    %1354 = vdwg.mxu0
    %1355 = vrot.lane.b32.xlu0 %v1100, 64
    %v1356 = vpop.permute.xlu0 %1355
    %v1359 = vsel %vm223, %v1191, 0
    %1361 = vmatprep.subr.mxu0 0.0
    %1362 = vmatpush1.msra.mxu0 0.0
    %1363 = vmatprep.subr.mxu0 0.0
    %1364 = vmatpush1.msra.mxu0 0.0
    %1365 = vmatprep.subr.mxu0 0.0
    %1366 = vmatpush1.msra.mxu0 0.0
    %1367 = vmatprep.subr.mxu0 0.0
    %1368 = vmatpush1.msra.mxu0 0.0
    %1369 = vmatprep.subr.mxu0 0.0
    %1370 = vmatpush1.msra.mxu0 0.0
    %1371 = vmatprep.subr.mxu0 0.0
    %1372 = vmatpush1.msra.mxu0 0.0
    %1373 = vmatprep.subr.mxu0 0.0
    %1374 = vmatpush1.msra.mxu0 0.0
    %1375 = vmatprep.subr.mxu0 0.0
    %1376 = vmatpush1.msra.mxu0 0.0
    %1377 = vmatprep.subr.mxu0 0.0
    %1378 = vmatpush1.msra.mxu0 0.0
    %1379 = vmatprep.subr.mxu0 0.0
    %1380 = vmatpush1.msra.mxu0 0.0
    %1381 = vmatprep.subr.mxu0 0.0
    %1382 = vmatpush1.msra.mxu0 0.0
    %1383 = vmatprep.subr.mxu0 0.0
    %1384 = vmatpush1.msra.mxu0 0.0
    %1385 = vmatprep.subr.mxu0 0.0
    %1386 = vmatpush1.msra.mxu0 0.0
    %1387 = vmatprep.subr.mxu0 0.0
    %1388 = vmatpush1.msra.mxu0 0.0
    %1389 = vmatprep.subr.mxu0 0.0
    %1390 = vmatpush1.msra.mxu0 0.0
    %1391 = vmatprep.subr.mxu0 0.0
    %1392 = vmatpush1.msra.mxu0 %v1356
    %1393 = vmatprep.subr.mxu0 0.0
    %1394 = vmatpush2.msra.mxu0 0.0
    %1395 = vmatprep.subr.mxu0 0.0
    %1396 = vmatpush2.msra.mxu0 0.0
    %1397 = vmatprep.subr.mxu0 0.0
    %1398 = vmatpush2.msra.mxu0 0.0
    %1399 = vmatprep.subr.mxu0 0.0
    %1400 = vmatpush2.msra.mxu0 0.0
    %1401 = vmatprep.subr.mxu0 0.0
    %1402 = vmatpush2.msra.mxu0 0.0
    %1403 = vmatprep.subr.mxu0 0.0
    %1404 = vmatpush2.msra.mxu0 0.0
    %1405 = vmatprep.subr.mxu0 0.0
    %1406 = vmatpush2.msra.mxu0 0.0
    %1407 = vmatprep.subr.mxu0 0.0
    %1408 = vmatpush2.msra.mxu0 0.0
    %1409 = vmatprep.subr.mxu0 0.0
    %1410 = vmatpush2.msra.mxu0 0.0
    %1411 = vmatprep.subr.mxu0 0.0
    %1412 = vmatpush2.msra.mxu0 0.0
    %1413 = vmatprep.subr.mxu0 0.0
    %1414 = vmatpush2.msra.mxu0 0.0
    %1415 = vmatprep.subr.mxu0 0.0
    %1416 = vmatpush2.msra.mxu0 0.0
    %1417 = vmatprep.subr.mxu0 0.0
    %1418 = vmatpush2.msra.mxu0 0.0
    %1419 = vmatprep.subr.mxu0 0.0
    %1420 = vmatpush2.msra.mxu0 0.0
    %1421 = vmatprep.subr.mxu0 0.0
    %1422 = vmatpush2.msra.mxu0 0.0
    %1423 = vmatprep.subr.mxu0 0.0
    %1424 = vmatpush2.msra.mxu0 0.0
    %1425 = vmatprep.mubr.f32.mxu0 0.0
    %1426 = vmatmul.mubr.f32.gmra.mxu0 %v1359
    %v1427 = vpop.f32.mrf.mxu0
    %v1428 = vadd.f32 %v1352, %v1427
    %v1429 = vpop.f32.mrf.mxu0
    %1430 = vdwg.mxu0
    %s1431 = scalar_lea.vmem [#allocation10], 64
    %v1432 = vld [vmem:[%s1431] sm:$0xff]
    %v1433 = vld [vmem:[%s1431 + $0x8] sm:$0xff]
    %v1434 = vld [vmem:[%s1431 + $0x10] sm:$0xff]
    %v1435 = vld [vmem:[%s1431 + $0x18] sm:$0xff]
    %s1436 = scalar_lea.vmem [#allocation11], 2
    %v1437 = vld [vmem:[%s1436] sm:$0x1]
    %v1439 = vlaneseq
    %v1440 = vshrl.u32 %v1439, 7
    %v1441 = vsub.s32 0, %v1440
    %v1442 = vrot.slane %v1437, %v1441
    %1444 = vmatprep.subr.mxu0 0.0
    %1445 = vmatpush1.msra.mxu0 0.0
    %1446 = vmatprep.subr.mxu0 0.0
    %1447 = vmatpush1.msra.mxu0 0.0
    %1448 = vmatprep.subr.mxu0 0.0
    %1449 = vmatpush1.msra.mxu0 0.0
    %1450 = vmatprep.subr.mxu0 0.0
    %1451 = vmatpush1.msra.mxu0 0.0
    %1452 = vmatprep.subr.mxu0 0.0
    %1453 = vmatpush1.msra.mxu0 0.0
    %1454 = vmatprep.subr.mxu0 0.0
    %1455 = vmatpush1.msra.mxu0 0.0
    %1456 = vmatprep.subr.mxu0 0.0
    %1457 = vmatpush1.msra.mxu0 0.0
    %1458 = vmatprep.subr.mxu0 0.0
    %1459 = vmatpush1.msra.mxu0 0.0
    %1460 = vmatprep.subr.mxu0 0.0
    %1461 = vmatpush1.msra.mxu0 0.0
    %1462 = vmatprep.subr.mxu0 0.0
    %1463 = vmatpush1.msra.mxu0 0.0
    %1464 = vmatprep.subr.mxu0 0.0
    %1465 = vmatpush1.msra.mxu0 0.0
    %1466 = vmatprep.subr.mxu0 0.0
    %1467 = vmatpush1.msra.mxu0 0.0
    %1468 = vmatprep.subr.mxu0 0.0
    %1469 = vmatpush1.msra.mxu0 %v1435
    %1470 = vmatprep.subr.mxu0 0.0
    %1471 = vmatpush1.msra.mxu0 %v1434
    %1472 = vmatprep.subr.mxu0 0.0
    %1473 = vmatpush1.msra.mxu0 %v1433
    %1474 = vmatprep.subr.mxu0 0.0
    %1475 = vmatpush1.msra.mxu0 %v1432
    %1476 = vmatprep.subr.mxu0 0.0
    %1477 = vmatpush2.msra.mxu0 0.0
    %1478 = vmatprep.subr.mxu0 0.0
    %1479 = vmatpush2.msra.mxu0 0.0
    %1480 = vmatprep.subr.mxu0 0.0
    %1481 = vmatpush2.msra.mxu0 0.0
    %1482 = vmatprep.subr.mxu0 0.0
    %1483 = vmatpush2.msra.mxu0 0.0
    %1484 = vmatprep.subr.mxu0 0.0
    %1485 = vmatpush2.msra.mxu0 0.0
    %1486 = vmatprep.subr.mxu0 0.0
    %1487 = vmatpush2.msra.mxu0 0.0
    %1488 = vmatprep.subr.mxu0 0.0
    %1489 = vmatpush2.msra.mxu0 0.0
    %1490 = vmatprep.subr.mxu0 0.0
    %1491 = vmatpush2.msra.mxu0 0.0
    %1492 = vmatprep.subr.mxu0 0.0
    %1493 = vmatpush2.msra.mxu0 0.0
    %1494 = vmatprep.subr.mxu0 0.0
    %1495 = vmatpush2.msra.mxu0 0.0
    %1496 = vmatprep.subr.mxu0 0.0
    %1497 = vmatpush2.msra.mxu0 0.0
    %1498 = vmatprep.subr.mxu0 0.0
    %1499 = vmatpush2.msra.mxu0 0.0
    %1500 = vmatprep.subr.mxu0 0.0
    %1501 = vmatpush2.msra.mxu0 0.0
    %1502 = vmatprep.subr.mxu0 0.0
    %1503 = vmatpush2.msra.mxu0 0.0
    %1504 = vmatprep.subr.mxu0 0.0
    %1505 = vmatpush2.msra.mxu0 0.0
    %1506 = vmatprep.subr.mxu0 0.0
    %1507 = vmatpush2.msra.mxu0 0.0
    %1508 = vmatprep.mubr.f32.mxu0 0.0
    %1509 = vmatmul.mubr.f32.gmra.mxu0 %v453
    %v1510 = vpop.f32.mrf.mxu0
    %v1511 = vadd.f32 %v1442, %v1510
    %v1512 = vpop.f32.mrf.mxu0
    %1513 = vdwg.mxu0
    %v1515 = vsel %vm451, %v1511, 0
    %1517 = vmatprep.subr.mxu0 0.0
    %1518 = vmatpush1.xpose.msra.mxu0 0.0
    %1519 = vmatprep.subr.mxu0 0.0
    %1520 = vmatpush1.xpose.msra.mxu0 0.0
    %1521 = vmatprep.subr.mxu0 0.0
    %1522 = vmatpush1.xpose.msra.mxu0 0.0
    %1523 = vmatprep.subr.mxu0 0.0
    %1524 = vmatpush1.xpose.msra.mxu0 0.0
    %1525 = vmatprep.subr.mxu0 0.0
    %1526 = vmatpush1.xpose.msra.mxu0 0.0
    %1527 = vmatprep.subr.mxu0 0.0
    %1528 = vmatpush1.xpose.msra.mxu0 0.0
    %1529 = vmatprep.subr.mxu0 0.0
    %1530 = vmatpush1.xpose.msra.mxu0 0.0
    %1531 = vmatprep.subr.mxu0 0.0
    %1532 = vmatpush1.xpose.msra.mxu0 0.0
    %1533 = vmatprep.subr.mxu0 0.0
    %1534 = vmatpush1.xpose.msra.mxu0 0.0
    %1535 = vmatprep.subr.mxu0 0.0
    %1536 = vmatpush1.xpose.msra.mxu0 0.0
    %1537 = vmatprep.subr.mxu0 0.0
    %1538 = vmatpush1.xpose.msra.mxu0 0.0
    %1539 = vmatprep.subr.mxu0 0.0
    %1540 = vmatpush1.xpose.msra.mxu0 0.0
    %1541 = vmatprep.subr.mxu0 0.0
    %1542 = vmatpush1.xpose.msra.mxu0 0.0
    %1543 = vmatprep.subr.mxu0 0.0
    %1544 = vmatpush1.xpose.msra.mxu0 0.0
    %1545 = vmatprep.subr.mxu0 0.0
    %1546 = vmatpush1.xpose.msra.mxu0 0.0
    %1547 = vmatprep.subr.mxu0 0.0
    %1548 = vmatpush1.xpose.msra.mxu0 %v1515
    %1549 = vmatprep.subr.mxu0 0.0
    %1550 = vmatpush2.xpose.msra.mxu0 0.0
    %1551 = vmatprep.subr.mxu0 0.0
    %1552 = vmatpush2.xpose.msra.mxu0 0.0
    %1553 = vmatprep.subr.mxu0 0.0
    %1554 = vmatpush2.xpose.msra.mxu0 0.0
    %1555 = vmatprep.subr.mxu0 0.0
    %1556 = vmatpush2.xpose.msra.mxu0 0.0
    %1557 = vmatprep.subr.mxu0 0.0
    %1558 = vmatpush2.xpose.msra.mxu0 0.0
    %1559 = vmatprep.subr.mxu0 0.0
    %1560 = vmatpush2.xpose.msra.mxu0 0.0
    %1561 = vmatprep.subr.mxu0 0.0
    %1562 = vmatpush2.xpose.msra.mxu0 0.0
    %1563 = vmatprep.subr.mxu0 0.0
    %1564 = vmatpush2.xpose.msra.mxu0 0.0
    %1565 = vmatprep.subr.mxu0 0.0
    %1566 = vmatpush2.xpose.msra.mxu0 0.0
    %1567 = vmatprep.subr.mxu0 0.0
    %1568 = vmatpush2.xpose.msra.mxu0 0.0
    %1569 = vmatprep.subr.mxu0 0.0
    %1570 = vmatpush2.xpose.msra.mxu0 0.0
    %1571 = vmatprep.subr.mxu0 0.0
    %1572 = vmatpush2.xpose.msra.mxu0 0.0
    %1573 = vmatprep.subr.mxu0 0.0
    %1574 = vmatpush2.xpose.msra.mxu0 0.0
    %1575 = vmatprep.subr.mxu0 0.0
    %1576 = vmatpush2.xpose.msra.mxu0 0.0
    %1577 = vmatprep.subr.mxu0 0.0
    %1578 = vmatpush2.xpose.msra.mxu0 0.0
    %1579 = vmatprep.subr.mxu0 0.0
    %1580 = vmatpush2.xpose.msra.mxu0 0.0
    %1581 = vmatprep.mubr.f32.mxu0 0.0
    %1582 = vmatmul.mubr.f32.gmra.mxu0 %v1104
    %v1583 = vpop.f32.mrf.mxu0
    %v1584 = vadd.f32 0.0, %v1583
    %v1585 = vpop.f32.mrf.mxu0
    %1586 = vdwg.mxu0
    %v1587 = vsel %vm223, %v1584, -inf
    %1588 = vmax.xlane.f32.xlu0 %v1587
    %v1589 = vpop.xlane.xlu0 %1588
    %v1590 = vsub.f32 %v1584, %v1589
    %v1591 = vmul.f32 %v1590, 1.442695
    %v1592 = vpow.pop %v1591
    %v1593 = vmul.f32 %v1592, %v439
    %v1594 = vsel %vm223, %v1593, 0.0
    %1595 = vadd.xlane.f32.xlu0 %v1594
    %v1596 = vpop.xlane.xlu0 %1595
    %v1597 = vmax.f32 %v1596, 1e-30
    %v1598 = vrcp.pop %v1597
    %v1599 = vmul.f32 %v1593, %v1598
    %1600 = vrot.lane.b32.xlu0 %v1511, 96
    %v1601 = vpop.permute.xlu0 %1600
    %v1602 = vsel %vm451, %v1601, 0
    %1604 = vmatprep.subr.mxu0 0.0
    %1605 = vmatpush1.xpose.msra.mxu0 0.0
    %1606 = vmatprep.subr.mxu0 0.0
    %1607 = vmatpush1.xpose.msra.mxu0 0.0
    %1608 = vmatprep.subr.mxu0 0.0
    %1609 = vmatpush1.xpose.msra.mxu0 0.0
    %1610 = vmatprep.subr.mxu0 0.0
    %1611 = vmatpush1.xpose.msra.mxu0 0.0
    %1612 = vmatprep.subr.mxu0 0.0
    %1613 = vmatpush1.xpose.msra.mxu0 0.0
    %1614 = vmatprep.subr.mxu0 0.0
    %1615 = vmatpush1.xpose.msra.mxu0 0.0
    %1616 = vmatprep.subr.mxu0 0.0
    %1617 = vmatpush1.xpose.msra.mxu0 0.0
    %1618 = vmatprep.subr.mxu0 0.0
    %1619 = vmatpush1.xpose.msra.mxu0 0.0
    %1620 = vmatprep.subr.mxu0 0.0
    %1621 = vmatpush1.xpose.msra.mxu0 0.0
    %1622 = vmatprep.subr.mxu0 0.0
    %1623 = vmatpush1.xpose.msra.mxu0 0.0
    %1624 = vmatprep.subr.mxu0 0.0
    %1625 = vmatpush1.xpose.msra.mxu0 0.0
    %1626 = vmatprep.subr.mxu0 0.0
    %1627 = vmatpush1.xpose.msra.mxu0 0.0
    %1628 = vmatprep.subr.mxu0 0.0
    %1629 = vmatpush1.xpose.msra.mxu0 0.0
    %1630 = vmatprep.subr.mxu0 0.0
    %1631 = vmatpush1.xpose.msra.mxu0 0.0
    %1632 = vmatprep.subr.mxu0 0.0
    %1633 = vmatpush1.xpose.msra.mxu0 0.0
    %1634 = vmatprep.subr.mxu0 0.0
    %1635 = vmatpush1.xpose.msra.mxu0 %v1602
    %1636 = vmatprep.subr.mxu0 0.0
    %1637 = vmatpush2.xpose.msra.mxu0 0.0
    %1638 = vmatprep.subr.mxu0 0.0
    %1639 = vmatpush2.xpose.msra.mxu0 0.0
    %1640 = vmatprep.subr.mxu0 0.0
    %1641 = vmatpush2.xpose.msra.mxu0 0.0
    %1642 = vmatprep.subr.mxu0 0.0
    %1643 = vmatpush2.xpose.msra.mxu0 0.0
    %1644 = vmatprep.subr.mxu0 0.0
    %1645 = vmatpush2.xpose.msra.mxu0 0.0
    %1646 = vmatprep.subr.mxu0 0.0
    %1647 = vmatpush2.xpose.msra.mxu0 0.0
    %1648 = vmatprep.subr.mxu0 0.0
    %1649 = vmatpush2.xpose.msra.mxu0 0.0
    %1650 = vmatprep.subr.mxu0 0.0
    %1651 = vmatpush2.xpose.msra.mxu0 0.0
    %1652 = vmatprep.subr.mxu0 0.0
    %1653 = vmatpush2.xpose.msra.mxu0 0.0
    %1654 = vmatprep.subr.mxu0 0.0
    %1655 = vmatpush2.xpose.msra.mxu0 0.0
    %1656 = vmatprep.subr.mxu0 0.0
    %1657 = vmatpush2.xpose.msra.mxu0 0.0
    %1658 = vmatprep.subr.mxu0 0.0
    %1659 = vmatpush2.xpose.msra.mxu0 0.0
    %1660 = vmatprep.subr.mxu0 0.0
    %1661 = vmatpush2.xpose.msra.mxu0 0.0
    %1662 = vmatprep.subr.mxu0 0.0
    %1663 = vmatpush2.xpose.msra.mxu0 0.0
    %1664 = vmatprep.subr.mxu0 0.0
    %1665 = vmatpush2.xpose.msra.mxu0 0.0
    %1666 = vmatprep.subr.mxu0 0.0
    %1667 = vmatpush2.xpose.msra.mxu0 0.0
    %1668 = vmatprep.mubr.f32.mxu0 0.0
    %1669 = vmatmul.mubr.f32.gmra.mxu0 %v1104
    %v1670 = vpop.f32.mrf.mxu0
    %v1671 = vadd.f32 0.0, %v1670
    %v1672 = vpop.f32.mrf.mxu0
    %1673 = vdwg.mxu0
    %v1674 = vsel %vm223, %v1671, -inf
    %1675 = vmax.xlane.f32.xlu0 %v1674
    %v1676 = vpop.xlane.xlu0 %1675
    %v1677 = vsub.f32 %v1671, %v1676
    %v1678 = vmul.f32 %v1677, 1.442695
    %v1679 = vpow.pop %v1678
    %v1680 = vmul.f32 %v1679, %v439
    %v1681 = vsel %vm223, %v1680, 0.0
    %1682 = vadd.xlane.f32.xlu0 %v1681
    %v1683 = vpop.xlane.xlu0 %1682
    %v1684 = vmax.f32 %v1683, 1e-30
    %v1685 = vrcp.pop %v1684
    %v1686 = vmul.f32 %v1680, %v1685
    %1687 = vrot.lane.b32.xlu0 %v1511, 32
    %v1688 = vpop.permute.xlu0 %1687
    %v1691 = vsel %vm223, %v1686, 0
    %1693 = vmatprep.subr.mxu0 0.0
    %1694 = vmatpush1.msra.mxu0 0.0
    %1695 = vmatprep.subr.mxu0 0.0
    %1696 = vmatpush1.msra.mxu0 0.0
    %1697 = vmatprep.subr.mxu0 0.0
    %1698 = vmatpush1.msra.mxu0 0.0
    %1699 = vmatprep.subr.mxu0 0.0
    %1700 = vmatpush1.msra.mxu0 0.0
    %1701 = vmatprep.subr.mxu0 0.0
    %1702 = vmatpush1.msra.mxu0 0.0
    %1703 = vmatprep.subr.mxu0 0.0
    %1704 = vmatpush1.msra.mxu0 0.0
    %1705 = vmatprep.subr.mxu0 0.0
    %1706 = vmatpush1.msra.mxu0 0.0
    %1707 = vmatprep.subr.mxu0 0.0
    %1708 = vmatpush1.msra.mxu0 0.0
    %1709 = vmatprep.subr.mxu0 0.0
    %1710 = vmatpush1.msra.mxu0 0.0
    %1711 = vmatprep.subr.mxu0 0.0
    %1712 = vmatpush1.msra.mxu0 0.0
    %1713 = vmatprep.subr.mxu0 0.0
    %1714 = vmatpush1.msra.mxu0 0.0
    %1715 = vmatprep.subr.mxu0 0.0
    %1716 = vmatpush1.msra.mxu0 0.0
    %1717 = vmatprep.subr.mxu0 0.0
    %1718 = vmatpush1.msra.mxu0 0.0
    %1719 = vmatprep.subr.mxu0 0.0
    %1720 = vmatpush1.msra.mxu0 0.0
    %1721 = vmatprep.subr.mxu0 0.0
    %1722 = vmatpush1.msra.mxu0 0.0
    %1723 = vmatprep.subr.mxu0 0.0
    %1724 = vmatpush1.msra.mxu0 %v1688
    %1725 = vmatprep.subr.mxu0 0.0
    %1726 = vmatpush2.msra.mxu0 0.0
    %1727 = vmatprep.subr.mxu0 0.0
    %1728 = vmatpush2.msra.mxu0 0.0
    %1729 = vmatprep.subr.mxu0 0.0
    %1730 = vmatpush2.msra.mxu0 0.0
    %1731 = vmatprep.subr.mxu0 0.0
    %1732 = vmatpush2.msra.mxu0 0.0
    %1733 = vmatprep.subr.mxu0 0.0
    %1734 = vmatpush2.msra.mxu0 0.0
    %1735 = vmatprep.subr.mxu0 0.0
    %1736 = vmatpush2.msra.mxu0 0.0
    %1737 = vmatprep.subr.mxu0 0.0
    %1738 = vmatpush2.msra.mxu0 0.0
    %1739 = vmatprep.subr.mxu0 0.0
    %1740 = vmatpush2.msra.mxu0 0.0
    %1741 = vmatprep.subr.mxu0 0.0
    %1742 = vmatpush2.msra.mxu0 0.0
    %1743 = vmatprep.subr.mxu0 0.0
    %1744 = vmatpush2.msra.mxu0 0.0
    %1745 = vmatprep.subr.mxu0 0.0
    %1746 = vmatpush2.msra.mxu0 0.0
    %1747 = vmatprep.subr.mxu0 0.0
    %1748 = vmatpush2.msra.mxu0 0.0
    %1749 = vmatprep.subr.mxu0 0.0
    %1750 = vmatpush2.msra.mxu0 0.0
    %1751 = vmatprep.subr.mxu0 0.0
    %1752 = vmatpush2.msra.mxu0 0.0
    %1753 = vmatprep.subr.mxu0 0.0
    %1754 = vmatpush2.msra.mxu0 0.0
    %1755 = vmatprep.subr.mxu0 0.0
    %1756 = vmatpush2.msra.mxu0 0.0
    %1757 = vmatprep.mubr.f32.mxu0 0.0
    %1758 = vmatmul.mubr.f32.gmra.mxu0 %v1691
    %v1759 = vpop.f32.mrf.mxu0
    %v1760 = vadd.f32 0.0, %v1759
    %v1761 = vpop.f32.mrf.mxu0
    %1762 = vdwg.mxu0
    %1763 = vrot.lane.b32.xlu0 %v1511, 64
    %v1764 = vpop.permute.xlu0 %1763
    %v1767 = vsel %vm223, %v1599, 0
    %1769 = vmatprep.subr.mxu0 0.0
    %1770 = vmatpush1.msra.mxu0 0.0
    %1771 = vmatprep.subr.mxu0 0.0
    %1772 = vmatpush1.msra.mxu0 0.0
    %1773 = vmatprep.subr.mxu0 0.0
    %1774 = vmatpush1.msra.mxu0 0.0
    %1775 = vmatprep.subr.mxu0 0.0
    %1776 = vmatpush1.msra.mxu0 0.0
    %1777 = vmatprep.subr.mxu0 0.0
    %1778 = vmatpush1.msra.mxu0 0.0
    %1779 = vmatprep.subr.mxu0 0.0
    %1780 = vmatpush1.msra.mxu0 0.0
    %1781 = vmatprep.subr.mxu0 0.0
    %1782 = vmatpush1.msra.mxu0 0.0
    %1783 = vmatprep.subr.mxu0 0.0
    %1784 = vmatpush1.msra.mxu0 0.0
    %1785 = vmatprep.subr.mxu0 0.0
    %1786 = vmatpush1.msra.mxu0 0.0
    %1787 = vmatprep.subr.mxu0 0.0
    %1788 = vmatpush1.msra.mxu0 0.0
    %1789 = vmatprep.subr.mxu0 0.0
    %1790 = vmatpush1.msra.mxu0 0.0
    %1791 = vmatprep.subr.mxu0 0.0
    %1792 = vmatpush1.msra.mxu0 0.0
    %1793 = vmatprep.subr.mxu0 0.0
    %1794 = vmatpush1.msra.mxu0 0.0
    %1795 = vmatprep.subr.mxu0 0.0
    %1796 = vmatpush1.msra.mxu0 0.0
    %1797 = vmatprep.subr.mxu0 0.0
    %1798 = vmatpush1.msra.mxu0 0.0
    %1799 = vmatprep.subr.mxu0 0.0
    %1800 = vmatpush1.msra.mxu0 %v1764
    %1801 = vmatprep.subr.mxu0 0.0
    %1802 = vmatpush2.msra.mxu0 0.0
    %1803 = vmatprep.subr.mxu0 0.0
    %1804 = vmatpush2.msra.mxu0 0.0
    %1805 = vmatprep.subr.mxu0 0.0
    %1806 = vmatpush2.msra.mxu0 0.0
    %1807 = vmatprep.subr.mxu0 0.0
    %1808 = vmatpush2.msra.mxu0 0.0
    %1809 = vmatprep.subr.mxu0 0.0
    %1810 = vmatpush2.msra.mxu0 0.0
    %1811 = vmatprep.subr.mxu0 0.0
    %1812 = vmatpush2.msra.mxu0 0.0
    %1813 = vmatprep.subr.mxu0 0.0
    %1814 = vmatpush2.msra.mxu0 0.0
    %1815 = vmatprep.subr.mxu0 0.0
    %1816 = vmatpush2.msra.mxu0 0.0
    %1817 = vmatprep.subr.mxu0 0.0
    %1818 = vmatpush2.msra.mxu0 0.0
    %1819 = vmatprep.subr.mxu0 0.0
    %1820 = vmatpush2.msra.mxu0 0.0
    %1821 = vmatprep.subr.mxu0 0.0
    %1822 = vmatpush2.msra.mxu0 0.0
    %1823 = vmatprep.subr.mxu0 0.0
    %1824 = vmatpush2.msra.mxu0 0.0
    %1825 = vmatprep.subr.mxu0 0.0
    %1826 = vmatpush2.msra.mxu0 0.0
    %1827 = vmatprep.subr.mxu0 0.0
    %1828 = vmatpush2.msra.mxu0 0.0
    %1829 = vmatprep.subr.mxu0 0.0
    %1830 = vmatpush2.msra.mxu0 0.0
    %1831 = vmatprep.subr.mxu0 0.0
    %1832 = vmatpush2.msra.mxu0 0.0
    %1833 = vmatprep.mubr.f32.mxu0 0.0
    %1834 = vmatmul.mubr.f32.gmra.mxu0 %v1767
    %v1835 = vpop.f32.mrf.mxu0
    %v1836 = vadd.f32 %v1760, %v1835
    %v1837 = vpop.f32.mrf.mxu0
    %1838 = vdwg.mxu0
    %v1839 = vadd.f32 %v1428, %v1836
    %v1840 = vld [vmem:[#allocation13] sm:$0xff]
    %v1841 = vld [vmem:[#allocation13 + $0x8] sm:$0xff]
    %v1842 = vld [vmem:[#allocation13 + $0x10] sm:$0xff]
    %v1843 = vld [vmem:[#allocation13 + $0x18] sm:$0xff]
    %v1844 = vld [vmem:[#allocation14] sm:$0x1]
    %v1846 = vlaneseq
    %v1847 = vshrl.u32 %v1846, 7
    %v1848 = vsub.s32 0, %v1847
    %v1849 = vrot.slane %v1844, %v1848
    %v1852 = vsel %vm451, %v1839, 0
    %1854 = vmatprep.subr.mxu0 0.0
    %1855 = vmatpush1.msra.mxu0 0.0
    %1856 = vmatprep.subr.mxu0 0.0
    %1857 = vmatpush1.msra.mxu0 0.0
    %1858 = vmatprep.subr.mxu0 0.0
    %1859 = vmatpush1.msra.mxu0 0.0
    %1860 = vmatprep.subr.mxu0 0.0
    %1861 = vmatpush1.msra.mxu0 0.0
    %1862 = vmatprep.subr.mxu0 0.0
    %1863 = vmatpush1.msra.mxu0 0.0
    %1864 = vmatprep.subr.mxu0 0.0
    %1865 = vmatpush1.msra.mxu0 0.0
    %1866 = vmatprep.subr.mxu0 0.0
    %1867 = vmatpush1.msra.mxu0 0.0
    %1868 = vmatprep.subr.mxu0 0.0
    %1869 = vmatpush1.msra.mxu0 0.0
    %1870 = vmatprep.subr.mxu0 0.0
    %1871 = vmatpush1.msra.mxu0 0.0
    %1872 = vmatprep.subr.mxu0 0.0
    %1873 = vmatpush1.msra.mxu0 0.0
    %1874 = vmatprep.subr.mxu0 0.0
    %1875 = vmatpush1.msra.mxu0 0.0
    %1876 = vmatprep.subr.mxu0 0.0
    %1877 = vmatpush1.msra.mxu0 0.0
    %1878 = vmatprep.subr.mxu0 0.0
    %1879 = vmatpush1.msra.mxu0 %v1843
    %1880 = vmatprep.subr.mxu0 0.0
    %1881 = vmatpush1.msra.mxu0 %v1842
    %1882 = vmatprep.subr.mxu0 0.0
    %1883 = vmatpush1.msra.mxu0 %v1841
    %1884 = vmatprep.subr.mxu0 0.0
    %1885 = vmatpush1.msra.mxu0 %v1840
    %1886 = vmatprep.subr.mxu0 0.0
    %1887 = vmatpush2.msra.mxu0 0.0
    %1888 = vmatprep.subr.mxu0 0.0
    %1889 = vmatpush2.msra.mxu0 0.0
    %1890 = vmatprep.subr.mxu0 0.0
    %1891 = vmatpush2.msra.mxu0 0.0
    %1892 = vmatprep.subr.mxu0 0.0
    %1893 = vmatpush2.msra.mxu0 0.0
    %1894 = vmatprep.subr.mxu0 0.0
    %1895 = vmatpush2.msra.mxu0 0.0
    %1896 = vmatprep.subr.mxu0 0.0
    %1897 = vmatpush2.msra.mxu0 0.0
    %1898 = vmatprep.subr.mxu0 0.0
    %1899 = vmatpush2.msra.mxu0 0.0
    %1900 = vmatprep.subr.mxu0 0.0
    %1901 = vmatpush2.msra.mxu0 0.0
    %1902 = vmatprep.subr.mxu0 0.0
    %1903 = vmatpush2.msra.mxu0 0.0
    %1904 = vmatprep.subr.mxu0 0.0
    %1905 = vmatpush2.msra.mxu0 0.0
    %1906 = vmatprep.subr.mxu0 0.0
    %1907 = vmatpush2.msra.mxu0 0.0
    %1908 = vmatprep.subr.mxu0 0.0
    %1909 = vmatpush2.msra.mxu0 0.0
    %1910 = vmatprep.subr.mxu0 0.0
    %1911 = vmatpush2.msra.mxu0 0.0
    %1912 = vmatprep.subr.mxu0 0.0
    %1913 = vmatpush2.msra.mxu0 0.0
    %1914 = vmatprep.subr.mxu0 0.0
    %1915 = vmatpush2.msra.mxu0 0.0
    %1916 = vmatprep.subr.mxu0 0.0
    %1917 = vmatpush2.msra.mxu0 0.0
    %1918 = vmatprep.mubr.f32.mxu0 0.0
    %1919 = vmatmul.mubr.f32.gmra.mxu0 %v1852
    %v1920 = vpop.f32.mrf.mxu0
    %v1921 = vadd.f32 %v1849, %v1920
    %v1922 = vpop.f32.mrf.mxu0
    %1923 = vdwg.mxu0
    %v1924 = vld [vmem:[#allocation16] sm:$0x1]
    %v1926 = vlaneseq
    %v1927 = vshrl.u32 %v1926, 7
    %v1928 = vsub.s32 0, %v1927
    %v1929 = vrot.slane %v1924, %v1928
    %v1931 = vmul.f32 %v323, %v1929
    %v1932 = vadd.f32 %v1921, %v1931
    %v1933 = vsel %vm451, %v1932, 0.0
    %1934 = vadd.xlane.f32.xlu0 %v1933
    %v1935 = vpop.xlane.xlu0 %1934
    %v1936 = vrcp.pop 32.0
    %v1937 = vmul.f32 %v1935, %v1936
    %v1938 = vsub.f32 %v1932, %v1937
    %v1939 = vmul.f32 %v1938, %v1938
    %v1940 = vsel %vm451, %v1939, 0.0
    %1941 = vadd.xlane.f32.xlu0 %v1940
    %v1942 = vpop.xlane.xlu0 %1941
    %v1943 = vmul.f32 %v1942, %v1936
    %v1944 = vadd.f32 %v1943, 1e-05
    %v1945 = vrsqrt.pop %v1944
    %v1946 = vmul.f32 %v1938, %v1945
    %v1947 = vld [vmem:[#allocation17] sm:$0x1]
    %v1949 = vlaneseq
    %v1950 = vshrl.u32 %v1949, 7
    %v1951 = vsub.s32 0, %v1950
    %v1952 = vrot.slane %v1947, %v1951
    %v1954 = vmul.f32 %v1946, %v1952
    %v1955 = vld [vmem:[#allocation19] sm:$0x1]
    %v1957 = vlaneseq
    %v1958 = vshrl.u32 %v1957, 7
    %v1959 = vsub.s32 0, %v1958
    %v1960 = vrot.slane %v1955, %v1959
    %v1962 = vadd.f32 %v1954, %v1960
    %s1963 = scalar_lea.vmem [#allocation13], 32
    %v1964 = vld [vmem:[%s1963] sm:$0xff]
    %v1965 = vld [vmem:[%s1963 + $0x8] sm:$0xff]
    %v1966 = vld [vmem:[%s1963 + $0x10] sm:$0xff]
    %v1967 = vld [vmem:[%s1963 + $0x18] sm:$0xff]
    %s1968 = scalar_lea.vmem [#allocation14], 1
    %v1969 = vld [vmem:[%s1968] sm:$0x1]
    %v1971 = vlaneseq
    %v1972 = vshrl.u32 %v1971, 7
    %v1973 = vsub.s32 0, %v1972
    %v1974 = vrot.slane %v1969, %v1973
    %v1977 = vsel %vm451, %v1017, 0
    %1979 = vmatprep.subr.mxu0 0.0
    %1980 = vmatpush1.msra.mxu0 0.0
    %1981 = vmatprep.subr.mxu0 0.0
    %1982 = vmatpush1.msra.mxu0 0.0
    %1983 = vmatprep.subr.mxu0 0.0
    %1984 = vmatpush1.msra.mxu0 0.0
    %1985 = vmatprep.subr.mxu0 0.0
    %1986 = vmatpush1.msra.mxu0 0.0
    %1987 = vmatprep.subr.mxu0 0.0
    %1988 = vmatpush1.msra.mxu0 0.0
    %1989 = vmatprep.subr.mxu0 0.0
    %1990 = vmatpush1.msra.mxu0 0.0
    %1991 = vmatprep.subr.mxu0 0.0
    %1992 = vmatpush1.msra.mxu0 0.0
    %1993 = vmatprep.subr.mxu0 0.0
    %1994 = vmatpush1.msra.mxu0 0.0
    %1995 = vmatprep.subr.mxu0 0.0
    %1996 = vmatpush1.msra.mxu0 0.0
    %1997 = vmatprep.subr.mxu0 0.0
    %1998 = vmatpush1.msra.mxu0 0.0
    %1999 = vmatprep.subr.mxu0 0.0
    %2000 = vmatpush1.msra.mxu0 0.0
    %2001 = vmatprep.subr.mxu0 0.0
    %2002 = vmatpush1.msra.mxu0 0.0
    %2003 = vmatprep.subr.mxu0 0.0
    %2004 = vmatpush1.msra.mxu0 %v1967
    %2005 = vmatprep.subr.mxu0 0.0
    %2006 = vmatpush1.msra.mxu0 %v1966
    %2007 = vmatprep.subr.mxu0 0.0
    %2008 = vmatpush1.msra.mxu0 %v1965
    %2009 = vmatprep.subr.mxu0 0.0
    %2010 = vmatpush1.msra.mxu0 %v1964
    %2011 = vmatprep.subr.mxu0 0.0
    %2012 = vmatpush2.msra.mxu0 0.0
    %2013 = vmatprep.subr.mxu0 0.0
    %2014 = vmatpush2.msra.mxu0 0.0
    %2015 = vmatprep.subr.mxu0 0.0
    %2016 = vmatpush2.msra.mxu0 0.0
    %2017 = vmatprep.subr.mxu0 0.0
    %2018 = vmatpush2.msra.mxu0 0.0
    %2019 = vmatprep.subr.mxu0 0.0
    %2020 = vmatpush2.msra.mxu0 0.0
    %2021 = vmatprep.subr.mxu0 0.0
    %2022 = vmatpush2.msra.mxu0 0.0
    %2023 = vmatprep.subr.mxu0 0.0
    %2024 = vmatpush2.msra.mxu0 0.0
    %2025 = vmatprep.subr.mxu0 0.0
    %2026 = vmatpush2.msra.mxu0 0.0
    %2027 = vmatprep.subr.mxu0 0.0
    %2028 = vmatpush2.msra.mxu0 0.0
    %2029 = vmatprep.subr.mxu0 0.0
    %2030 = vmatpush2.msra.mxu0 0.0
    %2031 = vmatprep.subr.mxu0 0.0
    %2032 = vmatpush2.msra.mxu0 0.0
    %2033 = vmatprep.subr.mxu0 0.0
    %2034 = vmatpush2.msra.mxu0 0.0
    %2035 = vmatprep.subr.mxu0 0.0
    %2036 = vmatpush2.msra.mxu0 0.0
    %2037 = vmatprep.subr.mxu0 0.0
    %2038 = vmatpush2.msra.mxu0 0.0
    %2039 = vmatprep.subr.mxu0 0.0
    %2040 = vmatpush2.msra.mxu0 0.0
    %2041 = vmatprep.subr.mxu0 0.0
    %2042 = vmatpush2.msra.mxu0 0.0
    %2043 = vmatprep.mubr.f32.mxu0 0.0
    %2044 = vmatmul.mubr.f32.gmra.mxu0 %v1977
    %v2045 = vpop.f32.mrf.mxu0
    %v2046 = vadd.f32 %v1974, %v2045
    %v2047 = vpop.f32.mrf.mxu0
    %2048 = vdwg.mxu0
    %s2049 = scalar_lea.vmem [#allocation16], 1
    %v2050 = vld [vmem:[%s2049] sm:$0x1]
    %v2052 = vlaneseq
    %v2053 = vshrl.u32 %v2052, 7
    %v2054 = vsub.s32 0, %v2053
    %v2055 = vrot.slane %v2050, %v2054
    %v2057 = vmul.f32 %v434, %v2055
    %v2058 = vadd.f32 %v2046, %v2057
    %v2059 = vsel %vm451, %v2058, 0.0
    %2060 = vadd.xlane.f32.xlu0 %v2059
    %v2061 = vpop.xlane.xlu0 %2060
    %v2062 = vmul.f32 %v2061, %v1936
    %v2063 = vsub.f32 %v2058, %v2062
    %v2064 = vmul.f32 %v2063, %v2063
    %v2065 = vsel %vm451, %v2064, 0.0
    %2066 = vadd.xlane.f32.xlu0 %v2065
    %v2067 = vpop.xlane.xlu0 %2066
    %v2068 = vmul.f32 %v2067, %v1936
    %v2069 = vadd.f32 %v2068, 1e-05
    %v2070 = vrsqrt.pop %v2069
    %v2071 = vmul.f32 %v2063, %v2070
    %s2072 = scalar_lea.vmem [#allocation17], 1
    %v2073 = vld [vmem:[%s2072] sm:$0x1]
    %v2075 = vlaneseq
    %v2076 = vshrl.u32 %v2075, 7
    %v2077 = vsub.s32 0, %v2076
    %v2078 = vrot.slane %v2073, %v2077
    %v2080 = vmul.f32 %v2071, %v2078
    %s2081 = scalar_lea.vmem [#allocation19], 1
    %v2082 = vld [vmem:[%s2081] sm:$0x1]
    %v2084 = vlaneseq
    %v2085 = vshrl.u32 %v2084, 7
    %v2086 = vsub.s32 0, %v2085
    %v2087 = vrot.slane %v2082, %v2086
    %v2089 = vadd.f32 %v2080, %v2087
    %s2090 = scalar_lea.vmem [#allocation7], 64
    %v2091 = vld [vmem:[%s2090] sm:$0xff]
    %v2092 = vld [vmem:[%s2090 + $0x8] sm:$0xff]
    %v2093 = vld [vmem:[%s2090 + $0x10] sm:$0xff]
    %v2094 = vld [vmem:[%s2090 + $0x18] sm:$0xff]
    %s2095 = scalar_lea.vmem [#allocation8], 2
    %v2096 = vld [vmem:[%s2095] sm:$0x1]
    %v2098 = vlaneseq
    %v2099 = vshrl.u32 %v2098, 7
    %v2100 = vsub.s32 0, %v2099
    %v2101 = vrot.slane %v2096, %v2100
    %v2104 = vsel %vm451, %v1962, 0
    %2106 = vmatprep.subr.mxu0 0.0
    %2107 = vmatpush1.msra.mxu0 0.0
    %2108 = vmatprep.subr.mxu0 0.0
    %2109 = vmatpush1.msra.mxu0 0.0
    %2110 = vmatprep.subr.mxu0 0.0
    %2111 = vmatpush1.msra.mxu0 0.0
    %2112 = vmatprep.subr.mxu0 0.0
    %2113 = vmatpush1.msra.mxu0 0.0
    %2114 = vmatprep.subr.mxu0 0.0
    %2115 = vmatpush1.msra.mxu0 0.0
    %2116 = vmatprep.subr.mxu0 0.0
    %2117 = vmatpush1.msra.mxu0 0.0
    %2118 = vmatprep.subr.mxu0 0.0
    %2119 = vmatpush1.msra.mxu0 0.0
    %2120 = vmatprep.subr.mxu0 0.0
    %2121 = vmatpush1.msra.mxu0 0.0
    %2122 = vmatprep.subr.mxu0 0.0
    %2123 = vmatpush1.msra.mxu0 0.0
    %2124 = vmatprep.subr.mxu0 0.0
    %2125 = vmatpush1.msra.mxu0 0.0
    %2126 = vmatprep.subr.mxu0 0.0
    %2127 = vmatpush1.msra.mxu0 0.0
    %2128 = vmatprep.subr.mxu0 0.0
    %2129 = vmatpush1.msra.mxu0 0.0
    %2130 = vmatprep.subr.mxu0 0.0
    %2131 = vmatpush1.msra.mxu0 %v2094
    %2132 = vmatprep.subr.mxu0 0.0
    %2133 = vmatpush1.msra.mxu0 %v2093
    %2134 = vmatprep.subr.mxu0 0.0
    %2135 = vmatpush1.msra.mxu0 %v2092
    %2136 = vmatprep.subr.mxu0 0.0
    %2137 = vmatpush1.msra.mxu0 %v2091
    %2138 = vmatprep.subr.mxu0 0.0
    %2139 = vmatpush2.msra.mxu0 0.0
    %2140 = vmatprep.subr.mxu0 0.0
    %2141 = vmatpush2.msra.mxu0 0.0
    %2142 = vmatprep.subr.mxu0 0.0
    %2143 = vmatpush2.msra.mxu0 0.0
    %2144 = vmatprep.subr.mxu0 0.0
    %2145 = vmatpush2.msra.mxu0 0.0
    %2146 = vmatprep.subr.mxu0 0.0
    %2147 = vmatpush2.msra.mxu0 0.0
    %2148 = vmatprep.subr.mxu0 0.0
    %2149 = vmatpush2.msra.mxu0 0.0
    %2150 = vmatprep.subr.mxu0 0.0
    %2151 = vmatpush2.msra.mxu0 0.0
    %2152 = vmatprep.subr.mxu0 0.0
    %2153 = vmatpush2.msra.mxu0 0.0
    %2154 = vmatprep.subr.mxu0 0.0
    %2155 = vmatpush2.msra.mxu0 0.0
    %2156 = vmatprep.subr.mxu0 0.0
    %2157 = vmatpush2.msra.mxu0 0.0
    %2158 = vmatprep.subr.mxu0 0.0
    %2159 = vmatpush2.msra.mxu0 0.0
    %2160 = vmatprep.subr.mxu0 0.0
    %2161 = vmatpush2.msra.mxu0 0.0
    %2162 = vmatprep.subr.mxu0 0.0
    %2163 = vmatpush2.msra.mxu0 0.0
    %2164 = vmatprep.subr.mxu0 0.0
    %2165 = vmatpush2.msra.mxu0 0.0
    %2166 = vmatprep.subr.mxu0 0.0
    %2167 = vmatpush2.msra.mxu0 0.0
    %2168 = vmatprep.subr.mxu0 0.0
    %2169 = vmatpush2.msra.mxu0 0.0
    %2170 = vmatprep.mubr.f32.mxu0 0.0
    %2171 = vmatmul.mubr.f32.gmra.mxu0 %v2104
    %v2172 = vpop.f32.mrf.mxu0
    %v2173 = vadd.f32 %v2101, %v2172
    %v2174 = vpop.f32.mrf.mxu0
    %2175 = vdwg.mxu0
    %s2176 = scalar_lea.vmem [#allocation7], 96
    %v2177 = vld [vmem:[%s2176] sm:$0xff]
    %v2178 = vld [vmem:[%s2176 + $0x8] sm:$0xff]
    %v2179 = vld [vmem:[%s2176 + $0x10] sm:$0xff]
    %v2180 = vld [vmem:[%s2176 + $0x18] sm:$0xff]
    %s2181 = scalar_lea.vmem [#allocation8], 3
    %v2182 = vld [vmem:[%s2181] sm:$0x1]
    %v2184 = vlaneseq
    %v2185 = vshrl.u32 %v2184, 7
    %v2186 = vsub.s32 0, %v2185
    %v2187 = vrot.slane %v2182, %v2186
    %v2190 = vsel %vm451, %v2089, 0
    %2192 = vmatprep.subr.mxu0 0.0
    %2193 = vmatpush1.msra.mxu0 0.0
    %2194 = vmatprep.subr.mxu0 0.0
    %2195 = vmatpush1.msra.mxu0 0.0
    %2196 = vmatprep.subr.mxu0 0.0
    %2197 = vmatpush1.msra.mxu0 0.0
    %2198 = vmatprep.subr.mxu0 0.0
    %2199 = vmatpush1.msra.mxu0 0.0
    %2200 = vmatprep.subr.mxu0 0.0
    %2201 = vmatpush1.msra.mxu0 0.0
    %2202 = vmatprep.subr.mxu0 0.0
    %2203 = vmatpush1.msra.mxu0 0.0
    %2204 = vmatprep.subr.mxu0 0.0
    %2205 = vmatpush1.msra.mxu0 0.0
    %2206 = vmatprep.subr.mxu0 0.0
    %2207 = vmatpush1.msra.mxu0 0.0
    %2208 = vmatprep.subr.mxu0 0.0
    %2209 = vmatpush1.msra.mxu0 0.0
    %2210 = vmatprep.subr.mxu0 0.0
    %2211 = vmatpush1.msra.mxu0 0.0
    %2212 = vmatprep.subr.mxu0 0.0
    %2213 = vmatpush1.msra.mxu0 0.0
    %2214 = vmatprep.subr.mxu0 0.0
    %2215 = vmatpush1.msra.mxu0 0.0
    %2216 = vmatprep.subr.mxu0 0.0
    %2217 = vmatpush1.msra.mxu0 %v2180
    %2218 = vmatprep.subr.mxu0 0.0
    %2219 = vmatpush1.msra.mxu0 %v2179
    %2220 = vmatprep.subr.mxu0 0.0
    %2221 = vmatpush1.msra.mxu0 %v2178
    %2222 = vmatprep.subr.mxu0 0.0
    %2223 = vmatpush1.msra.mxu0 %v2177
    %2224 = vmatprep.subr.mxu0 0.0
    %2225 = vmatpush2.msra.mxu0 0.0
    %2226 = vmatprep.subr.mxu0 0.0
    %2227 = vmatpush2.msra.mxu0 0.0
    %2228 = vmatprep.subr.mxu0 0.0
    %2229 = vmatpush2.msra.mxu0 0.0
    %2230 = vmatprep.subr.mxu0 0.0
    %2231 = vmatpush2.msra.mxu0 0.0
    %2232 = vmatprep.subr.mxu0 0.0
    %2233 = vmatpush2.msra.mxu0 0.0
    %2234 = vmatprep.subr.mxu0 0.0
    %2235 = vmatpush2.msra.mxu0 0.0
    %2236 = vmatprep.subr.mxu0 0.0
    %2237 = vmatpush2.msra.mxu0 0.0
    %2238 = vmatprep.subr.mxu0 0.0
    %2239 = vmatpush2.msra.mxu0 0.0
    %2240 = vmatprep.subr.mxu0 0.0
    %2241 = vmatpush2.msra.mxu0 0.0
    %2242 = vmatprep.subr.mxu0 0.0
    %2243 = vmatpush2.msra.mxu0 0.0
    %2244 = vmatprep.subr.mxu0 0.0
    %2245 = vmatpush2.msra.mxu0 0.0
    %2246 = vmatprep.subr.mxu0 0.0
    %2247 = vmatpush2.msra.mxu0 0.0
    %2248 = vmatprep.subr.mxu0 0.0
    %2249 = vmatpush2.msra.mxu0 0.0
    %2250 = vmatprep.subr.mxu0 0.0
    %2251 = vmatpush2.msra.mxu0 0.0
    %2252 = vmatprep.subr.mxu0 0.0
    %2253 = vmatpush2.msra.mxu0 0.0
    %2254 = vmatprep.subr.mxu0 0.0
    %2255 = vmatpush2.msra.mxu0 0.0
    %2256 = vmatprep.mubr.f32.mxu0 0.0
    %2257 = vmatmul.mubr.f32.gmra.mxu0 %v2190
    %v2258 = vpop.f32.mrf.mxu0
    %v2259 = vadd.f32 %v2187, %v2258
    %v2260 = vpop.f32.mrf.mxu0
    %2261 = vdwg.mxu0
    %s2262 = scalar_lea.vmem [#allocation10], 96
    %v2263 = vld [vmem:[%s2262] sm:$0xff]
    %v2264 = vld [vmem:[%s2262 + $0x8] sm:$0xff]
    %v2265 = vld [vmem:[%s2262 + $0x10] sm:$0xff]
    %v2266 = vld [vmem:[%s2262 + $0x18] sm:$0xff]
    %s2267 = scalar_lea.vmem [#allocation11], 3
    %v2268 = vld [vmem:[%s2267] sm:$0x1]
    %v2270 = vlaneseq
    %v2271 = vshrl.u32 %v2270, 7
    %v2272 = vsub.s32 0, %v2271
    %v2273 = vrot.slane %v2268, %v2272
    %2275 = vmatprep.subr.mxu0 0.0
    %2276 = vmatpush1.msra.mxu0 0.0
    %2277 = vmatprep.subr.mxu0 0.0
    %2278 = vmatpush1.msra.mxu0 0.0
    %2279 = vmatprep.subr.mxu0 0.0
    %2280 = vmatpush1.msra.mxu0 0.0
    %2281 = vmatprep.subr.mxu0 0.0
    %2282 = vmatpush1.msra.mxu0 0.0
    %2283 = vmatprep.subr.mxu0 0.0
    %2284 = vmatpush1.msra.mxu0 0.0
    %2285 = vmatprep.subr.mxu0 0.0
    %2286 = vmatpush1.msra.mxu0 0.0
    %2287 = vmatprep.subr.mxu0 0.0
    %2288 = vmatpush1.msra.mxu0 0.0
    %2289 = vmatprep.subr.mxu0 0.0
    %2290 = vmatpush1.msra.mxu0 0.0
    %2291 = vmatprep.subr.mxu0 0.0
    %2292 = vmatpush1.msra.mxu0 0.0
    %2293 = vmatprep.subr.mxu0 0.0
    %2294 = vmatpush1.msra.mxu0 0.0
    %2295 = vmatprep.subr.mxu0 0.0
    %2296 = vmatpush1.msra.mxu0 0.0
    %2297 = vmatprep.subr.mxu0 0.0
    %2298 = vmatpush1.msra.mxu0 0.0
    %2299 = vmatprep.subr.mxu0 0.0
    %2300 = vmatpush1.msra.mxu0 %v2266
    %2301 = vmatprep.subr.mxu0 0.0
    %2302 = vmatpush1.msra.mxu0 %v2265
    %2303 = vmatprep.subr.mxu0 0.0
    %2304 = vmatpush1.msra.mxu0 %v2264
    %2305 = vmatprep.subr.mxu0 0.0
    %2306 = vmatpush1.msra.mxu0 %v2263
    %2307 = vmatprep.subr.mxu0 0.0
    %2308 = vmatpush2.msra.mxu0 0.0
    %2309 = vmatprep.subr.mxu0 0.0
    %2310 = vmatpush2.msra.mxu0 0.0
    %2311 = vmatprep.subr.mxu0 0.0
    %2312 = vmatpush2.msra.mxu0 0.0
    %2313 = vmatprep.subr.mxu0 0.0
    %2314 = vmatpush2.msra.mxu0 0.0
    %2315 = vmatprep.subr.mxu0 0.0
    %2316 = vmatpush2.msra.mxu0 0.0
    %2317 = vmatprep.subr.mxu0 0.0
    %2318 = vmatpush2.msra.mxu0 0.0
    %2319 = vmatprep.subr.mxu0 0.0
    %2320 = vmatpush2.msra.mxu0 0.0
    %2321 = vmatprep.subr.mxu0 0.0
    %2322 = vmatpush2.msra.mxu0 0.0
    %2323 = vmatprep.subr.mxu0 0.0
    %2324 = vmatpush2.msra.mxu0 0.0
    %2325 = vmatprep.subr.mxu0 0.0
    %2326 = vmatpush2.msra.mxu0 0.0
    %2327 = vmatprep.subr.mxu0 0.0
    %2328 = vmatpush2.msra.mxu0 0.0
    %2329 = vmatprep.subr.mxu0 0.0
    %2330 = vmatpush2.msra.mxu0 0.0
    %2331 = vmatprep.subr.mxu0 0.0
    %2332 = vmatpush2.msra.mxu0 0.0
    %2333 = vmatprep.subr.mxu0 0.0
    %2334 = vmatpush2.msra.mxu0 0.0
    %2335 = vmatprep.subr.mxu0 0.0
    %2336 = vmatpush2.msra.mxu0 0.0
    %2337 = vmatprep.subr.mxu0 0.0
    %2338 = vmatpush2.msra.mxu0 0.0
    %2339 = vmatprep.mubr.f32.mxu0 0.0
    %2340 = vmatmul.mubr.f32.gmra.mxu0 %v2104
    %v2341 = vpop.f32.mrf.mxu0
    %v2342 = vadd.f32 %v2273, %v2341
    %v2343 = vpop.f32.mrf.mxu0
    %2344 = vdwg.mxu0
    %v2346 = vsel %vm451, %v2259, 0
    %v2349 = vsel %vm451, %v2342, 0
    %2351 = vmatprep.subr.mxu0 0.0
    %2352 = vmatpush1.xpose.msra.mxu0 0.0
    %2353 = vmatprep.subr.mxu0 0.0
    %2354 = vmatpush1.xpose.msra.mxu0 0.0
    %2355 = vmatprep.subr.mxu0 0.0
    %2356 = vmatpush1.xpose.msra.mxu0 0.0
    %2357 = vmatprep.subr.mxu0 0.0
    %2358 = vmatpush1.xpose.msra.mxu0 0.0
    %2359 = vmatprep.subr.mxu0 0.0
    %2360 = vmatpush1.xpose.msra.mxu0 0.0
    %2361 = vmatprep.subr.mxu0 0.0
    %2362 = vmatpush1.xpose.msra.mxu0 0.0
    %2363 = vmatprep.subr.mxu0 0.0
    %2364 = vmatpush1.xpose.msra.mxu0 0.0
    %2365 = vmatprep.subr.mxu0 0.0
    %2366 = vmatpush1.xpose.msra.mxu0 0.0
    %2367 = vmatprep.subr.mxu0 0.0
    %2368 = vmatpush1.xpose.msra.mxu0 0.0
    %2369 = vmatprep.subr.mxu0 0.0
    %2370 = vmatpush1.xpose.msra.mxu0 0.0
    %2371 = vmatprep.subr.mxu0 0.0
    %2372 = vmatpush1.xpose.msra.mxu0 0.0
    %2373 = vmatprep.subr.mxu0 0.0
    %2374 = vmatpush1.xpose.msra.mxu0 0.0
    %2375 = vmatprep.subr.mxu0 0.0
    %2376 = vmatpush1.xpose.msra.mxu0 0.0
    %2377 = vmatprep.subr.mxu0 0.0
    %2378 = vmatpush1.xpose.msra.mxu0 0.0
    %2379 = vmatprep.subr.mxu0 0.0
    %2380 = vmatpush1.xpose.msra.mxu0 0.0
    %2381 = vmatprep.subr.mxu0 0.0
    %2382 = vmatpush1.xpose.msra.mxu0 %v2349
    %2383 = vmatprep.subr.mxu0 0.0
    %2384 = vmatpush2.xpose.msra.mxu0 0.0
    %2385 = vmatprep.subr.mxu0 0.0
    %2386 = vmatpush2.xpose.msra.mxu0 0.0
    %2387 = vmatprep.subr.mxu0 0.0
    %2388 = vmatpush2.xpose.msra.mxu0 0.0
    %2389 = vmatprep.subr.mxu0 0.0
    %2390 = vmatpush2.xpose.msra.mxu0 0.0
    %2391 = vmatprep.subr.mxu0 0.0
    %2392 = vmatpush2.xpose.msra.mxu0 0.0
    %2393 = vmatprep.subr.mxu0 0.0
    %2394 = vmatpush2.xpose.msra.mxu0 0.0
    %2395 = vmatprep.subr.mxu0 0.0
    %2396 = vmatpush2.xpose.msra.mxu0 0.0
    %2397 = vmatprep.subr.mxu0 0.0
    %2398 = vmatpush2.xpose.msra.mxu0 0.0
    %2399 = vmatprep.subr.mxu0 0.0
    %2400 = vmatpush2.xpose.msra.mxu0 0.0
    %2401 = vmatprep.subr.mxu0 0.0
    %2402 = vmatpush2.xpose.msra.mxu0 0.0
    %2403 = vmatprep.subr.mxu0 0.0
    %2404 = vmatpush2.xpose.msra.mxu0 0.0
    %2405 = vmatprep.subr.mxu0 0.0
    %2406 = vmatpush2.xpose.msra.mxu0 0.0
    %2407 = vmatprep.subr.mxu0 0.0
    %2408 = vmatpush2.xpose.msra.mxu0 0.0
    %2409 = vmatprep.subr.mxu0 0.0
    %2410 = vmatpush2.xpose.msra.mxu0 0.0
    %2411 = vmatprep.subr.mxu0 0.0
    %2412 = vmatpush2.xpose.msra.mxu0 0.0
    %2413 = vmatprep.subr.mxu0 0.0
    %2414 = vmatpush2.xpose.msra.mxu0 0.0
    %2415 = vmatprep.mubr.f32.mxu0 0.0
    %2416 = vmatmul.mubr.f32.gmra.mxu0 %v2346
    %v2417 = vpop.f32.mrf.mxu0
    %v2418 = vadd.f32 0.0, %v2417
    %v2419 = vpop.f32.mrf.mxu0
    %2420 = vdwg.mxu0
    %v2421 = vsel %vm223, %v2418, -inf
    %2422 = vmax.xlane.f32.xlu0 %v2421
    %v2423 = vpop.xlane.xlu0 %2422
    %v2424 = vsub.f32 %v2418, %v2423
    %v2425 = vmul.f32 %v2424, 1.442695
    %v2426 = vpow.pop %v2425
    %v2427 = vmul.f32 %v2426, %v435
    %v2428 = vsel %vm223, %v2427, 0.0
    %2429 = vadd.xlane.f32.xlu0 %v2428
    %v2430 = vpop.xlane.xlu0 %2429
    %v2431 = vmax.f32 %v2430, 1e-30
    %v2432 = vrcp.pop %v2431
    %v2433 = vmul.f32 %v2427, %v2432
    %2434 = vrot.lane.b32.xlu0 %v2342, 96
    %v2435 = vpop.permute.xlu0 %2434
    %v2436 = vsel %vm451, %v2435, 0
    %2438 = vmatprep.subr.mxu0 0.0
    %2439 = vmatpush1.xpose.msra.mxu0 0.0
    %2440 = vmatprep.subr.mxu0 0.0
    %2441 = vmatpush1.xpose.msra.mxu0 0.0
    %2442 = vmatprep.subr.mxu0 0.0
    %2443 = vmatpush1.xpose.msra.mxu0 0.0
    %2444 = vmatprep.subr.mxu0 0.0
    %2445 = vmatpush1.xpose.msra.mxu0 0.0
    %2446 = vmatprep.subr.mxu0 0.0
    %2447 = vmatpush1.xpose.msra.mxu0 0.0
    %2448 = vmatprep.subr.mxu0 0.0
    %2449 = vmatpush1.xpose.msra.mxu0 0.0
    %2450 = vmatprep.subr.mxu0 0.0
    %2451 = vmatpush1.xpose.msra.mxu0 0.0
    %2452 = vmatprep.subr.mxu0 0.0
    %2453 = vmatpush1.xpose.msra.mxu0 0.0
    %2454 = vmatprep.subr.mxu0 0.0
    %2455 = vmatpush1.xpose.msra.mxu0 0.0
    %2456 = vmatprep.subr.mxu0 0.0
    %2457 = vmatpush1.xpose.msra.mxu0 0.0
    %2458 = vmatprep.subr.mxu0 0.0
    %2459 = vmatpush1.xpose.msra.mxu0 0.0
    %2460 = vmatprep.subr.mxu0 0.0
    %2461 = vmatpush1.xpose.msra.mxu0 0.0
    %2462 = vmatprep.subr.mxu0 0.0
    %2463 = vmatpush1.xpose.msra.mxu0 0.0
    %2464 = vmatprep.subr.mxu0 0.0
    %2465 = vmatpush1.xpose.msra.mxu0 0.0
    %2466 = vmatprep.subr.mxu0 0.0
    %2467 = vmatpush1.xpose.msra.mxu0 0.0
    %2468 = vmatprep.subr.mxu0 0.0
    %2469 = vmatpush1.xpose.msra.mxu0 %v2436
    %2470 = vmatprep.subr.mxu0 0.0
    %2471 = vmatpush2.xpose.msra.mxu0 0.0
    %2472 = vmatprep.subr.mxu0 0.0
    %2473 = vmatpush2.xpose.msra.mxu0 0.0
    %2474 = vmatprep.subr.mxu0 0.0
    %2475 = vmatpush2.xpose.msra.mxu0 0.0
    %2476 = vmatprep.subr.mxu0 0.0
    %2477 = vmatpush2.xpose.msra.mxu0 0.0
    %2478 = vmatprep.subr.mxu0 0.0
    %2479 = vmatpush2.xpose.msra.mxu0 0.0
    %2480 = vmatprep.subr.mxu0 0.0
    %2481 = vmatpush2.xpose.msra.mxu0 0.0
    %2482 = vmatprep.subr.mxu0 0.0
    %2483 = vmatpush2.xpose.msra.mxu0 0.0
    %2484 = vmatprep.subr.mxu0 0.0
    %2485 = vmatpush2.xpose.msra.mxu0 0.0
    %2486 = vmatprep.subr.mxu0 0.0
    %2487 = vmatpush2.xpose.msra.mxu0 0.0
    %2488 = vmatprep.subr.mxu0 0.0
    %2489 = vmatpush2.xpose.msra.mxu0 0.0
    %2490 = vmatprep.subr.mxu0 0.0
    %2491 = vmatpush2.xpose.msra.mxu0 0.0
    %2492 = vmatprep.subr.mxu0 0.0
    %2493 = vmatpush2.xpose.msra.mxu0 0.0
    %2494 = vmatprep.subr.mxu0 0.0
    %2495 = vmatpush2.xpose.msra.mxu0 0.0
    %2496 = vmatprep.subr.mxu0 0.0
    %2497 = vmatpush2.xpose.msra.mxu0 0.0
    %2498 = vmatprep.subr.mxu0 0.0
    %2499 = vmatpush2.xpose.msra.mxu0 0.0
    %2500 = vmatprep.subr.mxu0 0.0
    %2501 = vmatpush2.xpose.msra.mxu0 0.0
    %2502 = vmatprep.mubr.f32.mxu0 0.0
    %2503 = vmatmul.mubr.f32.gmra.mxu0 %v2346
    %v2504 = vpop.f32.mrf.mxu0
    %v2505 = vadd.f32 0.0, %v2504
    %v2506 = vpop.f32.mrf.mxu0
    %2507 = vdwg.mxu0
    %v2508 = vsel %vm223, %v2505, -inf
    %2509 = vmax.xlane.f32.xlu0 %v2508
    %v2510 = vpop.xlane.xlu0 %2509
    %v2511 = vsub.f32 %v2505, %v2510
    %v2512 = vmul.f32 %v2511, 1.442695
    %v2513 = vpow.pop %v2512
    %v2514 = vmul.f32 %v2513, %v435
    %v2515 = vsel %vm223, %v2514, 0.0
    %2516 = vadd.xlane.f32.xlu0 %v2515
    %v2517 = vpop.xlane.xlu0 %2516
    %v2518 = vmax.f32 %v2517, 1e-30
    %v2519 = vrcp.pop %v2518
    %v2520 = vmul.f32 %v2514, %v2519
    %2521 = vrot.lane.b32.xlu0 %v2342, 32
    %v2522 = vpop.permute.xlu0 %2521
    %v2525 = vsel %vm223, %v2520, 0
    %2527 = vmatprep.subr.mxu0 0.0
    %2528 = vmatpush1.msra.mxu0 0.0
    %2529 = vmatprep.subr.mxu0 0.0
    %2530 = vmatpush1.msra.mxu0 0.0
    %2531 = vmatprep.subr.mxu0 0.0
    %2532 = vmatpush1.msra.mxu0 0.0
    %2533 = vmatprep.subr.mxu0 0.0
    %2534 = vmatpush1.msra.mxu0 0.0
    %2535 = vmatprep.subr.mxu0 0.0
    %2536 = vmatpush1.msra.mxu0 0.0
    %2537 = vmatprep.subr.mxu0 0.0
    %2538 = vmatpush1.msra.mxu0 0.0
    %2539 = vmatprep.subr.mxu0 0.0
    %2540 = vmatpush1.msra.mxu0 0.0
    %2541 = vmatprep.subr.mxu0 0.0
    %2542 = vmatpush1.msra.mxu0 0.0
    %2543 = vmatprep.subr.mxu0 0.0
    %2544 = vmatpush1.msra.mxu0 0.0
    %2545 = vmatprep.subr.mxu0 0.0
    %2546 = vmatpush1.msra.mxu0 0.0
    %2547 = vmatprep.subr.mxu0 0.0
    %2548 = vmatpush1.msra.mxu0 0.0
    %2549 = vmatprep.subr.mxu0 0.0
    %2550 = vmatpush1.msra.mxu0 0.0
    %2551 = vmatprep.subr.mxu0 0.0
    %2552 = vmatpush1.msra.mxu0 0.0
    %2553 = vmatprep.subr.mxu0 0.0
    %2554 = vmatpush1.msra.mxu0 0.0
    %2555 = vmatprep.subr.mxu0 0.0
    %2556 = vmatpush1.msra.mxu0 0.0
    %2557 = vmatprep.subr.mxu0 0.0
    %2558 = vmatpush1.msra.mxu0 %v2522
    %2559 = vmatprep.subr.mxu0 0.0
    %2560 = vmatpush2.msra.mxu0 0.0
    %2561 = vmatprep.subr.mxu0 0.0
    %2562 = vmatpush2.msra.mxu0 0.0
    %2563 = vmatprep.subr.mxu0 0.0
    %2564 = vmatpush2.msra.mxu0 0.0
    %2565 = vmatprep.subr.mxu0 0.0
    %2566 = vmatpush2.msra.mxu0 0.0
    %2567 = vmatprep.subr.mxu0 0.0
    %2568 = vmatpush2.msra.mxu0 0.0
    %2569 = vmatprep.subr.mxu0 0.0
    %2570 = vmatpush2.msra.mxu0 0.0
    %2571 = vmatprep.subr.mxu0 0.0
    %2572 = vmatpush2.msra.mxu0 0.0
    %2573 = vmatprep.subr.mxu0 0.0
    %2574 = vmatpush2.msra.mxu0 0.0
    %2575 = vmatprep.subr.mxu0 0.0
    %2576 = vmatpush2.msra.mxu0 0.0
    %2577 = vmatprep.subr.mxu0 0.0
    %2578 = vmatpush2.msra.mxu0 0.0
    %2579 = vmatprep.subr.mxu0 0.0
    %2580 = vmatpush2.msra.mxu0 0.0
    %2581 = vmatprep.subr.mxu0 0.0
    %2582 = vmatpush2.msra.mxu0 0.0
    %2583 = vmatprep.subr.mxu0 0.0
    %2584 = vmatpush2.msra.mxu0 0.0
    %2585 = vmatprep.subr.mxu0 0.0
    %2586 = vmatpush2.msra.mxu0 0.0
    %2587 = vmatprep.subr.mxu0 0.0
    %2588 = vmatpush2.msra.mxu0 0.0
    %2589 = vmatprep.subr.mxu0 0.0
    %2590 = vmatpush2.msra.mxu0 0.0
    %2591 = vmatprep.mubr.f32.mxu0 0.0
    %2592 = vmatmul.mubr.f32.gmra.mxu0 %v2525
    %v2593 = vpop.f32.mrf.mxu0
    %v2594 = vadd.f32 0.0, %v2593
    %v2595 = vpop.f32.mrf.mxu0
    %2596 = vdwg.mxu0
    %2597 = vrot.lane.b32.xlu0 %v2342, 64
    %v2598 = vpop.permute.xlu0 %2597
    %v2601 = vsel %vm223, %v2433, 0
    %2603 = vmatprep.subr.mxu0 0.0
    %2604 = vmatpush1.msra.mxu0 0.0
    %2605 = vmatprep.subr.mxu0 0.0
    %2606 = vmatpush1.msra.mxu0 0.0
    %2607 = vmatprep.subr.mxu0 0.0
    %2608 = vmatpush1.msra.mxu0 0.0
    %2609 = vmatprep.subr.mxu0 0.0
    %2610 = vmatpush1.msra.mxu0 0.0
    %2611 = vmatprep.subr.mxu0 0.0
    %2612 = vmatpush1.msra.mxu0 0.0
    %2613 = vmatprep.subr.mxu0 0.0
    %2614 = vmatpush1.msra.mxu0 0.0
    %2615 = vmatprep.subr.mxu0 0.0
    %2616 = vmatpush1.msra.mxu0 0.0
    %2617 = vmatprep.subr.mxu0 0.0
    %2618 = vmatpush1.msra.mxu0 0.0
    %2619 = vmatprep.subr.mxu0 0.0
    %2620 = vmatpush1.msra.mxu0 0.0
    %2621 = vmatprep.subr.mxu0 0.0
    %2622 = vmatpush1.msra.mxu0 0.0
    %2623 = vmatprep.subr.mxu0 0.0
    %2624 = vmatpush1.msra.mxu0 0.0
    %2625 = vmatprep.subr.mxu0 0.0
    %2626 = vmatpush1.msra.mxu0 0.0
    %2627 = vmatprep.subr.mxu0 0.0
    %2628 = vmatpush1.msra.mxu0 0.0
    %2629 = vmatprep.subr.mxu0 0.0
    %2630 = vmatpush1.msra.mxu0 0.0
    %2631 = vmatprep.subr.mxu0 0.0
    %2632 = vmatpush1.msra.mxu0 0.0
    %2633 = vmatprep.subr.mxu0 0.0
    %2634 = vmatpush1.msra.mxu0 %v2598
    %2635 = vmatprep.subr.mxu0 0.0
    %2636 = vmatpush2.msra.mxu0 0.0
    %2637 = vmatprep.subr.mxu0 0.0
    %2638 = vmatpush2.msra.mxu0 0.0
    %2639 = vmatprep.subr.mxu0 0.0
    %2640 = vmatpush2.msra.mxu0 0.0
    %2641 = vmatprep.subr.mxu0 0.0
    %2642 = vmatpush2.msra.mxu0 0.0
    %2643 = vmatprep.subr.mxu0 0.0
    %2644 = vmatpush2.msra.mxu0 0.0
    %2645 = vmatprep.subr.mxu0 0.0
    %2646 = vmatpush2.msra.mxu0 0.0
    %2647 = vmatprep.subr.mxu0 0.0
    %2648 = vmatpush2.msra.mxu0 0.0
    %2649 = vmatprep.subr.mxu0 0.0
    %2650 = vmatpush2.msra.mxu0 0.0
    %2651 = vmatprep.subr.mxu0 0.0
    %2652 = vmatpush2.msra.mxu0 0.0
    %2653 = vmatprep.subr.mxu0 0.0
    %2654 = vmatpush2.msra.mxu0 0.0
    %2655 = vmatprep.subr.mxu0 0.0
    %2656 = vmatpush2.msra.mxu0 0.0
    %2657 = vmatprep.subr.mxu0 0.0
    %2658 = vmatpush2.msra.mxu0 0.0
    %2659 = vmatprep.subr.mxu0 0.0
    %2660 = vmatpush2.msra.mxu0 0.0
    %2661 = vmatprep.subr.mxu0 0.0
    %2662 = vmatpush2.msra.mxu0 0.0
    %2663 = vmatprep.subr.mxu0 0.0
    %2664 = vmatpush2.msra.mxu0 0.0
    %2665 = vmatprep.subr.mxu0 0.0
    %2666 = vmatpush2.msra.mxu0 0.0
    %2667 = vmatprep.mubr.f32.mxu0 0.0
    %2668 = vmatmul.mubr.f32.gmra.mxu0 %v2601
    %v2669 = vpop.f32.mrf.mxu0
    %v2670 = vadd.f32 %v2594, %v2669
    %v2671 = vpop.f32.mrf.mxu0
    %2672 = vdwg.mxu0
    %s2673 = scalar_lea.vmem [#allocation10], 128
    %v2674 = vld [vmem:[%s2673] sm:$0xff]
    %v2675 = vld [vmem:[%s2673 + $0x8] sm:$0xff]
    %v2676 = vld [vmem:[%s2673 + $0x10] sm:$0xff]
    %v2677 = vld [vmem:[%s2673 + $0x18] sm:$0xff]
    %s2678 = scalar_lea.vmem [#allocation11], 4
    %v2679 = vld [vmem:[%s2678] sm:$0x1]
    %v2681 = vlaneseq
    %v2682 = vshrl.u32 %v2681, 7
    %v2683 = vsub.s32 0, %v2682
    %v2684 = vrot.slane %v2679, %v2683
    %2686 = vmatprep.subr.mxu0 0.0
    %2687 = vmatpush1.msra.mxu0 0.0
    %2688 = vmatprep.subr.mxu0 0.0
    %2689 = vmatpush1.msra.mxu0 0.0
    %2690 = vmatprep.subr.mxu0 0.0
    %2691 = vmatpush1.msra.mxu0 0.0
    %2692 = vmatprep.subr.mxu0 0.0
    %2693 = vmatpush1.msra.mxu0 0.0
    %2694 = vmatprep.subr.mxu0 0.0
    %2695 = vmatpush1.msra.mxu0 0.0
    %2696 = vmatprep.subr.mxu0 0.0
    %2697 = vmatpush1.msra.mxu0 0.0
    %2698 = vmatprep.subr.mxu0 0.0
    %2699 = vmatpush1.msra.mxu0 0.0
    %2700 = vmatprep.subr.mxu0 0.0
    %2701 = vmatpush1.msra.mxu0 0.0
    %2702 = vmatprep.subr.mxu0 0.0
    %2703 = vmatpush1.msra.mxu0 0.0
    %2704 = vmatprep.subr.mxu0 0.0
    %2705 = vmatpush1.msra.mxu0 0.0
    %2706 = vmatprep.subr.mxu0 0.0
    %2707 = vmatpush1.msra.mxu0 0.0
    %2708 = vmatprep.subr.mxu0 0.0
    %2709 = vmatpush1.msra.mxu0 0.0
    %2710 = vmatprep.subr.mxu0 0.0
    %2711 = vmatpush1.msra.mxu0 %v2677
    %2712 = vmatprep.subr.mxu0 0.0
    %2713 = vmatpush1.msra.mxu0 %v2676
    %2714 = vmatprep.subr.mxu0 0.0
    %2715 = vmatpush1.msra.mxu0 %v2675
    %2716 = vmatprep.subr.mxu0 0.0
    %2717 = vmatpush1.msra.mxu0 %v2674
    %2718 = vmatprep.subr.mxu0 0.0
    %2719 = vmatpush2.msra.mxu0 0.0
    %2720 = vmatprep.subr.mxu0 0.0
    %2721 = vmatpush2.msra.mxu0 0.0
    %2722 = vmatprep.subr.mxu0 0.0
    %2723 = vmatpush2.msra.mxu0 0.0
    %2724 = vmatprep.subr.mxu0 0.0
    %2725 = vmatpush2.msra.mxu0 0.0
    %2726 = vmatprep.subr.mxu0 0.0
    %2727 = vmatpush2.msra.mxu0 0.0
    %2728 = vmatprep.subr.mxu0 0.0
    %2729 = vmatpush2.msra.mxu0 0.0
    %2730 = vmatprep.subr.mxu0 0.0
    %2731 = vmatpush2.msra.mxu0 0.0
    %2732 = vmatprep.subr.mxu0 0.0
    %2733 = vmatpush2.msra.mxu0 0.0
    %2734 = vmatprep.subr.mxu0 0.0
    %2735 = vmatpush2.msra.mxu0 0.0
    %2736 = vmatprep.subr.mxu0 0.0
    %2737 = vmatpush2.msra.mxu0 0.0
    %2738 = vmatprep.subr.mxu0 0.0
    %2739 = vmatpush2.msra.mxu0 0.0
    %2740 = vmatprep.subr.mxu0 0.0
    %2741 = vmatpush2.msra.mxu0 0.0
    %2742 = vmatprep.subr.mxu0 0.0
    %2743 = vmatpush2.msra.mxu0 0.0
    %2744 = vmatprep.subr.mxu0 0.0
    %2745 = vmatpush2.msra.mxu0 0.0
    %2746 = vmatprep.subr.mxu0 0.0
    %2747 = vmatpush2.msra.mxu0 0.0
    %2748 = vmatprep.subr.mxu0 0.0
    %2749 = vmatpush2.msra.mxu0 0.0
    %2750 = vmatprep.mubr.f32.mxu0 0.0
    %2751 = vmatmul.mubr.f32.gmra.mxu0 %v2190
    %v2752 = vpop.f32.mrf.mxu0
    %v2753 = vadd.f32 %v2684, %v2752
    %v2754 = vpop.f32.mrf.mxu0
    %2755 = vdwg.mxu0
    %v2757 = vsel %vm451, %v2173, 0
    %v2760 = vsel %vm451, %v2753, 0
    %2762 = vmatprep.subr.mxu0 0.0
    %2763 = vmatpush1.xpose.msra.mxu0 0.0
    %2764 = vmatprep.subr.mxu0 0.0
    %2765 = vmatpush1.xpose.msra.mxu0 0.0
    %2766 = vmatprep.subr.mxu0 0.0
    %2767 = vmatpush1.xpose.msra.mxu0 0.0
    %2768 = vmatprep.subr.mxu0 0.0
    %2769 = vmatpush1.xpose.msra.mxu0 0.0
    %2770 = vmatprep.subr.mxu0 0.0
    %2771 = vmatpush1.xpose.msra.mxu0 0.0
    %2772 = vmatprep.subr.mxu0 0.0
    %2773 = vmatpush1.xpose.msra.mxu0 0.0
    %2774 = vmatprep.subr.mxu0 0.0
    %2775 = vmatpush1.xpose.msra.mxu0 0.0
    %2776 = vmatprep.subr.mxu0 0.0
    %2777 = vmatpush1.xpose.msra.mxu0 0.0
    %2778 = vmatprep.subr.mxu0 0.0
    %2779 = vmatpush1.xpose.msra.mxu0 0.0
    %2780 = vmatprep.subr.mxu0 0.0
    %2781 = vmatpush1.xpose.msra.mxu0 0.0
    %2782 = vmatprep.subr.mxu0 0.0
    %2783 = vmatpush1.xpose.msra.mxu0 0.0
    %2784 = vmatprep.subr.mxu0 0.0
    %2785 = vmatpush1.xpose.msra.mxu0 0.0
    %2786 = vmatprep.subr.mxu0 0.0
    %2787 = vmatpush1.xpose.msra.mxu0 0.0
    %2788 = vmatprep.subr.mxu0 0.0
    %2789 = vmatpush1.xpose.msra.mxu0 0.0
    %2790 = vmatprep.subr.mxu0 0.0
    %2791 = vmatpush1.xpose.msra.mxu0 0.0
    %2792 = vmatprep.subr.mxu0 0.0
    %2793 = vmatpush1.xpose.msra.mxu0 %v2760
    %2794 = vmatprep.subr.mxu0 0.0
    %2795 = vmatpush2.xpose.msra.mxu0 0.0
    %2796 = vmatprep.subr.mxu0 0.0
    %2797 = vmatpush2.xpose.msra.mxu0 0.0
    %2798 = vmatprep.subr.mxu0 0.0
    %2799 = vmatpush2.xpose.msra.mxu0 0.0
    %2800 = vmatprep.subr.mxu0 0.0
    %2801 = vmatpush2.xpose.msra.mxu0 0.0
    %2802 = vmatprep.subr.mxu0 0.0
    %2803 = vmatpush2.xpose.msra.mxu0 0.0
    %2804 = vmatprep.subr.mxu0 0.0
    %2805 = vmatpush2.xpose.msra.mxu0 0.0
    %2806 = vmatprep.subr.mxu0 0.0
    %2807 = vmatpush2.xpose.msra.mxu0 0.0
    %2808 = vmatprep.subr.mxu0 0.0
    %2809 = vmatpush2.xpose.msra.mxu0 0.0
    %2810 = vmatprep.subr.mxu0 0.0
    %2811 = vmatpush2.xpose.msra.mxu0 0.0
    %2812 = vmatprep.subr.mxu0 0.0
    %2813 = vmatpush2.xpose.msra.mxu0 0.0
    %2814 = vmatprep.subr.mxu0 0.0
    %2815 = vmatpush2.xpose.msra.mxu0 0.0
    %2816 = vmatprep.subr.mxu0 0.0
    %2817 = vmatpush2.xpose.msra.mxu0 0.0
    %2818 = vmatprep.subr.mxu0 0.0
    %2819 = vmatpush2.xpose.msra.mxu0 0.0
    %2820 = vmatprep.subr.mxu0 0.0
    %2821 = vmatpush2.xpose.msra.mxu0 0.0
    %2822 = vmatprep.subr.mxu0 0.0
    %2823 = vmatpush2.xpose.msra.mxu0 0.0
    %2824 = vmatprep.subr.mxu0 0.0
    %2825 = vmatpush2.xpose.msra.mxu0 0.0
    %2826 = vmatprep.mubr.f32.mxu0 0.0
    %2827 = vmatmul.mubr.f32.gmra.mxu0 %v2757
    %v2828 = vpop.f32.mrf.mxu0
    %v2829 = vadd.f32 0.0, %v2828
    %v2830 = vpop.f32.mrf.mxu0
    %2831 = vdwg.mxu0
    %v2832 = vsel %vm223, %v2829, -inf
    %2833 = vmax.xlane.f32.xlu0 %v2832
    %v2834 = vpop.xlane.xlu0 %2833
    %v2835 = vsub.f32 %v2829, %v2834
    %v2836 = vmul.f32 %v2835, 1.442695
    %v2837 = vpow.pop %v2836
    %v2838 = vmul.f32 %v2837, %v437
    %v2839 = vsel %vm223, %v2838, 0.0
    %2840 = vadd.xlane.f32.xlu0 %v2839
    %v2841 = vpop.xlane.xlu0 %2840
    %v2842 = vmax.f32 %v2841, 1e-30
    %v2843 = vrcp.pop %v2842
    %v2844 = vmul.f32 %v2838, %v2843
    %2845 = vrot.lane.b32.xlu0 %v2753, 96
    %v2846 = vpop.permute.xlu0 %2845
    %v2847 = vsel %vm451, %v2846, 0
    %2849 = vmatprep.subr.mxu0 0.0
    %2850 = vmatpush1.xpose.msra.mxu0 0.0
    %2851 = vmatprep.subr.mxu0 0.0
    %2852 = vmatpush1.xpose.msra.mxu0 0.0
    %2853 = vmatprep.subr.mxu0 0.0
    %2854 = vmatpush1.xpose.msra.mxu0 0.0
    %2855 = vmatprep.subr.mxu0 0.0
    %2856 = vmatpush1.xpose.msra.mxu0 0.0
    %2857 = vmatprep.subr.mxu0 0.0
    %2858 = vmatpush1.xpose.msra.mxu0 0.0
    %2859 = vmatprep.subr.mxu0 0.0
    %2860 = vmatpush1.xpose.msra.mxu0 0.0
    %2861 = vmatprep.subr.mxu0 0.0
    %2862 = vmatpush1.xpose.msra.mxu0 0.0
    %2863 = vmatprep.subr.mxu0 0.0
    %2864 = vmatpush1.xpose.msra.mxu0 0.0
    %2865 = vmatprep.subr.mxu0 0.0
    %2866 = vmatpush1.xpose.msra.mxu0 0.0
    %2867 = vmatprep.subr.mxu0 0.0
    %2868 = vmatpush1.xpose.msra.mxu0 0.0
    %2869 = vmatprep.subr.mxu0 0.0
    %2870 = vmatpush1.xpose.msra.mxu0 0.0
    %2871 = vmatprep.subr.mxu0 0.0
    %2872 = vmatpush1.xpose.msra.mxu0 0.0
    %2873 = vmatprep.subr.mxu0 0.0
    %2874 = vmatpush1.xpose.msra.mxu0 0.0
    %2875 = vmatprep.subr.mxu0 0.0
    %2876 = vmatpush1.xpose.msra.mxu0 0.0
    %2877 = vmatprep.subr.mxu0 0.0
    %2878 = vmatpush1.xpose.msra.mxu0 0.0
    %2879 = vmatprep.subr.mxu0 0.0
    %2880 = vmatpush1.xpose.msra.mxu0 %v2847
    %2881 = vmatprep.subr.mxu0 0.0
    %2882 = vmatpush2.xpose.msra.mxu0 0.0
    %2883 = vmatprep.subr.mxu0 0.0
    %2884 = vmatpush2.xpose.msra.mxu0 0.0
    %2885 = vmatprep.subr.mxu0 0.0
    %2886 = vmatpush2.xpose.msra.mxu0 0.0
    %2887 = vmatprep.subr.mxu0 0.0
    %2888 = vmatpush2.xpose.msra.mxu0 0.0
    %2889 = vmatprep.subr.mxu0 0.0
    %2890 = vmatpush2.xpose.msra.mxu0 0.0
    %2891 = vmatprep.subr.mxu0 0.0
    %2892 = vmatpush2.xpose.msra.mxu0 0.0
    %2893 = vmatprep.subr.mxu0 0.0
    %2894 = vmatpush2.xpose.msra.mxu0 0.0
    %2895 = vmatprep.subr.mxu0 0.0
    %2896 = vmatpush2.xpose.msra.mxu0 0.0
    %2897 = vmatprep.subr.mxu0 0.0
    %2898 = vmatpush2.xpose.msra.mxu0 0.0
    %2899 = vmatprep.subr.mxu0 0.0
    %2900 = vmatpush2.xpose.msra.mxu0 0.0
    %2901 = vmatprep.subr.mxu0 0.0
    %2902 = vmatpush2.xpose.msra.mxu0 0.0
    %2903 = vmatprep.subr.mxu0 0.0
    %2904 = vmatpush2.xpose.msra.mxu0 0.0
    %2905 = vmatprep.subr.mxu0 0.0
    %2906 = vmatpush2.xpose.msra.mxu0 0.0
    %2907 = vmatprep.subr.mxu0 0.0
    %2908 = vmatpush2.xpose.msra.mxu0 0.0
    %2909 = vmatprep.subr.mxu0 0.0
    %2910 = vmatpush2.xpose.msra.mxu0 0.0
    %2911 = vmatprep.subr.mxu0 0.0
    %2912 = vmatpush2.xpose.msra.mxu0 0.0
    %2913 = vmatprep.mubr.f32.mxu0 0.0
    %2914 = vmatmul.mubr.f32.gmra.mxu0 %v2757
    %v2915 = vpop.f32.mrf.mxu0
    %v2916 = vadd.f32 0.0, %v2915
    %v2917 = vpop.f32.mrf.mxu0
    %2918 = vdwg.mxu0
    %v2919 = vsel %vm223, %v2916, -inf
    %2920 = vmax.xlane.f32.xlu0 %v2919
    %v2921 = vpop.xlane.xlu0 %2920
    %v2922 = vsub.f32 %v2916, %v2921
    %v2923 = vmul.f32 %v2922, 1.442695
    %v2924 = vpow.pop %v2923
    %v2925 = vmul.f32 %v2924, %v437
    %v2926 = vsel %vm223, %v2925, 0.0
    %2927 = vadd.xlane.f32.xlu0 %v2926
    %v2928 = vpop.xlane.xlu0 %2927
    %v2929 = vmax.f32 %v2928, 1e-30
    %v2930 = vrcp.pop %v2929
    %v2931 = vmul.f32 %v2925, %v2930
    %2932 = vrot.lane.b32.xlu0 %v2753, 32
    %v2933 = vpop.permute.xlu0 %2932
    %v2936 = vsel %vm223, %v2931, 0
    %2938 = vmatprep.subr.mxu0 0.0
    %2939 = vmatpush1.msra.mxu0 0.0
    %2940 = vmatprep.subr.mxu0 0.0
    %2941 = vmatpush1.msra.mxu0 0.0
    %2942 = vmatprep.subr.mxu0 0.0
    %2943 = vmatpush1.msra.mxu0 0.0
    %2944 = vmatprep.subr.mxu0 0.0
    %2945 = vmatpush1.msra.mxu0 0.0
    %2946 = vmatprep.subr.mxu0 0.0
    %2947 = vmatpush1.msra.mxu0 0.0
    %2948 = vmatprep.subr.mxu0 0.0
    %2949 = vmatpush1.msra.mxu0 0.0
    %2950 = vmatprep.subr.mxu0 0.0
    %2951 = vmatpush1.msra.mxu0 0.0
    %2952 = vmatprep.subr.mxu0 0.0
    %2953 = vmatpush1.msra.mxu0 0.0
    %2954 = vmatprep.subr.mxu0 0.0
    %2955 = vmatpush1.msra.mxu0 0.0
    %2956 = vmatprep.subr.mxu0 0.0
    %2957 = vmatpush1.msra.mxu0 0.0
    %2958 = vmatprep.subr.mxu0 0.0
    %2959 = vmatpush1.msra.mxu0 0.0
    %2960 = vmatprep.subr.mxu0 0.0
    %2961 = vmatpush1.msra.mxu0 0.0
    %2962 = vmatprep.subr.mxu0 0.0
    %2963 = vmatpush1.msra.mxu0 0.0
    %2964 = vmatprep.subr.mxu0 0.0
    %2965 = vmatpush1.msra.mxu0 0.0
    %2966 = vmatprep.subr.mxu0 0.0
    %2967 = vmatpush1.msra.mxu0 0.0
    %2968 = vmatprep.subr.mxu0 0.0
    %2969 = vmatpush1.msra.mxu0 %v2933
    %2970 = vmatprep.subr.mxu0 0.0
    %2971 = vmatpush2.msra.mxu0 0.0
    %2972 = vmatprep.subr.mxu0 0.0
    %2973 = vmatpush2.msra.mxu0 0.0
    %2974 = vmatprep.subr.mxu0 0.0
    %2975 = vmatpush2.msra.mxu0 0.0
    %2976 = vmatprep.subr.mxu0 0.0
    %2977 = vmatpush2.msra.mxu0 0.0
    %2978 = vmatprep.subr.mxu0 0.0
    %2979 = vmatpush2.msra.mxu0 0.0
    %2980 = vmatprep.subr.mxu0 0.0
    %2981 = vmatpush2.msra.mxu0 0.0
    %2982 = vmatprep.subr.mxu0 0.0
    %2983 = vmatpush2.msra.mxu0 0.0
    %2984 = vmatprep.subr.mxu0 0.0
    %2985 = vmatpush2.msra.mxu0 0.0
    %2986 = vmatprep.subr.mxu0 0.0
    %2987 = vmatpush2.msra.mxu0 0.0
    %2988 = vmatprep.subr.mxu0 0.0
    %2989 = vmatpush2.msra.mxu0 0.0
    %2990 = vmatprep.subr.mxu0 0.0
    %2991 = vmatpush2.msra.mxu0 0.0
    %2992 = vmatprep.subr.mxu0 0.0
    %2993 = vmatpush2.msra.mxu0 0.0
    %2994 = vmatprep.subr.mxu0 0.0
    %2995 = vmatpush2.msra.mxu0 0.0
    %2996 = vmatprep.subr.mxu0 0.0
    %2997 = vmatpush2.msra.mxu0 0.0
    %2998 = vmatprep.subr.mxu0 0.0
    %2999 = vmatpush2.msra.mxu0 0.0
    %3000 = vmatprep.subr.mxu0 0.0
    %3001 = vmatpush2.msra.mxu0 0.0
    %3002 = vmatprep.mubr.f32.mxu0 0.0
    %3003 = vmatmul.mubr.f32.gmra.mxu0 %v2936
    %v3004 = vpop.f32.mrf.mxu0
    %v3005 = vadd.f32 0.0, %v3004
    %v3006 = vpop.f32.mrf.mxu0
    %3007 = vdwg.mxu0
    %3008 = vrot.lane.b32.xlu0 %v2753, 64
    %v3009 = vpop.permute.xlu0 %3008
    %v3012 = vsel %vm223, %v2844, 0
    %3014 = vmatprep.subr.mxu0 0.0
    %3015 = vmatpush1.msra.mxu0 0.0
    %3016 = vmatprep.subr.mxu0 0.0
    %3017 = vmatpush1.msra.mxu0 0.0
    %3018 = vmatprep.subr.mxu0 0.0
    %3019 = vmatpush1.msra.mxu0 0.0
    %3020 = vmatprep.subr.mxu0 0.0
    %3021 = vmatpush1.msra.mxu0 0.0
    %3022 = vmatprep.subr.mxu0 0.0
    %3023 = vmatpush1.msra.mxu0 0.0
    %3024 = vmatprep.subr.mxu0 0.0
    %3025 = vmatpush1.msra.mxu0 0.0
    %3026 = vmatprep.subr.mxu0 0.0
    %3027 = vmatpush1.msra.mxu0 0.0
    %3028 = vmatprep.subr.mxu0 0.0
    %3029 = vmatpush1.msra.mxu0 0.0
    %3030 = vmatprep.subr.mxu0 0.0
    %3031 = vmatpush1.msra.mxu0 0.0
    %3032 = vmatprep.subr.mxu0 0.0
    %3033 = vmatpush1.msra.mxu0 0.0
    %3034 = vmatprep.subr.mxu0 0.0
    %3035 = vmatpush1.msra.mxu0 0.0
    %3036 = vmatprep.subr.mxu0 0.0
    %3037 = vmatpush1.msra.mxu0 0.0
    %3038 = vmatprep.subr.mxu0 0.0
    %3039 = vmatpush1.msra.mxu0 0.0
    %3040 = vmatprep.subr.mxu0 0.0
    %3041 = vmatpush1.msra.mxu0 0.0
    %3042 = vmatprep.subr.mxu0 0.0
    %3043 = vmatpush1.msra.mxu0 0.0
    %3044 = vmatprep.subr.mxu0 0.0
    %3045 = vmatpush1.msra.mxu0 %v3009
    %3046 = vmatprep.subr.mxu0 0.0
    %3047 = vmatpush2.msra.mxu0 0.0
    %3048 = vmatprep.subr.mxu0 0.0
    %3049 = vmatpush2.msra.mxu0 0.0
    %3050 = vmatprep.subr.mxu0 0.0
    %3051 = vmatpush2.msra.mxu0 0.0
    %3052 = vmatprep.subr.mxu0 0.0
    %3053 = vmatpush2.msra.mxu0 0.0
    %3054 = vmatprep.subr.mxu0 0.0
    %3055 = vmatpush2.msra.mxu0 0.0
    %3056 = vmatprep.subr.mxu0 0.0
    %3057 = vmatpush2.msra.mxu0 0.0
    %3058 = vmatprep.subr.mxu0 0.0
    %3059 = vmatpush2.msra.mxu0 0.0
    %3060 = vmatprep.subr.mxu0 0.0
    %3061 = vmatpush2.msra.mxu0 0.0
    %3062 = vmatprep.subr.mxu0 0.0
    %3063 = vmatpush2.msra.mxu0 0.0
    %3064 = vmatprep.subr.mxu0 0.0
    %3065 = vmatpush2.msra.mxu0 0.0
    %3066 = vmatprep.subr.mxu0 0.0
    %3067 = vmatpush2.msra.mxu0 0.0
    %3068 = vmatprep.subr.mxu0 0.0
    %3069 = vmatpush2.msra.mxu0 0.0
    %3070 = vmatprep.subr.mxu0 0.0
    %3071 = vmatpush2.msra.mxu0 0.0
    %3072 = vmatprep.subr.mxu0 0.0
    %3073 = vmatpush2.msra.mxu0 0.0
    %3074 = vmatprep.subr.mxu0 0.0
    %3075 = vmatpush2.msra.mxu0 0.0
    %3076 = vmatprep.subr.mxu0 0.0
    %3077 = vmatpush2.msra.mxu0 0.0
    %3078 = vmatprep.mubr.f32.mxu0 0.0
    %3079 = vmatmul.mubr.f32.gmra.mxu0 %v3012
    %v3080 = vpop.f32.mrf.mxu0
    %v3081 = vadd.f32 %v3005, %v3080
    %v3082 = vpop.f32.mrf.mxu0
    %3083 = vdwg.mxu0
    %s3084 = scalar_lea.vmem [#allocation10], 160
    %v3085 = vld [vmem:[%s3084] sm:$0xff]
    %v3086 = vld [vmem:[%s3084 + $0x8] sm:$0xff]
    %v3087 = vld [vmem:[%s3084 + $0x10] sm:$0xff]
    %v3088 = vld [vmem:[%s3084 + $0x18] sm:$0xff]
    %s3089 = scalar_lea.vmem [#allocation11], 5
    %v3090 = vld [vmem:[%s3089] sm:$0x1]
    %v3092 = vlaneseq
    %v3093 = vshrl.u32 %v3092, 7
    %v3094 = vsub.s32 0, %v3093
    %v3095 = vrot.slane %v3090, %v3094
    %3097 = vmatprep.subr.mxu0 0.0
    %3098 = vmatpush1.msra.mxu0 0.0
    %3099 = vmatprep.subr.mxu0 0.0
    %3100 = vmatpush1.msra.mxu0 0.0
    %3101 = vmatprep.subr.mxu0 0.0
    %3102 = vmatpush1.msra.mxu0 0.0
    %3103 = vmatprep.subr.mxu0 0.0
    %3104 = vmatpush1.msra.mxu0 0.0
    %3105 = vmatprep.subr.mxu0 0.0
    %3106 = vmatpush1.msra.mxu0 0.0
    %3107 = vmatprep.subr.mxu0 0.0
    %3108 = vmatpush1.msra.mxu0 0.0
    %3109 = vmatprep.subr.mxu0 0.0
    %3110 = vmatpush1.msra.mxu0 0.0
    %3111 = vmatprep.subr.mxu0 0.0
    %3112 = vmatpush1.msra.mxu0 0.0
    %3113 = vmatprep.subr.mxu0 0.0
    %3114 = vmatpush1.msra.mxu0 0.0
    %3115 = vmatprep.subr.mxu0 0.0
    %3116 = vmatpush1.msra.mxu0 0.0
    %3117 = vmatprep.subr.mxu0 0.0
    %3118 = vmatpush1.msra.mxu0 0.0
    %3119 = vmatprep.subr.mxu0 0.0
    %3120 = vmatpush1.msra.mxu0 0.0
    %3121 = vmatprep.subr.mxu0 0.0
    %3122 = vmatpush1.msra.mxu0 %v3088
    %3123 = vmatprep.subr.mxu0 0.0
    %3124 = vmatpush1.msra.mxu0 %v3087
    %3125 = vmatprep.subr.mxu0 0.0
    %3126 = vmatpush1.msra.mxu0 %v3086
    %3127 = vmatprep.subr.mxu0 0.0
    %3128 = vmatpush1.msra.mxu0 %v3085
    %3129 = vmatprep.subr.mxu0 0.0
    %3130 = vmatpush2.msra.mxu0 0.0
    %3131 = vmatprep.subr.mxu0 0.0
    %3132 = vmatpush2.msra.mxu0 0.0
    %3133 = vmatprep.subr.mxu0 0.0
    %3134 = vmatpush2.msra.mxu0 0.0
    %3135 = vmatprep.subr.mxu0 0.0
    %3136 = vmatpush2.msra.mxu0 0.0
    %3137 = vmatprep.subr.mxu0 0.0
    %3138 = vmatpush2.msra.mxu0 0.0
    %3139 = vmatprep.subr.mxu0 0.0
    %3140 = vmatpush2.msra.mxu0 0.0
    %3141 = vmatprep.subr.mxu0 0.0
    %3142 = vmatpush2.msra.mxu0 0.0
    %3143 = vmatprep.subr.mxu0 0.0
    %3144 = vmatpush2.msra.mxu0 0.0
    %3145 = vmatprep.subr.mxu0 0.0
    %3146 = vmatpush2.msra.mxu0 0.0
    %3147 = vmatprep.subr.mxu0 0.0
    %3148 = vmatpush2.msra.mxu0 0.0
    %3149 = vmatprep.subr.mxu0 0.0
    %3150 = vmatpush2.msra.mxu0 0.0
    %3151 = vmatprep.subr.mxu0 0.0
    %3152 = vmatpush2.msra.mxu0 0.0
    %3153 = vmatprep.subr.mxu0 0.0
    %3154 = vmatpush2.msra.mxu0 0.0
    %3155 = vmatprep.subr.mxu0 0.0
    %3156 = vmatpush2.msra.mxu0 0.0
    %3157 = vmatprep.subr.mxu0 0.0
    %3158 = vmatpush2.msra.mxu0 0.0
    %3159 = vmatprep.subr.mxu0 0.0
    %3160 = vmatpush2.msra.mxu0 0.0
    %3161 = vmatprep.mubr.f32.mxu0 0.0
    %3162 = vmatmul.mubr.f32.gmra.mxu0 %v2104
    %v3163 = vpop.f32.mrf.mxu0
    %v3164 = vadd.f32 %v3095, %v3163
    %v3165 = vpop.f32.mrf.mxu0
    %3166 = vdwg.mxu0
    %v3168 = vsel %vm451, %v3164, 0
    %3170 = vmatprep.subr.mxu0 0.0
    %3171 = vmatpush1.xpose.msra.mxu0 0.0
    %3172 = vmatprep.subr.mxu0 0.0
    %3173 = vmatpush1.xpose.msra.mxu0 0.0
    %3174 = vmatprep.subr.mxu0 0.0
    %3175 = vmatpush1.xpose.msra.mxu0 0.0
    %3176 = vmatprep.subr.mxu0 0.0
    %3177 = vmatpush1.xpose.msra.mxu0 0.0
    %3178 = vmatprep.subr.mxu0 0.0
    %3179 = vmatpush1.xpose.msra.mxu0 0.0
    %3180 = vmatprep.subr.mxu0 0.0
    %3181 = vmatpush1.xpose.msra.mxu0 0.0
    %3182 = vmatprep.subr.mxu0 0.0
    %3183 = vmatpush1.xpose.msra.mxu0 0.0
    %3184 = vmatprep.subr.mxu0 0.0
    %3185 = vmatpush1.xpose.msra.mxu0 0.0
    %3186 = vmatprep.subr.mxu0 0.0
    %3187 = vmatpush1.xpose.msra.mxu0 0.0
    %3188 = vmatprep.subr.mxu0 0.0
    %3189 = vmatpush1.xpose.msra.mxu0 0.0
    %3190 = vmatprep.subr.mxu0 0.0
    %3191 = vmatpush1.xpose.msra.mxu0 0.0
    %3192 = vmatprep.subr.mxu0 0.0
    %3193 = vmatpush1.xpose.msra.mxu0 0.0
    %3194 = vmatprep.subr.mxu0 0.0
    %3195 = vmatpush1.xpose.msra.mxu0 0.0
    %3196 = vmatprep.subr.mxu0 0.0
    %3197 = vmatpush1.xpose.msra.mxu0 0.0
    %3198 = vmatprep.subr.mxu0 0.0
    %3199 = vmatpush1.xpose.msra.mxu0 0.0
    %3200 = vmatprep.subr.mxu0 0.0
    %3201 = vmatpush1.xpose.msra.mxu0 %v3168
    %3202 = vmatprep.subr.mxu0 0.0
    %3203 = vmatpush2.xpose.msra.mxu0 0.0
    %3204 = vmatprep.subr.mxu0 0.0
    %3205 = vmatpush2.xpose.msra.mxu0 0.0
    %3206 = vmatprep.subr.mxu0 0.0
    %3207 = vmatpush2.xpose.msra.mxu0 0.0
    %3208 = vmatprep.subr.mxu0 0.0
    %3209 = vmatpush2.xpose.msra.mxu0 0.0
    %3210 = vmatprep.subr.mxu0 0.0
    %3211 = vmatpush2.xpose.msra.mxu0 0.0
    %3212 = vmatprep.subr.mxu0 0.0
    %3213 = vmatpush2.xpose.msra.mxu0 0.0
    %3214 = vmatprep.subr.mxu0 0.0
    %3215 = vmatpush2.xpose.msra.mxu0 0.0
    %3216 = vmatprep.subr.mxu0 0.0
    %3217 = vmatpush2.xpose.msra.mxu0 0.0
    %3218 = vmatprep.subr.mxu0 0.0
    %3219 = vmatpush2.xpose.msra.mxu0 0.0
    %3220 = vmatprep.subr.mxu0 0.0
    %3221 = vmatpush2.xpose.msra.mxu0 0.0
    %3222 = vmatprep.subr.mxu0 0.0
    %3223 = vmatpush2.xpose.msra.mxu0 0.0
    %3224 = vmatprep.subr.mxu0 0.0
    %3225 = vmatpush2.xpose.msra.mxu0 0.0
    %3226 = vmatprep.subr.mxu0 0.0
    %3227 = vmatpush2.xpose.msra.mxu0 0.0
    %3228 = vmatprep.subr.mxu0 0.0
    %3229 = vmatpush2.xpose.msra.mxu0 0.0
    %3230 = vmatprep.subr.mxu0 0.0
    %3231 = vmatpush2.xpose.msra.mxu0 0.0
    %3232 = vmatprep.subr.mxu0 0.0
    %3233 = vmatpush2.xpose.msra.mxu0 0.0
    %3234 = vmatprep.mubr.f32.mxu0 0.0
    %3235 = vmatmul.mubr.f32.gmra.mxu0 %v2757
    %v3236 = vpop.f32.mrf.mxu0
    %v3237 = vadd.f32 0.0, %v3236
    %v3238 = vpop.f32.mrf.mxu0
    %3239 = vdwg.mxu0
    %v3240 = vsel %vm223, %v3237, -inf
    %3241 = vmax.xlane.f32.xlu0 %v3240
    %v3242 = vpop.xlane.xlu0 %3241
    %v3243 = vsub.f32 %v3237, %v3242
    %v3244 = vmul.f32 %v3243, 1.442695
    %v3245 = vpow.pop %v3244
    %v3246 = vmul.f32 %v3245, %v439
    %v3247 = vsel %vm223, %v3246, 0.0
    %3248 = vadd.xlane.f32.xlu0 %v3247
    %v3249 = vpop.xlane.xlu0 %3248
    %v3250 = vmax.f32 %v3249, 1e-30
    %v3251 = vrcp.pop %v3250
    %v3252 = vmul.f32 %v3246, %v3251
    %3253 = vrot.lane.b32.xlu0 %v3164, 96
    %v3254 = vpop.permute.xlu0 %3253
    %v3255 = vsel %vm451, %v3254, 0
    %3257 = vmatprep.subr.mxu0 0.0
    %3258 = vmatpush1.xpose.msra.mxu0 0.0
    %3259 = vmatprep.subr.mxu0 0.0
    %3260 = vmatpush1.xpose.msra.mxu0 0.0
    %3261 = vmatprep.subr.mxu0 0.0
    %3262 = vmatpush1.xpose.msra.mxu0 0.0
    %3263 = vmatprep.subr.mxu0 0.0
    %3264 = vmatpush1.xpose.msra.mxu0 0.0
    %3265 = vmatprep.subr.mxu0 0.0
    %3266 = vmatpush1.xpose.msra.mxu0 0.0
    %3267 = vmatprep.subr.mxu0 0.0
    %3268 = vmatpush1.xpose.msra.mxu0 0.0
    %3269 = vmatprep.subr.mxu0 0.0
    %3270 = vmatpush1.xpose.msra.mxu0 0.0
    %3271 = vmatprep.subr.mxu0 0.0
    %3272 = vmatpush1.xpose.msra.mxu0 0.0
    %3273 = vmatprep.subr.mxu0 0.0
    %3274 = vmatpush1.xpose.msra.mxu0 0.0
    %3275 = vmatprep.subr.mxu0 0.0
    %3276 = vmatpush1.xpose.msra.mxu0 0.0
    %3277 = vmatprep.subr.mxu0 0.0
    %3278 = vmatpush1.xpose.msra.mxu0 0.0
    %3279 = vmatprep.subr.mxu0 0.0
    %3280 = vmatpush1.xpose.msra.mxu0 0.0
    %3281 = vmatprep.subr.mxu0 0.0
    %3282 = vmatpush1.xpose.msra.mxu0 0.0
    %3283 = vmatprep.subr.mxu0 0.0
    %3284 = vmatpush1.xpose.msra.mxu0 0.0
    %3285 = vmatprep.subr.mxu0 0.0
    %3286 = vmatpush1.xpose.msra.mxu0 0.0
    %3287 = vmatprep.subr.mxu0 0.0
    %3288 = vmatpush1.xpose.msra.mxu0 %v3255
    %3289 = vmatprep.subr.mxu0 0.0
    %3290 = vmatpush2.xpose.msra.mxu0 0.0
    %3291 = vmatprep.subr.mxu0 0.0
    %3292 = vmatpush2.xpose.msra.mxu0 0.0
    %3293 = vmatprep.subr.mxu0 0.0
    %3294 = vmatpush2.xpose.msra.mxu0 0.0
    %3295 = vmatprep.subr.mxu0 0.0
    %3296 = vmatpush2.xpose.msra.mxu0 0.0
    %3297 = vmatprep.subr.mxu0 0.0
    %3298 = vmatpush2.xpose.msra.mxu0 0.0
    %3299 = vmatprep.subr.mxu0 0.0
    %3300 = vmatpush2.xpose.msra.mxu0 0.0
    %3301 = vmatprep.subr.mxu0 0.0
    %3302 = vmatpush2.xpose.msra.mxu0 0.0
    %3303 = vmatprep.subr.mxu0 0.0
    %3304 = vmatpush2.xpose.msra.mxu0 0.0
    %3305 = vmatprep.subr.mxu0 0.0
    %3306 = vmatpush2.xpose.msra.mxu0 0.0
    %3307 = vmatprep.subr.mxu0 0.0
    %3308 = vmatpush2.xpose.msra.mxu0 0.0
    %3309 = vmatprep.subr.mxu0 0.0
    %3310 = vmatpush2.xpose.msra.mxu0 0.0
    %3311 = vmatprep.subr.mxu0 0.0
    %3312 = vmatpush2.xpose.msra.mxu0 0.0
    %3313 = vmatprep.subr.mxu0 0.0
    %3314 = vmatpush2.xpose.msra.mxu0 0.0
    %3315 = vmatprep.subr.mxu0 0.0
    %3316 = vmatpush2.xpose.msra.mxu0 0.0
    %3317 = vmatprep.subr.mxu0 0.0
    %3318 = vmatpush2.xpose.msra.mxu0 0.0
    %3319 = vmatprep.subr.mxu0 0.0
    %3320 = vmatpush2.xpose.msra.mxu0 0.0
    %3321 = vmatprep.mubr.f32.mxu0 0.0
    %3322 = vmatmul.mubr.f32.gmra.mxu0 %v2757
    %v3323 = vpop.f32.mrf.mxu0
    %v3324 = vadd.f32 0.0, %v3323
    %v3325 = vpop.f32.mrf.mxu0
    %3326 = vdwg.mxu0
    %v3327 = vsel %vm223, %v3324, -inf
    %3328 = vmax.xlane.f32.xlu0 %v3327
    %v3329 = vpop.xlane.xlu0 %3328
    %v3330 = vsub.f32 %v3324, %v3329
    %v3331 = vmul.f32 %v3330, 1.442695
    %v3332 = vpow.pop %v3331
    %v3333 = vmul.f32 %v3332, %v439
    %v3334 = vsel %vm223, %v3333, 0.0
    %3335 = vadd.xlane.f32.xlu0 %v3334
    %v3336 = vpop.xlane.xlu0 %3335
    %v3337 = vmax.f32 %v3336, 1e-30
    %v3338 = vrcp.pop %v3337
    %v3339 = vmul.f32 %v3333, %v3338
    %3340 = vrot.lane.b32.xlu0 %v3164, 32
    %v3341 = vpop.permute.xlu0 %3340
    %v3344 = vsel %vm223, %v3339, 0
    %3346 = vmatprep.subr.mxu0 0.0
    %3347 = vmatpush1.msra.mxu0 0.0
    %3348 = vmatprep.subr.mxu0 0.0
    %3349 = vmatpush1.msra.mxu0 0.0
    %3350 = vmatprep.subr.mxu0 0.0
    %3351 = vmatpush1.msra.mxu0 0.0
    %3352 = vmatprep.subr.mxu0 0.0
    %3353 = vmatpush1.msra.mxu0 0.0
    %3354 = vmatprep.subr.mxu0 0.0
    %3355 = vmatpush1.msra.mxu0 0.0
    %3356 = vmatprep.subr.mxu0 0.0
    %3357 = vmatpush1.msra.mxu0 0.0
    %3358 = vmatprep.subr.mxu0 0.0
    %3359 = vmatpush1.msra.mxu0 0.0
    %3360 = vmatprep.subr.mxu0 0.0
    %3361 = vmatpush1.msra.mxu0 0.0
    %3362 = vmatprep.subr.mxu0 0.0
    %3363 = vmatpush1.msra.mxu0 0.0
    %3364 = vmatprep.subr.mxu0 0.0
    %3365 = vmatpush1.msra.mxu0 0.0
    %3366 = vmatprep.subr.mxu0 0.0
    %3367 = vmatpush1.msra.mxu0 0.0
    %3368 = vmatprep.subr.mxu0 0.0
    %3369 = vmatpush1.msra.mxu0 0.0
    %3370 = vmatprep.subr.mxu0 0.0
    %3371 = vmatpush1.msra.mxu0 0.0
    %3372 = vmatprep.subr.mxu0 0.0
    %3373 = vmatpush1.msra.mxu0 0.0
    %3374 = vmatprep.subr.mxu0 0.0
    %3375 = vmatpush1.msra.mxu0 0.0
    %3376 = vmatprep.subr.mxu0 0.0
    %3377 = vmatpush1.msra.mxu0 %v3341
    %3378 = vmatprep.subr.mxu0 0.0
    %3379 = vmatpush2.msra.mxu0 0.0
    %3380 = vmatprep.subr.mxu0 0.0
    %3381 = vmatpush2.msra.mxu0 0.0
    %3382 = vmatprep.subr.mxu0 0.0
    %3383 = vmatpush2.msra.mxu0 0.0
    %3384 = vmatprep.subr.mxu0 0.0
    %3385 = vmatpush2.msra.mxu0 0.0
    %3386 = vmatprep.subr.mxu0 0.0
    %3387 = vmatpush2.msra.mxu0 0.0
    %3388 = vmatprep.subr.mxu0 0.0
    %3389 = vmatpush2.msra.mxu0 0.0
    %3390 = vmatprep.subr.mxu0 0.0
    %3391 = vmatpush2.msra.mxu0 0.0
    %3392 = vmatprep.subr.mxu0 0.0
    %3393 = vmatpush2.msra.mxu0 0.0
    %3394 = vmatprep.subr.mxu0 0.0
    %3395 = vmatpush2.msra.mxu0 0.0
    %3396 = vmatprep.subr.mxu0 0.0
    %3397 = vmatpush2.msra.mxu0 0.0
    %3398 = vmatprep.subr.mxu0 0.0
    %3399 = vmatpush2.msra.mxu0 0.0
    %3400 = vmatprep.subr.mxu0 0.0
    %3401 = vmatpush2.msra.mxu0 0.0
    %3402 = vmatprep.subr.mxu0 0.0
    %3403 = vmatpush2.msra.mxu0 0.0
    %3404 = vmatprep.subr.mxu0 0.0
    %3405 = vmatpush2.msra.mxu0 0.0
    %3406 = vmatprep.subr.mxu0 0.0
    %3407 = vmatpush2.msra.mxu0 0.0
    %3408 = vmatprep.subr.mxu0 0.0
    %3409 = vmatpush2.msra.mxu0 0.0
    %3410 = vmatprep.mubr.f32.mxu0 0.0
    %3411 = vmatmul.mubr.f32.gmra.mxu0 %v3344
    %v3412 = vpop.f32.mrf.mxu0
    %v3413 = vadd.f32 0.0, %v3412
    %v3414 = vpop.f32.mrf.mxu0
    %3415 = vdwg.mxu0
    %3416 = vrot.lane.b32.xlu0 %v3164, 64
    %v3417 = vpop.permute.xlu0 %3416
    %v3420 = vsel %vm223, %v3252, 0
    %3422 = vmatprep.subr.mxu0 0.0
    %3423 = vmatpush1.msra.mxu0 0.0
    %3424 = vmatprep.subr.mxu0 0.0
    %3425 = vmatpush1.msra.mxu0 0.0
    %3426 = vmatprep.subr.mxu0 0.0
    %3427 = vmatpush1.msra.mxu0 0.0
    %3428 = vmatprep.subr.mxu0 0.0
    %3429 = vmatpush1.msra.mxu0 0.0
    %3430 = vmatprep.subr.mxu0 0.0
    %3431 = vmatpush1.msra.mxu0 0.0
    %3432 = vmatprep.subr.mxu0 0.0
    %3433 = vmatpush1.msra.mxu0 0.0
    %3434 = vmatprep.subr.mxu0 0.0
    %3435 = vmatpush1.msra.mxu0 0.0
    %3436 = vmatprep.subr.mxu0 0.0
    %3437 = vmatpush1.msra.mxu0 0.0
    %3438 = vmatprep.subr.mxu0 0.0
    %3439 = vmatpush1.msra.mxu0 0.0
    %3440 = vmatprep.subr.mxu0 0.0
    %3441 = vmatpush1.msra.mxu0 0.0
    %3442 = vmatprep.subr.mxu0 0.0
    %3443 = vmatpush1.msra.mxu0 0.0
    %3444 = vmatprep.subr.mxu0 0.0
    %3445 = vmatpush1.msra.mxu0 0.0
    %3446 = vmatprep.subr.mxu0 0.0
    %3447 = vmatpush1.msra.mxu0 0.0
    %3448 = vmatprep.subr.mxu0 0.0
    %3449 = vmatpush1.msra.mxu0 0.0
    %3450 = vmatprep.subr.mxu0 0.0
    %3451 = vmatpush1.msra.mxu0 0.0
    %3452 = vmatprep.subr.mxu0 0.0
    %3453 = vmatpush1.msra.mxu0 %v3417
    %3454 = vmatprep.subr.mxu0 0.0
    %3455 = vmatpush2.msra.mxu0 0.0
    %3456 = vmatprep.subr.mxu0 0.0
    %3457 = vmatpush2.msra.mxu0 0.0
    %3458 = vmatprep.subr.mxu0 0.0
    %3459 = vmatpush2.msra.mxu0 0.0
    %3460 = vmatprep.subr.mxu0 0.0
    %3461 = vmatpush2.msra.mxu0 0.0
    %3462 = vmatprep.subr.mxu0 0.0
    %3463 = vmatpush2.msra.mxu0 0.0
    %3464 = vmatprep.subr.mxu0 0.0
    %3465 = vmatpush2.msra.mxu0 0.0
    %3466 = vmatprep.subr.mxu0 0.0
    %3467 = vmatpush2.msra.mxu0 0.0
    %3468 = vmatprep.subr.mxu0 0.0
    %3469 = vmatpush2.msra.mxu0 0.0
    %3470 = vmatprep.subr.mxu0 0.0
    %3471 = vmatpush2.msra.mxu0 0.0
    %3472 = vmatprep.subr.mxu0 0.0
    %3473 = vmatpush2.msra.mxu0 0.0
    %3474 = vmatprep.subr.mxu0 0.0
    %3475 = vmatpush2.msra.mxu0 0.0
    %3476 = vmatprep.subr.mxu0 0.0
    %3477 = vmatpush2.msra.mxu0 0.0
    %3478 = vmatprep.subr.mxu0 0.0
    %3479 = vmatpush2.msra.mxu0 0.0
    %3480 = vmatprep.subr.mxu0 0.0
    %3481 = vmatpush2.msra.mxu0 0.0
    %3482 = vmatprep.subr.mxu0 0.0
    %3483 = vmatpush2.msra.mxu0 0.0
    %3484 = vmatprep.subr.mxu0 0.0
    %3485 = vmatpush2.msra.mxu0 0.0
    %3486 = vmatprep.mubr.f32.mxu0 0.0
    %3487 = vmatmul.mubr.f32.gmra.mxu0 %v3420
    %v3488 = vpop.f32.mrf.mxu0
    %v3489 = vadd.f32 %v3413, %v3488
    %v3490 = vpop.f32.mrf.mxu0
    %3491 = vdwg.mxu0
    %v3492 = vadd.f32 %v3081, %v3489
    %s3493 = scalar_lea.vmem [#allocation13], 64
    %v3494 = vld [vmem:[%s3493] sm:$0xff]
    %v3495 = vld [vmem:[%s3493 + $0x8] sm:$0xff]
    %v3496 = vld [vmem:[%s3493 + $0x10] sm:$0xff]
    %v3497 = vld [vmem:[%s3493 + $0x18] sm:$0xff]
    %s3498 = scalar_lea.vmem [#allocation14], 2
    %v3499 = vld [vmem:[%s3498] sm:$0x1]
    %v3501 = vlaneseq
    %v3502 = vshrl.u32 %v3501, 7
    %v3503 = vsub.s32 0, %v3502
    %v3504 = vrot.slane %v3499, %v3503
    %v3507 = vsel %vm451, %v3492, 0
    %3509 = vmatprep.subr.mxu0 0.0
    %3510 = vmatpush1.msra.mxu0 0.0
    %3511 = vmatprep.subr.mxu0 0.0
    %3512 = vmatpush1.msra.mxu0 0.0
    %3513 = vmatprep.subr.mxu0 0.0
    %3514 = vmatpush1.msra.mxu0 0.0
    %3515 = vmatprep.subr.mxu0 0.0
    %3516 = vmatpush1.msra.mxu0 0.0
    %3517 = vmatprep.subr.mxu0 0.0
    %3518 = vmatpush1.msra.mxu0 0.0
    %3519 = vmatprep.subr.mxu0 0.0
    %3520 = vmatpush1.msra.mxu0 0.0
    %3521 = vmatprep.subr.mxu0 0.0
    %3522 = vmatpush1.msra.mxu0 0.0
    %3523 = vmatprep.subr.mxu0 0.0
    %3524 = vmatpush1.msra.mxu0 0.0
    %3525 = vmatprep.subr.mxu0 0.0
    %3526 = vmatpush1.msra.mxu0 0.0
    %3527 = vmatprep.subr.mxu0 0.0
    %3528 = vmatpush1.msra.mxu0 0.0
    %3529 = vmatprep.subr.mxu0 0.0
    %3530 = vmatpush1.msra.mxu0 0.0
    %3531 = vmatprep.subr.mxu0 0.0
    %3532 = vmatpush1.msra.mxu0 0.0
    %3533 = vmatprep.subr.mxu0 0.0
    %3534 = vmatpush1.msra.mxu0 %v3497
    %3535 = vmatprep.subr.mxu0 0.0
    %3536 = vmatpush1.msra.mxu0 %v3496
    %3537 = vmatprep.subr.mxu0 0.0
    %3538 = vmatpush1.msra.mxu0 %v3495
    %3539 = vmatprep.subr.mxu0 0.0
    %3540 = vmatpush1.msra.mxu0 %v3494
    %3541 = vmatprep.subr.mxu0 0.0
    %3542 = vmatpush2.msra.mxu0 0.0
    %3543 = vmatprep.subr.mxu0 0.0
    %3544 = vmatpush2.msra.mxu0 0.0
    %3545 = vmatprep.subr.mxu0 0.0
    %3546 = vmatpush2.msra.mxu0 0.0
    %3547 = vmatprep.subr.mxu0 0.0
    %3548 = vmatpush2.msra.mxu0 0.0
    %3549 = vmatprep.subr.mxu0 0.0
    %3550 = vmatpush2.msra.mxu0 0.0
    %3551 = vmatprep.subr.mxu0 0.0
    %3552 = vmatpush2.msra.mxu0 0.0
    %3553 = vmatprep.subr.mxu0 0.0
    %3554 = vmatpush2.msra.mxu0 0.0
    %3555 = vmatprep.subr.mxu0 0.0
    %3556 = vmatpush2.msra.mxu0 0.0
    %3557 = vmatprep.subr.mxu0 0.0
    %3558 = vmatpush2.msra.mxu0 0.0
    %3559 = vmatprep.subr.mxu0 0.0
    %3560 = vmatpush2.msra.mxu0 0.0
    %3561 = vmatprep.subr.mxu0 0.0
    %3562 = vmatpush2.msra.mxu0 0.0
    %3563 = vmatprep.subr.mxu0 0.0
    %3564 = vmatpush2.msra.mxu0 0.0
    %3565 = vmatprep.subr.mxu0 0.0
    %3566 = vmatpush2.msra.mxu0 0.0
    %3567 = vmatprep.subr.mxu0 0.0
    %3568 = vmatpush2.msra.mxu0 0.0
    %3569 = vmatprep.subr.mxu0 0.0
    %3570 = vmatpush2.msra.mxu0 0.0
    %3571 = vmatprep.subr.mxu0 0.0
    %3572 = vmatpush2.msra.mxu0 0.0
    %3573 = vmatprep.mubr.f32.mxu0 0.0
    %3574 = vmatmul.mubr.f32.gmra.mxu0 %v3507
    %v3575 = vpop.f32.mrf.mxu0
    %v3576 = vadd.f32 %v3504, %v3575
    %v3577 = vpop.f32.mrf.mxu0
    %3578 = vdwg.mxu0
    %s3579 = scalar_lea.vmem [#allocation16], 2
    %v3580 = vld [vmem:[%s3579] sm:$0x1]
    %v3582 = vlaneseq
    %v3583 = vshrl.u32 %v3582, 7
    %v3584 = vsub.s32 0, %v3583
    %v3585 = vrot.slane %v3580, %v3584
    %v3587 = vmul.f32 %v1962, %v3585
    %v3588 = vadd.f32 %v3576, %v3587
    %v3589 = vsel %vm451, %v3588, 0.0
    %3590 = vadd.xlane.f32.xlu0 %v3589
    %v3591 = vpop.xlane.xlu0 %3590
    %v3592 = vmul.f32 %v3591, %v1936
    %v3593 = vsub.f32 %v3588, %v3592
    %v3594 = vmul.f32 %v3593, %v3593
    %v3595 = vsel %vm451, %v3594, 0.0
    %3596 = vadd.xlane.f32.xlu0 %v3595
    %v3597 = vpop.xlane.xlu0 %3596
    %v3598 = vmul.f32 %v3597, %v1936
    %v3599 = vadd.f32 %v3598, 1e-05
    %v3600 = vrsqrt.pop %v3599
    %v3601 = vmul.f32 %v3593, %v3600
    %s3602 = scalar_lea.vmem [#allocation17], 2
    %v3603 = vld [vmem:[%s3602] sm:$0x1]
    %v3605 = vlaneseq
    %v3606 = vshrl.u32 %v3605, 7
    %v3607 = vsub.s32 0, %v3606
    %v3608 = vrot.slane %v3603, %v3607
    %v3610 = vmul.f32 %v3601, %v3608
    %s3611 = scalar_lea.vmem [#allocation19], 2
    %v3612 = vld [vmem:[%s3611] sm:$0x1]
    %v3614 = vlaneseq
    %v3615 = vshrl.u32 %v3614, 7
    %v3616 = vsub.s32 0, %v3615
    %v3617 = vrot.slane %v3612, %v3616
    %v3619 = vadd.f32 %v3610, %v3617
    %s3620 = scalar_lea.vmem [#allocation13], 96
    %v3621 = vld [vmem:[%s3620] sm:$0xff]
    %v3622 = vld [vmem:[%s3620 + $0x8] sm:$0xff]
    %v3623 = vld [vmem:[%s3620 + $0x10] sm:$0xff]
    %v3624 = vld [vmem:[%s3620 + $0x18] sm:$0xff]
    %s3625 = scalar_lea.vmem [#allocation14], 3
    %v3626 = vld [vmem:[%s3625] sm:$0x1]
    %v3628 = vlaneseq
    %v3629 = vshrl.u32 %v3628, 7
    %v3630 = vsub.s32 0, %v3629
    %v3631 = vrot.slane %v3626, %v3630
    %v3634 = vsel %vm451, %v2670, 0
    %3636 = vmatprep.subr.mxu0 0.0
    %3637 = vmatpush1.msra.mxu0 0.0
    %3638 = vmatprep.subr.mxu0 0.0
    %3639 = vmatpush1.msra.mxu0 0.0
    %3640 = vmatprep.subr.mxu0 0.0
    %3641 = vmatpush1.msra.mxu0 0.0
    %3642 = vmatprep.subr.mxu0 0.0
    %3643 = vmatpush1.msra.mxu0 0.0
    %3644 = vmatprep.subr.mxu0 0.0
    %3645 = vmatpush1.msra.mxu0 0.0
    %3646 = vmatprep.subr.mxu0 0.0
    %3647 = vmatpush1.msra.mxu0 0.0
    %3648 = vmatprep.subr.mxu0 0.0
    %3649 = vmatpush1.msra.mxu0 0.0
    %3650 = vmatprep.subr.mxu0 0.0
    %3651 = vmatpush1.msra.mxu0 0.0
    %3652 = vmatprep.subr.mxu0 0.0
    %3653 = vmatpush1.msra.mxu0 0.0
    %3654 = vmatprep.subr.mxu0 0.0
    %3655 = vmatpush1.msra.mxu0 0.0
    %3656 = vmatprep.subr.mxu0 0.0
    %3657 = vmatpush1.msra.mxu0 0.0
    %3658 = vmatprep.subr.mxu0 0.0
    %3659 = vmatpush1.msra.mxu0 0.0
    %3660 = vmatprep.subr.mxu0 0.0
    %3661 = vmatpush1.msra.mxu0 %v3624
    %3662 = vmatprep.subr.mxu0 0.0
    %3663 = vmatpush1.msra.mxu0 %v3623
    %3664 = vmatprep.subr.mxu0 0.0
    %3665 = vmatpush1.msra.mxu0 %v3622
    %3666 = vmatprep.subr.mxu0 0.0
    %3667 = vmatpush1.msra.mxu0 %v3621
    %3668 = vmatprep.subr.mxu0 0.0
    %3669 = vmatpush2.msra.mxu0 0.0
    %3670 = vmatprep.subr.mxu0 0.0
    %3671 = vmatpush2.msra.mxu0 0.0
    %3672 = vmatprep.subr.mxu0 0.0
    %3673 = vmatpush2.msra.mxu0 0.0
    %3674 = vmatprep.subr.mxu0 0.0
    %3675 = vmatpush2.msra.mxu0 0.0
    %3676 = vmatprep.subr.mxu0 0.0
    %3677 = vmatpush2.msra.mxu0 0.0
    %3678 = vmatprep.subr.mxu0 0.0
    %3679 = vmatpush2.msra.mxu0 0.0
    %3680 = vmatprep.subr.mxu0 0.0
    %3681 = vmatpush2.msra.mxu0 0.0
    %3682 = vmatprep.subr.mxu0 0.0
    %3683 = vmatpush2.msra.mxu0 0.0
    %3684 = vmatprep.subr.mxu0 0.0
    %3685 = vmatpush2.msra.mxu0 0.0
    %3686 = vmatprep.subr.mxu0 0.0
    %3687 = vmatpush2.msra.mxu0 0.0
    %3688 = vmatprep.subr.mxu0 0.0
    %3689 = vmatpush2.msra.mxu0 0.0
    %3690 = vmatprep.subr.mxu0 0.0
    %3691 = vmatpush2.msra.mxu0 0.0
    %3692 = vmatprep.subr.mxu0 0.0
    %3693 = vmatpush2.msra.mxu0 0.0
    %3694 = vmatprep.subr.mxu0 0.0
    %3695 = vmatpush2.msra.mxu0 0.0
    %3696 = vmatprep.subr.mxu0 0.0
    %3697 = vmatpush2.msra.mxu0 0.0
    %3698 = vmatprep.subr.mxu0 0.0
    %3699 = vmatpush2.msra.mxu0 0.0
    %3700 = vmatprep.mubr.f32.mxu0 0.0
    %3701 = vmatmul.mubr.f32.gmra.mxu0 %v3634
    %v3702 = vpop.f32.mrf.mxu0
    %v3703 = vadd.f32 %v3631, %v3702
    %v3704 = vpop.f32.mrf.mxu0
    %3705 = vdwg.mxu0
    %s3706 = scalar_lea.vmem [#allocation16], 3
    %v3707 = vld [vmem:[%s3706] sm:$0x1]
    %v3709 = vlaneseq
    %v3710 = vshrl.u32 %v3709, 7
    %v3711 = vsub.s32 0, %v3710
    %v3712 = vrot.slane %v3707, %v3711
    %v3714 = vmul.f32 %v2089, %v3712
    %v3715 = vadd.f32 %v3703, %v3714
    %v3716 = vsel %vm451, %v3715, 0.0
    %3717 = vadd.xlane.f32.xlu0 %v3716
    %v3718 = vpop.xlane.xlu0 %3717
    %v3719 = vmul.f32 %v3718, %v1936
    %v3720 = vsub.f32 %v3715, %v3719
    %v3721 = vmul.f32 %v3720, %v3720
    %v3722 = vsel %vm451, %v3721, 0.0
    %3723 = vadd.xlane.f32.xlu0 %v3722
    %v3724 = vpop.xlane.xlu0 %3723
    %v3725 = vmul.f32 %v3724, %v1936
    %v3726 = vadd.f32 %v3725, 1e-05
    %v3727 = vrsqrt.pop %v3726
    %v3728 = vmul.f32 %v3720, %v3727
    %s3729 = scalar_lea.vmem [#allocation17], 3
    %v3730 = vld [vmem:[%s3729] sm:$0x1]
    %v3732 = vlaneseq
    %v3733 = vshrl.u32 %v3732, 7
    %v3734 = vsub.s32 0, %v3733
    %v3735 = vrot.slane %v3730, %v3734
    %v3737 = vmul.f32 %v3728, %v3735
    %s3738 = scalar_lea.vmem [#allocation19], 3
    %v3739 = vld [vmem:[%s3738] sm:$0x1]
    %v3741 = vlaneseq
    %v3742 = vshrl.u32 %v3741, 7
    %v3743 = vsub.s32 0, %v3742
    %v3744 = vrot.slane %v3739, %v3743
    %v3746 = vadd.f32 %v3737, %v3744
    %3747 = vst.msk [vmem:[#allocation22] sm:$0xff] %vm451, %v3619
    %3748 = vst.msk [vmem:[#allocation23] sm:$0xff] %vm451, %v3746
    // Predicated region
    $region106: #{hgt_forward.1} parent=1 // pred_check
      _
    $region107: #{hgt_forward.1} parent=1 // pred_check_branch
      %3750 = sbr.rel (0) target = $region109
    $region108: #{hgt_forward.1} parent=1 // pred_region
      %s3752 = ssub.s32 128, 128
      %3753 = vsyncadd [#allocation4], %s3752
      %s3755 = sshll.u32 [#allocation22], 4
      %s3756 = int_to_ptr.vmem [resolvable:$true] %s3755
      %3758 = dma.vmem_to_hbm [thread:$0]  %s3756, 128, %s14, [#allocation4]
    $region109: #{hgt_forward.1} parent=1 // pred_fallthru
      _
    // Predicated region
    $region110: #{hgt_forward.1} parent=1 // pred_check
      _
    $region111: #{hgt_forward.1} parent=1 // pred_check_branch
      %3760 = sbr.rel (0) target = $region113
    $region112: #{hgt_forward.1} parent=1 // pred_region
      %s3762 = ssub.s32 128, 128
      %3763 = vsyncadd [#allocation24], %s3762
      %s3765 = sshll.u32 [#allocation23], 4
      %s3766 = int_to_ptr.vmem [resolvable:$true] %s3765
      %3768 = dma.vmem_to_hbm [thread:$0]  %s3766, 128, %s15, [#allocation24]
    $region113: #{hgt_forward.1} parent=1 // pred_fallthru
      _
    // Predicated region
    $region114: #{hgt_forward.1} parent=1 // pred_check
      _
    $region115: #{hgt_forward.1} parent=1 // pred_check_branch
      %3770 = sbr.rel (0) target = $region117
    $region116: #{hgt_forward.1} parent=1 // pred_region
      %3771 = dma.done [#allocation4], 128
    $region117: #{hgt_forward.1} parent=1 // pred_fallthru
      _
    // Predicated region
    $region118: #{hgt_forward.1} parent=1 // pred_check
      _
    $region119: #{hgt_forward.1} parent=1 // pred_check_branch
      %3773 = sbr.rel (0) target = $region121
    $region120: #{hgt_forward.1} parent=1 // pred_region
      %3774 = dma.done [#allocation24], 128
    $region121: #{hgt_forward.1} parent=1 // pred_fallthru
      _
    %3775 = vsyncpa [#allocation3], 1
    %3776 = vsyncpa [#allocation6], 1
    %3777 = vsyncpa [#allocation9], 1
    %3778 = vsyncpa [#allocation12], 1
    %3779 = vsyncpa [#allocation15], 1
    %3780 = vsyncpa [#allocation18], 1
    %3781 = vsyncpa [#allocation21], 1
    %3782 = vsyncpa [#allocation4], 1
    %3783 = vsyncpa [#allocation24], 1

</llo_original>
